<compile_context>
chip_gen: v7x
topology: tpu7x:2x2x1
jax: 0.10.0
libtpu: 0.0.40
codegen_flags: <defaults>
</compile_context>

<pallas_src>
from functools import partial

import jax
import jax.numpy as jnp
from jax.experimental import pallas as pl
from jax.experimental.pallas import tpu as pltpu


_VMEM_LIMIT = 32 * 1024 * 1024  # safe on v5e/v6e (128 MiB) and v7x (64 MiB)


def _row_tiling(m, target):
    """Pick an M-tile size: whole array if small, else `target` with padding."""
    if m <= target:
        return m, m
    m_pad = ((m + target - 1) // target) * target
    return target, m_pad


# ----------------------------- Pallas kernels -----------------------------

def _linear_kernel(x_ref, w_ref, b_ref, o_ref, *, relu):
    # x: (TM, K) bf16, w: (K, N) bf16, b: (1, N) f32  ->  o: (TM, N) f32
    acc = jnp.dot(x_ref[...], w_ref[...], preferred_element_type=jnp.float32)
    acc = acc + b_ref[...]
    if relu:
        acc = jnp.maximum(acc, 0.0)
    o_ref[...] = acc.astype(o_ref.dtype)


def _maxpool_kernel(x_ref, o_ref):
    # x: (TR, 2, OWP, 2*Cp)  -- conv rows grouped as (row-pair, ow-pair packed
    #                           into lanes).  o: (TR, OWP, Cp)
    cp = o_ref.shape[-1]
    m = jnp.maximum(x_ref[:, 0, :, :], x_ref[:, 1, :, :])      # vertical pool
    o_ref[...] = jnp.maximum(m[:, :, :cp], m[:, :, cp:])        # horizontal pool


def _fc_head_kernel(x_ref, w1_ref, b1_ref, w2_ref, b2_ref, w3_ref, b3_ref,
                    o_ref):
    # Fused fc1 -> relu -> fc2 -> relu -> fc3 (fc weights resident in VMEM).
    h = jnp.dot(x_ref[...], w1_ref[...],
                preferred_element_type=jnp.float32) + b1_ref[...]
    h = jnp.maximum(h, 0.0).astype(jnp.bfloat16)
    h = jnp.dot(h, w2_ref[...],
                preferred_element_type=jnp.float32) + b2_ref[...]
    h = jnp.maximum(h, 0.0).astype(jnp.bfloat16)
    o = jnp.dot(h, w3_ref[...],
                preferred_element_type=jnp.float32) + b3_ref[...]
    o_ref[...] = o.astype(o_ref.dtype)


# ----------------------------- Pallas wrappers -----------------------------

def pallas_linear(x_bf16, w_bf16, b_row_f32, *, relu, tm=512):
    """Fused (x @ w + b) (+ ReLU), tiled over M, bf16 operands, f32 accumulate."""
    M, K = x_bf16.shape
    Kw, N = w_bf16.shape
    assert K == Kw
    tm_eff, m_pad = _row_tiling(M, tm)
    if m_pad != M:
        x_bf16 = jnp.pad(x_bf16, ((0, m_pad - M), (0, 0)))
    grid = (m_pad // tm_eff,)
    cost = pl.CostEstimate(
        flops=int(2 * m_pad * K * N),
        transcendentals=0,
        bytes_accessed=int(m_pad * K * 2 + K * N * 2 + N * 4 + m_pad * N * 4))
    out = pl.pallas_call(
        partial(_linear_kernel, relu=relu),
        out_shape=jax.ShapeDtypeStruct((m_pad, N), jnp.float32),
        grid=grid,
        in_specs=[
            pl.BlockSpec((tm_eff, K), lambda i: (i, 0)),
            pl.BlockSpec((K, N), lambda i: (0, 0)),
            pl.BlockSpec((1, N), lambda i: (0, 0)),
        ],
        out_specs=pl.BlockSpec((tm_eff, N), lambda i: (i, 0)),
        compiler_params=pltpu.CompilerParams(
            dimension_semantics=("parallel",),
            vmem_limit_bytes=_VMEM_LIMIT),
        cost_estimate=cost,
    )(x_bf16, w_bf16, b_row_f32)
    return out[:M] if m_pad != M else out


def conv2d_relu_flat(x_nhwc, w_mat_bf16, b_row_f32, *, kh_kw=(5, 5)):
    """Valid conv + bias + ReLU via im2col (XLA glue) + tiled Pallas matmul.

    Returns the lane-dense flat output (B*OH*OW, Cout_pad) plus (OH, OW).
    """
    KH, KW = kh_kw
    B, H, W, _ = x_nhwc.shape
    K, _ = w_mat_bf16.shape
    cin = K // (KH * KW)
    OH, OW = H - KH + 1, W - KW + 1
    xs = x_nhwc[..., :cin]                                   # drop padded chans
    patches = [xs[:, kh:kh + OH, kw:kw + OW, :]
               for kh in range(KH) for kw in range(KW)]
    pat = jnp.concatenate(patches, axis=-1)                  # (B,OH,OW,KH*KW*cin)
    pat = pat.reshape(B * OH * OW, K).astype(jnp.bfloat16)   # im2col, bf16 DMA
    out = pallas_linear(pat, w_mat_bf16, b_row_f32, relu=True)
    return out, OH, OW


def pallas_maxpool2x2(conv_flat, B, OH, OW, cp):
    """2x2/stride-2 max pool on the lane-dense conv output (B*OH*OW, cp).

    Uses only free reshapes on the HBM side; pooling is done in-kernel with a
    leading-dim max (row pairs) and a 128-aligned lane split (column pairs).
    """
    OHP, OWP = OH // 2, OW // 2
    R = B * OHP
    x4 = conv_flat.reshape(R, 2, OWP, 2 * cp)                # free reshape
    tr, r_pad = _row_tiling(R, 256)
    if r_pad != R:
        x4 = jnp.pad(x4, ((0, r_pad - R), (0, 0), (0, 0), (0, 0)))
    grid = (r_pad // tr,)
    out = pl.pallas_call(
        _maxpool_kernel,
        out_shape=jax.ShapeDtypeStruct((r_pad, OWP, cp), conv_flat.dtype),
        grid=grid,
        in_specs=[pl.BlockSpec((tr, 2, OWP, 2 * cp), lambda i: (i, 0, 0, 0))],
        out_specs=pl.BlockSpec((tr, OWP, cp), lambda i: (i, 0, 0)),
        compiler_params=pltpu.CompilerParams(
            dimension_semantics=("parallel",),
            vmem_limit_bytes=_VMEM_LIMIT),
    )(x4)
    if r_pad != R:
        out = out[:R]
    return out.reshape(B, OHP, OWP, cp)


def pallas_fc_head(x_bf16, w1, b1, w2, b2, w3, b3, *, tm=256):
    """Fused fc1/fc2/fc3 (+ReLUs) in one pallas_call; weights VMEM-resident."""
    M, K1 = x_bf16.shape
    N1, N2, N3 = w1.shape[1], w2.shape[1], w3.shape[1]
    tm_eff, m_pad = _row_tiling(M, tm)
    if m_pad != M:
        x_bf16 = jnp.pad(x_bf16, ((0, m_pad - M), (0, 0)))
    grid = (m_pad // tm_eff,)
    cost = pl.CostEstimate(
        flops=int(2 * m_pad * (K1 * N1 + N1 * N2 + N2 * N3)),
        transcendentals=0,
        bytes_accessed=int(m_pad * K1 * 2 + (K1 * N1 + N1 * N2 + N2 * N3) * 2
                           + (N1 + N2 + N3) * 4 + m_pad * N3 * 4))
    out = pl.pallas_call(
        _fc_head_kernel,
        out_shape=jax.ShapeDtypeStruct((m_pad, N3), jnp.float32),
        grid=grid,
        in_specs=[
            pl.BlockSpec((tm_eff, K1), lambda i: (i, 0)),
            pl.BlockSpec((K1, N1), lambda i: (0, 0)),
            pl.BlockSpec((1, N1), lambda i: (0, 0)),
            pl.BlockSpec((N1, N2), lambda i: (0, 0)),
            pl.BlockSpec((1, N2), lambda i: (0, 0)),
            pl.BlockSpec((N2, N3), lambda i: (0, 0)),
            pl.BlockSpec((1, N3), lambda i: (0, 0)),
        ],
        out_specs=pl.BlockSpec((tm_eff, N3), lambda i: (i, 0)),
        compiler_params=pltpu.CompilerParams(
            dimension_semantics=("parallel",),
            vmem_limit_bytes=_VMEM_LIMIT),
        cost_estimate=cost,
    )(x_bf16, w1, b1, w2, b2, w3, b3)
    return out[:M] if m_pad != M else out


# ----------------------------- Parameters -----------------------------

_CP = 128  # padded channel / lane width


def init_params(key, num_classes=10):
    """Random params (same nominal shapes as the PyTorch module), packed into
    lane-dense, bf16 layouts for the Pallas kernels."""
    ks = jax.random.split(key, 10)
    s = 0.05
    conv1_w = jax.random.normal(ks[0], (5, 5, 1, 32), jnp.float32) * s
    conv1_b = jax.random.normal(ks[1], (32,), jnp.float32) * s
    conv2_w = jax.random.normal(ks[2], (5, 5, 32, 64), jnp.float32) * s
    conv2_b = jax.random.normal(ks[3], (64,), jnp.float32) * s
    fc1_w = jax.random.normal(ks[4], (64 * 4 * 4, 512), jnp.float32) * s
    fc1_b = jax.random.normal(ks[5], (512,), jnp.float32) * s
    fc2_w = jax.random.normal(ks[6], (512, 128), jnp.float32) * s
    fc2_b = jax.random.normal(ks[7], (128,), jnp.float32) * s
    fc3_w = jax.random.normal(ks[8], (128, num_classes), jnp.float32) * s
    fc3_b = jax.random.normal(ks[9], (num_classes,), jnp.float32) * s

    ncp = max(_CP, ((num_classes + _CP - 1) // _CP) * _CP)

    # conv weights: pad Cout -> 128 lanes, flatten taps (kh, kw, cin) rows.
    c1w = jnp.pad(conv1_w, ((0, 0), (0, 0), (0, 0), (0, _CP - 32)))
    c1w = c1w.reshape(5 * 5 * 1, _CP).astype(jnp.bfloat16)
    c1b = jnp.pad(conv1_b, (0, _CP - 32)).reshape(1, _CP)
    c2w = jnp.pad(conv2_w, ((0, 0), (0, 0), (0, 0), (0, _CP - 64)))
    c2w = c2w.reshape(5 * 5 * 32, _CP).astype(jnp.bfloat16)
    c2b = jnp.pad(conv2_b, (0, _CP - 64)).reshape(1, _CP)

    # fc1: permute rows from PyTorch NCHW-flatten order (c, h, w) to the
    # NHWC-padded flatten order (h, w, c_pad) used by the kernel pipeline.
    w1 = fc1_w.reshape(64, 4, 4, 512)                 # (c, h, w, out)
    w1 = jnp.transpose(w1, (1, 2, 0, 3))              # (h, w, c, out)
    w1 = jnp.pad(w1, ((0, 0), (0, 0), (0, _CP - 64), (0, 0)))
    w1 = w1.reshape(4 * 4 * _CP, 512).astype(jnp.bfloat16)

    w3 = jnp.pad(fc3_w, ((0, 0), (0, ncp - num_classes))).astype(jnp.bfloat16)
    b3 = jnp.pad(fc3_b, (0, ncp - num_classes)).reshape(1, ncp)

    return {
        "conv1_w": c1w, "conv1_b": c1b,
        "conv2_w": c2w, "conv2_b": c2b,
        "fc1_w": w1, "fc1_b": fc1_b.reshape(1, 512),
        "fc2_w": fc2_w.astype(jnp.bfloat16), "fc2_b": fc2_b.reshape(1, 128),
        "fc3_w": w3, "fc3_b": b3,
    }


# ----------------------------- Model -----------------------------

@partial(jax.jit, static_argnames=("num_classes",))
def mnistcnn_forward(params, x_nchw, *, num_classes=10):
    """x_nchw: (B, 1, 28, 28) float32  ->  logits (B, num_classes)."""
    B = x_nchw.shape[0]
    x = jnp.transpose(x_nchw, (0, 2, 3, 1))                        # NCHW -> NHWC

    # conv1 + relu (lane-dense 128-ch output), fused 2x2 max pool kernel.
    c1, oh1, ow1 = conv2d_relu_flat(x, params["conv1_w"], params["conv1_b"])
    p1 = pallas_maxpool2x2(c1, B, oh1, ow1, _CP)                   # (B,12,12,128)

    # conv2 + relu (reads only the 32 real channels), fused 2x2 max pool.
    c2, oh2, ow2 = conv2d_relu_flat(p1, params["conv2_w"], params["conv2_b"])
    p2 = pallas_maxpool2x2(c2, B, oh2, ow2, _CP)                   # (B,4,4,128)

    # NHWC-padded flatten (free reshape); fc1_w rows were permuted at init so
    # this matches PyTorch's NCHW .view ordering exactly.
    flat = p2.reshape(B, 4 * 4 * _CP).astype(jnp.bfloat16)

    logits_pad = pallas_fc_head(
        flat,
        params["fc1_w"], params["fc1_b"],
        params["fc2_w"], params["fc2_b"],
        params["fc3_w"], params["fc3_b"])
    return logits_pad[:, :num_classes]


if __name__ == "__main__":
    key = jax.random.PRNGKey(0)
    pkey, xkey = jax.random.split(key)
    params = init_params(pkey, num_classes=10)

    # MNIST-shaped input (fc1's 64*4*4 forces 28x28 spatial), batch=2.
    x = jax.random.normal(xkey, (2, 1, 28, 28), jnp.float32)

    logits = mnistcnn_forward(params, x, num_classes=10)
    jax.block_until_ready(logits)
    assert logits.shape == (2, 10)
    print("KERNEL_OK")
</pallas_src>

<mosaic_0001>
module attributes {stable_mosaic.version = 11 : i64} {
  func.func @_linear_kernel(%arg0: i32, %arg1: memref<512x25xbf16, #tpu.memory_space<vmem>>, %arg2: memref<25x128xbf16, #tpu.memory_space<vmem>>, %arg3: memref<1x128xf32, #tpu.memory_space<vmem>>, %arg4: memref<512x128xf32, #tpu.memory_space<vmem>>) attributes {dimension_semantics = [#tpu.dimension_semantics<parallel>], iteration_bounds = array<i64: 3>, scalar_prefetch = 0 : i64, scratch_operands = 0 : i64, tpu.core_type = #tpu.core_type<tc>, window_params = [{transform_indices = @transform_0, window_bounds = array<i64: 512, 25>}, {pipeline_mode = #tpu.pipeline_mode<synchronous>, transform_indices = @transform_1, window_bounds = array<i64: 25, 128>}, {pipeline_mode = #tpu.pipeline_mode<synchronous>, transform_indices = @transform_2, window_bounds = array<i64: 1, 128>}, {transform_indices = @transform_3, window_bounds = array<i64: 512, 128>}]} {
    %c0 = arith.constant 0 : index
    %c0_0 = arith.constant 0 : index
    %0 = vector.load %arg1[%c0, %c0_0] : memref<512x25xbf16, #tpu.memory_space<vmem>>, vector<512x25xbf16>
    %c0_1 = arith.constant 0 : index
    %c0_2 = arith.constant 0 : index
    %1 = vector.load %arg2[%c0_1, %c0_2] : memref<25x128xbf16, #tpu.memory_space<vmem>>, vector<25x128xbf16>
    %cst = arith.constant dense<0.000000e+00> : vector<512x128xf32>
    %2 = tpu.matmul %0, %1, %cst {dimension_numbers = #tpu.dot_dimension_numbers<[1], [0], [0], [1], [0, 0, 1, 1], [], []>} : vector<512x25xbf16>, vector<25x128xbf16>, vector<512x128xf32> -> vector<512x128xf32>
    %c0_3 = arith.constant 0 : index
    %c0_4 = arith.constant 0 : index
    %3 = vector.load %arg3[%c0_3, %c0_4] : memref<1x128xf32, #tpu.memory_space<vmem>>, vector<1x128xf32>
    %4 = vector.broadcast %3 : vector<1x128xf32> to vector<512x128xf32>
    %5 = arith.addf %2, %4 : vector<512x128xf32>
    %cst_5 = arith.constant 0.000000e+00 : f32
    %6 = vector.broadcast %cst_5 : f32 to vector<512x128xf32>
    %7 = arith.maximumf %5, %6 : vector<512x128xf32>
    %c0_6 = arith.constant 0 : index
    %c0_7 = arith.constant 0 : index
    %8 = vector.load %arg4[%c0_6, %c0_7] : memref<512x128xf32, #tpu.memory_space<vmem>>, vector<512x128xf32>
    tpu.vector_store %arg4[%c0_6, %c0_7], %7 {strides = array<i32>} : memref<512x128xf32, #tpu.memory_space<vmem>>, vector<512x128xf32>,
    return
  }
  func.func @transform_0(%arg0: i32) -> (i32, i32) {
    %c0_i32 = arith.constant 0 : i32
    %c0_i32_0 = arith.constant 0 : i32
    return %arg0, %c0_i32 : i32, i32
  }
  func.func @transform_1(%arg0: i32) -> (i32, i32) {
    %c0_i32 = arith.constant 0 : i32
    %c0_i32_0 = arith.constant 0 : i32
    %c0_i32_1 = arith.constant 0 : i32
    return %c0_i32, %c0_i32_0 : i32, i32
  }
  func.func @transform_2(%arg0: i32) -> (i32, i32) {
    %c0_i32 = arith.constant 0 : i32
    %c0_i32_0 = arith.constant 0 : i32
    %c0_i32_1 = arith.constant 0 : i32
    return %c0_i32, %c0_i32_0 : i32, i32
  }
  func.func @transform_3(%arg0: i32) -> (i32, i32) {
    %c0_i32 = arith.constant 0 : i32
    %c0_i32_0 = arith.constant 0 : i32
    return %arg0, %c0_i32 : i32, i32
  }
}

module attributes {stable_mosaic.version = 11 : i64} {
  func.func @_maxpool_kernel(%arg0: i32, %arg1: memref<24x2x12x256xf32, #tpu.memory_space<vmem>>, %arg2: memref<24x12x128xf32, #tpu.memory_space<vmem>>) attributes {dimension_semantics = [#tpu.dimension_semantics<parallel>], iteration_bounds = array<i64: 1>, scalar_prefetch = 0 : i64, scratch_operands = 0 : i64, tpu.core_type = #tpu.core_type<tc>, window_params = [{transform_indices = @transform_0, window_bounds = array<i64: 24, 2, 12, 256>}, {transform_indices = @transform_1, window_bounds = array<i64: 24, 12, 128>}]} {
    %c0 = arith.constant 0 : index
    %c0_0 = arith.constant 0 : index
    %c0_1 = arith.constant 0 : index
    %c0_2 = arith.constant 0 : index
    %0 = vector.load %arg1[%c0, %c0_0, %c0_1, %c0_2] : memref<24x2x12x256xf32, #tpu.memory_space<vmem>>, vector<24x1x12x256xf32>
    %1 = vector.shape_cast %0 : vector<24x1x12x256xf32> to vector<24x12x256xf32>
    %c0_3 = arith.constant 0 : index
    %c1 = arith.constant 1 : index
    %c0_4 = arith.constant 0 : index
    %c0_5 = arith.constant 0 : index
    %2 = vector.load %arg1[%c0_3, %c1, %c0_4, %c0_5] : memref<24x2x12x256xf32, #tpu.memory_space<vmem>>, vector<24x1x12x256xf32>
    %3 = vector.shape_cast %2 : vector<24x1x12x256xf32> to vector<24x12x256xf32>
    %4 = arith.maximumf %1, %3 : vector<24x12x256xf32>
    %5 = vector.extract_strided_slice %4 {offsets = [0, 0, 0], sizes = [24, 12, 128], strides = [1, 1, 1]} : vector<24x12x256xf32> to vector<24x12x128xf32>
    %6 = vector.extract_strided_slice %4 {offsets = [0, 0, 128], sizes = [24, 12, 128], strides = [1, 1, 1]} : vector<24x12x256xf32> to vector<24x12x128xf32>
    %7 = arith.maximumf %5, %6 : vector<24x12x128xf32>
    %c0_6 = arith.constant 0 : index
    %c0_7 = arith.constant 0 : index
    %c0_8 = arith.constant 0 : index
    %8 = vector.load %arg2[%c0_6, %c0_7, %c0_8] : memref<24x12x128xf32, #tpu.memory_space<vmem>>, vector<24x12x128xf32>
    tpu.vector_store %arg2[%c0_6, %c0_7, %c0_8], %7 {strides = array<i32>} : memref<24x12x128xf32, #tpu.memory_space<vmem>>, vector<24x12x128xf32>,
    return
  }
  func.func @transform_0(%arg0: i32) -> (i32, i32, i32, i32) {
    %c0_i32 = arith.constant 0 : i32
    %c0_i32_0 = arith.constant 0 : i32
    %c0_i32_1 = arith.constant 0 : i32
    %c0_i32_2 = arith.constant 0 : i32
    return %arg0, %c0_i32, %c0_i32_0, %c0_i32_1 : i32, i32, i32, i32
  }
  func.func @transform_1(%arg0: i32) -> (i32, i32, i32) {
    %c0_i32 = arith.constant 0 : i32
    %c0_i32_0 = arith.constant 0 : i32
    %c0_i32_1 = arith.constant 0 : i32
    return %arg0, %c0_i32, %c0_i32_0 : i32, i32, i32
  }
}

module attributes {stable_mosaic.version = 11 : i64} {
  func.func @_linear_kernel(%arg0: i32, %arg1: memref<128x800xbf16, #tpu.memory_space<vmem>>, %arg2: memref<800x128xbf16, #tpu.memory_space<vmem>>, %arg3: memref<1x128xf32, #tpu.memory_space<vmem>>, %arg4: memref<128x128xf32, #tpu.memory_space<vmem>>) attributes {dimension_semantics = [#tpu.dimension_semantics<parallel>], iteration_bounds = array<i64: 1>, scalar_prefetch = 0 : i64, scratch_operands = 0 : i64, tpu.core_type = #tpu.core_type<tc>, window_params = [{transform_indices = @transform_0, window_bounds = array<i64: 128, 800>}, {pipeline_mode = #tpu.pipeline_mode<synchronous>, transform_indices = @transform_1, window_bounds = array<i64: 800, 128>}, {pipeline_mode = #tpu.pipeline_mode<synchronous>, transform_indices = @transform_2, window_bounds = array<i64: 1, 128>}, {transform_indices = @transform_3, window_bounds = array<i64: 128, 128>}]} {
    %c0 = arith.constant 0 : index
    %c0_0 = arith.constant 0 : index
    %0 = vector.load %arg1[%c0, %c0_0] : memref<128x800xbf16, #tpu.memory_space<vmem>>, vector<128x800xbf16>
    %c0_1 = arith.constant 0 : index
    %c0_2 = arith.constant 0 : index
    %1 = vector.load %arg2[%c0_1, %c0_2] : memref<800x128xbf16, #tpu.memory_space<vmem>>, vector<800x128xbf16>
    %cst = arith.constant dense<0.000000e+00> : vector<128x128xf32>
    %2 = tpu.matmul %0, %1, %cst {dimension_numbers = #tpu.dot_dimension_numbers<[1], [0], [0], [1], [0, 0, 1, 1], [], []>} : vector<128x800xbf16>, vector<800x128xbf16>, vector<128x128xf32> -> vector<128x128xf32>
    %c0_3 = arith.constant 0 : index
    %c0_4 = arith.constant 0 : index
    %3 = vector.load %arg3[%c0_3, %c0_4] : memref<1x128xf32, #tpu.memory_space<vmem>>, vector<1x128xf32>
    %4 = vector.broadcast %3 : vector<1x128xf32> to vector<128x128xf32>
    %5 = arith.addf %2, %4 : vector<128x128xf32>
    %cst_5 = arith.constant 0.000000e+00 : f32
    %6 = vector.broadcast %cst_5 : f32 to vector<128x128xf32>
    %7 = arith.maximumf %5, %6 : vector<128x128xf32>
    %c0_6 = arith.constant 0 : index
    %c0_7 = arith.constant 0 : index
    %8 = vector.load %arg4[%c0_6, %c0_7] : memref<128x128xf32, #tpu.memory_space<vmem>>, vector<128x128xf32>
    tpu.vector_store %arg4[%c0_6, %c0_7], %7 {strides = array<i32>} : memref<128x128xf32, #tpu.memory_space<vmem>>, vector<128x128xf32>,
    return
  }
  func.func @transform_0(%arg0: i32) -> (i32, i32) {
    %c0_i32 = arith.constant 0 : i32
    %c0_i32_0 = arith.constant 0 : i32
    return %arg0, %c0_i32 : i32, i32
  }
  func.func @transform_1(%arg0: i32) -> (i32, i32) {
    %c0_i32 = arith.constant 0 : i32
    %c0_i32_0 = arith.constant 0 : i32
    %c0_i32_1 = arith.constant 0 : i32
    return %c0_i32, %c0_i32_0 : i32, i32
  }
  func.func @transform_2(%arg0: i32) -> (i32, i32) {
    %c0_i32 = arith.constant 0 : i32
    %c0_i32_0 = arith.constant 0 : i32
    %c0_i32_1 = arith.constant 0 : i32
    return %c0_i32, %c0_i32_0 : i32, i32
  }
  func.func @transform_3(%arg0: i32) -> (i32, i32) {
    %c0_i32 = arith.constant 0 : i32
    %c0_i32_0 = arith.constant 0 : i32
    return %arg0, %c0_i32 : i32, i32
  }
}

module attributes {stable_mosaic.version = 11 : i64} {
  func.func @_maxpool_kernel(%arg0: i32, %arg1: memref<8x2x4x256xf32, #tpu.memory_space<vmem>>, %arg2: memref<8x4x128xf32, #tpu.memory_space<vmem>>) attributes {dimension_semantics = [#tpu.dimension_semantics<parallel>], iteration_bounds = array<i64: 1>, scalar_prefetch = 0 : i64, scratch_operands = 0 : i64, tpu.core_type = #tpu.core_type<tc>, window_params = [{transform_indices = @transform_0, window_bounds = array<i64: 8, 2, 4, 256>}, {transform_indices = @transform_1, window_bounds = array<i64: 8, 4, 128>}]} {
    %c0 = arith.constant 0 : index
    %c0_0 = arith.constant 0 : index
    %c0_1 = arith.constant 0 : index
    %c0_2 = arith.constant 0 : index
    %0 = vector.load %arg1[%c0, %c0_0, %c0_1, %c0_2] : memref<8x2x4x256xf32, #tpu.memory_space<vmem>>, vector<8x1x4x256xf32>
    %1 = vector.shape_cast %0 : vector<8x1x4x256xf32> to vector<8x4x256xf32>
    %c0_3 = arith.constant 0 : index
    %c1 = arith.constant 1 : index
    %c0_4 = arith.constant 0 : index
    %c0_5 = arith.constant 0 : index
    %2 = vector.load %arg1[%c0_3, %c1, %c0_4, %c0_5] : memref<8x2x4x256xf32, #tpu.memory_space<vmem>>, vector<8x1x4x256xf32>
    %3 = vector.shape_cast %2 : vector<8x1x4x256xf32> to vector<8x4x256xf32>
    %4 = arith.maximumf %1, %3 : vector<8x4x256xf32>
    %5 = vector.extract_strided_slice %4 {offsets = [0, 0, 0], sizes = [8, 4, 128], strides = [1, 1, 1]} : vector<8x4x256xf32> to vector<8x4x128xf32>
    %6 = vector.extract_strided_slice %4 {offsets = [0, 0, 128], sizes = [8, 4, 128], strides = [1, 1, 1]} : vector<8x4x256xf32> to vector<8x4x128xf32>
    %7 = arith.maximumf %5, %6 : vector<8x4x128xf32>
    %c0_6 = arith.constant 0 : index
    %c0_7 = arith.constant 0 : index
    %c0_8 = arith.constant 0 : index
    %8 = vector.load %arg2[%c0_6, %c0_7, %c0_8] : memref<8x4x128xf32, #tpu.memory_space<vmem>>, vector<8x4x128xf32>
    tpu.vector_store %arg2[%c0_6, %c0_7, %c0_8], %7 {strides = array<i32>} : memref<8x4x128xf32, #tpu.memory_space<vmem>>, vector<8x4x128xf32>,
    return
  }
  func.func @transform_0(%arg0: i32) -> (i32, i32, i32, i32) {
    %c0_i32 = arith.constant 0 : i32
    %c0_i32_0 = arith.constant 0 : i32
    %c0_i32_1 = arith.constant 0 : i32
    %c0_i32_2 = arith.constant 0 : i32
    return %arg0, %c0_i32, %c0_i32_0, %c0_i32_1 : i32, i32, i32, i32
  }
  func.func @transform_1(%arg0: i32) -> (i32, i32, i32) {
    %c0_i32 = arith.constant 0 : i32
    %c0_i32_0 = arith.constant 0 : i32
    %c0_i32_1 = arith.constant 0 : i32
    return %arg0, %c0_i32, %c0_i32_0 : i32, i32, i32
  }
}

module attributes {stable_mosaic.version = 11 : i64} {
  func.func @_fc_head_kernel(%arg0: i32, %arg1: memref<2x2048xbf16, #tpu.memory_space<vmem>>, %arg2: memref<2048x512xbf16, #tpu.memory_space<vmem>>, %arg3: memref<1x512xf32, #tpu.memory_space<vmem>>, %arg4: memref<512x128xbf16, #tpu.memory_space<vmem>>, %arg5: memref<1x128xf32, #tpu.memory_space<vmem>>, %arg6: memref<128x128xbf16, #tpu.memory_space<vmem>>, %arg7: memref<1x128xf32, #tpu.memory_space<vmem>>, %arg8: memref<2x128xf32, #tpu.memory_space<vmem>>) attributes {dimension_semantics = [#tpu.dimension_semantics<parallel>], iteration_bounds = array<i64: 1>, scalar_prefetch = 0 : i64, scratch_operands = 0 : i64, tpu.core_type = #tpu.core_type<tc>, window_params = [{transform_indices = @transform_0, window_bounds = array<i64: 2, 2048>}, {pipeline_mode = #tpu.pipeline_mode<synchronous>, transform_indices = @transform_1, window_bounds = array<i64: 2048, 512>}, {pipeline_mode = #tpu.pipeline_mode<synchronous>, transform_indices = @transform_2, window_bounds = array<i64: 1, 512>}, {pipeline_mode = #tpu.pipeline_mode<synchronous>, transform_indices = @transform_3, window_bounds = array<i64: 512, 128>}, {pipeline_mode = #tpu.pipeline_mode<synchronous>, transform_indices = @transform_4, window_bounds = array<i64: 1, 128>}, {pipeline_mode = #tpu.pipeline_mode<synchronous>, transform_indices = @transform_5, window_bounds = array<i64: 128, 128>}, {pipeline_mode = #tpu.pipeline_mode<synchronous>, transform_indices = @transform_6, window_bounds = array<i64: 1, 128>}, {transform_indices = @transform_7, window_bounds = array<i64: 2, 128>}]} {
    %c0 = arith.constant 0 : index
    %c0_0 = arith.constant 0 : index
    %0 = vector.load %arg1[%c0, %c0_0] : memref<2x2048xbf16, #tpu.memory_space<vmem>>, vector<2x2048xbf16>
    %c0_1 = arith.constant 0 : index
    %c0_2 = arith.constant 0 : index
    %1 = vector.load %arg2[%c0_1, %c0_2] : memref<2048x512xbf16, #tpu.memory_space<vmem>>, vector<2048x512xbf16>
    %cst = arith.constant dense<0.000000e+00> : vector<2x512xf32>
    %2 = tpu.matmul %0, %1, %cst {dimension_numbers = #tpu.dot_dimension_numbers<[1], [0], [0], [1], [0, 0, 1, 1], [], []>} : vector<2x2048xbf16>, vector<2048x512xbf16>, vector<2x512xf32> -> vector<2x512xf32>
    %c0_3 = arith.constant 0 : index
    %c0_4 = arith.constant 0 : index
    %3 = vector.load %arg3[%c0_3, %c0_4] : memref<1x512xf32, #tpu.memory_space<vmem>>, vector<1x512xf32>
    %4 = vector.broadcast %3 : vector<1x512xf32> to vector<2x512xf32>
    %5 = arith.addf %2, %4 : vector<2x512xf32>
    %cst_5 = arith.constant 0.000000e+00 : f32
    %6 = vector.broadcast %cst_5 : f32 to vector<2x512xf32>
    %7 = arith.maximumf %5, %6 : vector<2x512xf32>
    %8 = arith.truncf %7 : vector<2x512xf32> to vector<2x512xbf16>
    %c0_6 = arith.constant 0 : index
    %c0_7 = arith.constant 0 : index
    %9 = vector.load %arg4[%c0_6, %c0_7] : memref<512x128xbf16, #tpu.memory_space<vmem>>, vector<512x128xbf16>
    %cst_8 = arith.constant dense<0.000000e+00> : vector<2x128xf32>
    %10 = tpu.matmul %8, %9, %cst_8 {dimension_numbers = #tpu.dot_dimension_numbers<[1], [0], [0], [1], [0, 0, 1, 1], [], []>} : vector<2x512xbf16>, vector<512x128xbf16>, vector<2x128xf32> -> vector<2x128xf32>
    %c0_9 = arith.constant 0 : index
    %c0_10 = arith.constant 0 : index
    %11 = vector.load %arg5[%c0_9, %c0_10] : memref<1x128xf32, #tpu.memory_space<vmem>>, vector<1x128xf32>
    %12 = vector.broadcast %11 : vector<1x128xf32> to vector<2x128xf32>
    %13 = arith.addf %10, %12 : vector<2x128xf32>
    %cst_11 = arith.constant 0.000000e+00 : f32
    %14 = vector.broadcast %cst_11 : f32 to vector<2x128xf32>
    %15 = arith.maximumf %13, %14 : vector<2x128xf32>
    %16 = arith.truncf %15 : vector<2x128xf32> to vector<2x128xbf16>
    %c0_12 = arith.constant 0 : index
    %c0_13 = arith.constant 0 : index
    %17 = vector.load %arg6[%c0_12, %c0_13] : memref<128x128xbf16, #tpu.memory_space<vmem>>, vector<128x128xbf16>
    %cst_14 = arith.constant dense<0.000000e+00> : vector<2x128xf32>
    %18 = tpu.matmul %16, %17, %cst_14 {dimension_numbers = #tpu.dot_dimension_numbers<[1], [0], [0], [1], [0, 0, 1, 1], [], []>} : vector<2x128xbf16>, vector<128x128xbf16>, vector<2x128xf32> -> vector<2x128xf32>
    %c0_15 = arith.constant 0 : index
    %c0_16 = arith.constant 0 : index
    %19 = vector.load %arg7[%c0_15, %c0_16] : memref<1x128xf32, #tpu.memory_space<vmem>>, vector<1x128xf32>
    %20 = vector.broadcast %19 : vector<1x128xf32> to vector<2x128xf32>
    %21 = arith.addf %18, %20 : vector<2x128xf32>
    %c0_17 = arith.constant 0 : index
    %c0_18 = arith.constant 0 : index
    %22 = vector.load %arg8[%c0_17, %c0_18] : memref<2x128xf32, #tpu.memory_space<vmem>>, vector<2x128xf32>
    tpu.vector_store %arg8[%c0_17, %c0_18], %21 {strides = array<i32>} : memref<2x128xf32, #tpu.memory_space<vmem>>, vector<2x128xf32>,
    return
  }
  func.func @transform_0(%arg0: i32) -> (i32, i32) {
    %c0_i32 = arith.constant 0 : i32
    %c0_i32_0 = arith.constant 0 : i32
    return %arg0, %c0_i32 : i32, i32
  }
  func.func @transform_1(%arg0: i32) -> (i32, i32) {
    %c0_i32 = arith.constant 0 : i32
    %c0_i32_0 = arith.constant 0 : i32
    %c0_i32_1 = arith.constant 0 : i32
    return %c0_i32, %c0_i32_0 : i32, i32
  }
  func.func @transform_2(%arg0: i32) -> (i32, i32) {
    %c0_i32 = arith.constant 0 : i32
    %c0_i32_0 = arith.constant 0 : i32
    %c0_i32_1 = arith.constant 0 : i32
    return %c0_i32, %c0_i32_0 : i32, i32
  }
  func.func @transform_3(%arg0: i32) -> (i32, i32) {
    %c0_i32 = arith.constant 0 : i32
    %c0_i32_0 = arith.constant 0 : i32
    %c0_i32_1 = arith.constant 0 : i32
    return %c0_i32, %c0_i32_0 : i32, i32
  }
  func.func @transform_4(%arg0: i32) -> (i32, i32) {
    %c0_i32 = arith.constant 0 : i32
    %c0_i32_0 = arith.constant 0 : i32
    %c0_i32_1 = arith.constant 0 : i32
    return %c0_i32, %c0_i32_0 : i32, i32
  }
  func.func @transform_5(%arg0: i32) -> (i32, i32) {
    %c0_i32 = arith.constant 0 : i32
    %c0_i32_0 = arith.constant 0 : i32
    %c0_i32_1 = arith.constant 0 : i32
    return %c0_i32, %c0_i32_0 : i32, i32
  }
  func.func @transform_6(%arg0: i32) -> (i32, i32) {
    %c0_i32 = arith.constant 0 : i32
    %c0_i32_0 = arith.constant 0 : i32
    %c0_i32_1 = arith.constant 0 : i32
    return %c0_i32, %c0_i32_0 : i32, i32
  }
  func.func @transform_7(%arg0: i32) -> (i32, i32) {
    %c0_i32 = arith.constant 0 : i32
    %c0_i32_0 = arith.constant 0 : i32
    return %arg0, %c0_i32 : i32, i32
  }
}

</mosaic_0001>

<llo_original>
// kernel: mnistcnn_forward.5
$region0: #{mnistcnn_forward.5}
  #allocation0 [shape = 'u32[]', space=smem, size = 0x4, offset = 0x4, fixed_abs, tag = 'smem constant byte address 0x4 - core index']
  #allocation1 [shape = 'u32[144,128]{1,0:T(1,128)}', space=vmem, size = 0x12000, scoped, tag = 'internal scratch']
  %s0 = inlined_call_operand.vmem [shape: bf16[1536,25], index: 0, kind: input, shape index: {}]
  %s1 = inlined_call_operand.hbm [shape: bf16[25,128], index: 1, kind: input, shape index: {}]
  %s2 = inlined_call_operand.hbm [shape: f32[1,128], index: 2, kind: input, shape index: {}]
  %s3 = inlined_call_operand.vmem [shape: f32[1536,128], index: 3, kind: output, shape index: {}]
  %s4 = sld [smem:[#allocation0]]
  $region53: #{mnistcnn_forward.5} parent=0
    _
  %s6 = ssub.s32 1, %s4
  %s7 = scalar_select 0, %s6, %s4
  $region1: #{mnistcnn_forward.5} parent=0
    #allocation2 [shape = 'u8[8192]{0}', space=vmem, size = 0x2000, scoped, tag = 'input window, operand 1, single buffered']
    #allocation3 [shape = 's32[2]{0}', space=sflag, size = 0x8, scoped, tag = 'scoped memory for mnistcnn_forward.5']
    #allocation4 [shape = 'u8[512]{0}', space=vmem, size = 0x400, scoped, tag = 'input window, operand 2, single buffered']
    #allocation5 [shape = 's32[1]{0}', space=sflag, size = 0x4, scoped, tag = 'scoped memory for mnistcnn_forward.5']
    %8 = vsyncpa [#allocation3], 0
    %9 = vsyncpa [#allocation5], 0
    loop: start=0, step=1, limit=5
    $region2: #{mnistcnn_forward.5} parent=1 // loop_pre_header
      _
    $region3: #{mnistcnn_forward.5} parent=1 // loop_header
      %s11 = sphi 0, %s15
      %p12 = scmp.ge.s32.totalorder %s11, 5
      %s21 = sphi 0, %s23
      %s24 = sphi 0, %s21
      %s25 = sphi 0, %s24
      %s41 = sphi 0, %s25
      %s45 = sphi 0, %s45
      %s47 = sphi 0, %s45
      %s48 = sphi 0, %s47
      %s62 = sphi 0, %s48
      %s66 = sphi 0, %s66
      %s68 = sphi 0, %s66
      %s69 = sphi 0, %s68
      %s83 = sphi 0, %s69
      %s89 = sphi 0, %s91
      %s92 = sphi 0, %s89
      %s93 = sphi 0, %s92
      %s109 = sphi 0, %s93
    $region4: #{mnistcnn_forward.5} parent=1 // loop_header_branch
      %14 = sbr.rel (%p12) target = $region8
    $region5: #{mnistcnn_forward.5} parent=1 // loop_body
      %s16 = ssub.s32 %s11, 1
      %s17 = ssub.s32 %s11, 2
      %s18 = sadd.s32 %s11, 1
      %s19 = ssub.s32 %s11, %s18
      %p20 = scmp.eq.s32.totalorder %s19, 0
      %s22 = sadd.s32 %s21, 1
      %s23 = scalar_select %p20, %s21, %s22
      %p26 = pneg %p20
      %p27 = scmp.eq.s32.totalorder %s11, 2
      %p28 = por %p26, %p27
      %p29 = scmp.ne.s32.totalorder %s21, %s24
      %p30 = scmp.eq.s32.totalorder %s11, 0
      %p31 = por %p29, %p30
      %p32 = scmp.ne.s32.totalorder %s21, %s24
      %p33 = scmp.eq.s32.totalorder %s16, 2
      %p34 = por %p32, %p33
      %p35 = scmp.ne.s32.totalorder %s24, %s25
      %p36 = scmp.eq.s32.totalorder %s16, 0
      %p37 = por %p35, %p36
      %p38 = scmp.ne.s32.totalorder %s24, %s25
      %p39 = scmp.eq.s32.totalorder %s17, 2
      %p40 = por %p38, %p39
      %p42 = scmp.ne.s32.totalorder %s25, %s41
      %p43 = scmp.eq.s32.totalorder %s17, 0
      %p44 = por %p42, %p43
      %s46 = sadd.s32 %s45, 1
      %p49 = scmp.eq.s32.totalorder %s11, 2
      %p50 = scmp.ne.s32.totalorder %s45, %s47
      %p51 = scmp.eq.s32.totalorder %s11, 0
      %p52 = por %p50, %p51
      %p53 = scmp.ne.s32.totalorder %s45, %s47
      %p54 = scmp.eq.s32.totalorder %s16, 2
      %p55 = por %p53, %p54
      %p56 = scmp.ne.s32.totalorder %s47, %s48
      %p57 = scmp.eq.s32.totalorder %s16, 0
      %p58 = por %p56, %p57
      %p59 = scmp.ne.s32.totalorder %s47, %s48
      %p60 = scmp.eq.s32.totalorder %s17, 2
      %p61 = por %p59, %p60
      %p63 = scmp.ne.s32.totalorder %s48, %s62
      %p64 = scmp.eq.s32.totalorder %s17, 0
      %p65 = por %p63, %p64
      %s67 = sadd.s32 %s66, 1
      %p70 = scmp.eq.s32.totalorder %s11, 2
      %p71 = scmp.ne.s32.totalorder %s66, %s68
      %p72 = scmp.eq.s32.totalorder %s11, 0
      %p73 = por %p71, %p72
      %p74 = scmp.ne.s32.totalorder %s66, %s68
      %p75 = scmp.eq.s32.totalorder %s16, 2
      %p76 = por %p74, %p75
      %p77 = scmp.ne.s32.totalorder %s68, %s69
      %p78 = scmp.eq.s32.totalorder %s16, 0
      %p79 = por %p77, %p78
      %p80 = scmp.ne.s32.totalorder %s68, %s69
      %p81 = scmp.eq.s32.totalorder %s17, 2
      %p82 = por %p80, %p81
      %p84 = scmp.ne.s32.totalorder %s69, %s83
      %p85 = scmp.eq.s32.totalorder %s17, 0
      %p86 = por %p84, %p85
      %s87 = ssub.s32 %s11, %s18
      %p88 = scmp.eq.s32.totalorder %s87, 0
      %s90 = sadd.s32 %s89, 1
      %s91 = scalar_select %p88, %s89, %s90
      %p94 = pneg %p88
      %p95 = scmp.eq.s32.totalorder %s11, 2
      %p96 = por %p94, %p95
      %p97 = scmp.ne.s32.totalorder %s89, %s92
      %p98 = scmp.eq.s32.totalorder %s11, 0
      %p99 = por %p97, %p98
      %p100 = scmp.ne.s32.totalorder %s89, %s92
      %p101 = scmp.eq.s32.totalorder %s16, 2
      %p102 = por %p100, %p101
      %p103 = scmp.ne.s32.totalorder %s92, %s93
      %p104 = scmp.eq.s32.totalorder %s16, 0
      %p105 = por %p103, %p104
      %p106 = scmp.ne.s32.totalorder %s92, %s93
      %p107 = scmp.eq.s32.totalorder %s17, 2
      %p108 = por %p106, %p107
      %p110 = scmp.ne.s32.totalorder %s93, %s109
      %p111 = scmp.eq.s32.totalorder %s17, 0
      %p112 = por %p110, %p111
      %p113 = scmp.le.s32.totalorder 1, %s11
      %p114 = scmp.lt.s32.totalorder %s11, 4
      %p115 = pnand %p113, %p114
      %p116 = pneg %p115
      // Predicated region
      $region9: #{mnistcnn_forward.5} parent=5 // pred_check
        _
      $region10: #{mnistcnn_forward.5} parent=5 // pred_check_branch
        %118 = sbr.rel (%p115) target = $region12
      $region11: #{mnistcnn_forward.5} parent=5 // pred_region
        %s119 = ssub.s32 %s11, 1
        // Predicated region
        $region13: #{mnistcnn_forward.5} parent=11 // pred_check
          %p120 = pneg %p58
        $region14: #{mnistcnn_forward.5} parent=11 // pred_check_branch
          %122 = sbr.rel (%p120) target = $region16
        $region15: #{mnistcnn_forward.5} parent=11 // pred_region
          %s124 = ssub.s32 256, 256
          %125 = vsyncadd [#allocation3], %s124
          %s126 = sshll.u32 [#allocation2], 4
          %s127 = int_to_ptr.vmem [resolvable:$true] %s126
          %132 = dma.hbm_to_vmem [thread:$0]  %s1, 256, %s127, [#allocation3], 64, 64, 4
        $region16: #{mnistcnn_forward.5} parent=11 // pred_fallthru
          _
        // Predicated region
        $region17: #{mnistcnn_forward.5} parent=11 // pred_check
          %p133 = pneg %p79
        $region18: #{mnistcnn_forward.5} parent=11 // pred_check_branch
          %135 = sbr.rel (%p133) target = $region20
        $region19: #{mnistcnn_forward.5} parent=11 // pred_region
          %s137 = ssub.s32 16, 16
          %138 = vsyncadd [#allocation5], %s137
          %s140 = sshll.u32 [#allocation4], 4
          %s141 = int_to_ptr.vmem [resolvable:$true] %s140
          %143 = dma.hbm_to_vmem [thread:$0]  %s2, 16, %s141, [#allocation5]
        $region20: #{mnistcnn_forward.5} parent=11 // pred_fallthru
          _
      $region12: #{mnistcnn_forward.5} parent=5 // pred_fallthru
        _
      %p144 = scmp.lt.s32.totalorder %s11, 3
      // Predicated region
      $region21: #{mnistcnn_forward.5} parent=5 // pred_check
        %p145 = pneg %p144
      $region22: #{mnistcnn_forward.5} parent=5 // pred_check_branch
        %147 = sbr.rel (%p145) target = $region24
      $region23: #{mnistcnn_forward.5} parent=5 // pred_region
        // Predicated region
        $region25: #{mnistcnn_forward.5} parent=23 // pred_check
          %p148 = pneg %p31
        $region26: #{mnistcnn_forward.5} parent=23 // pred_check_branch
          %150 = sbr.rel (%p148) target = $region28
        $region27: #{mnistcnn_forward.5} parent=23 // pred_region
          %s151 = smul.u32 64, %s11
          %p152 = scmp.lt.s32.totalorder %s151, 191
          %s153 = scalar_select %p152, %s151, 191
          %s154 = smul.addr %s153, 4
          %s155 = scalar_lea.vmem %s0, %s154
          %s156 = smul.u32 64, %s11
        $region28: #{mnistcnn_forward.5} parent=23 // pred_fallthru
          _
      $region24: #{mnistcnn_forward.5} parent=5 // pred_fallthru
        _
      %p157 = scmp.le.s32.totalorder 1, %s11
      %p158 = scmp.lt.s32.totalorder %s11, 4
      %p159 = pnand %p157, %p158
      %p160 = pneg %p159
      // Predicated region
      $region29: #{mnistcnn_forward.5} parent=5 // pred_check
        _
      $region30: #{mnistcnn_forward.5} parent=5 // pred_check_branch
        %162 = sbr.rel (%p159) target = $region32
      $region31: #{mnistcnn_forward.5} parent=5 // pred_region
        %s163 = ssub.s32 %s11, 1
        // Predicated region
        $region33: #{mnistcnn_forward.5} parent=31 // pred_check
          %p164 = pneg %p58
        $region34: #{mnistcnn_forward.5} parent=31 // pred_check_branch
          %166 = sbr.rel (%p164) target = $region36
        $region35: #{mnistcnn_forward.5} parent=31 // pred_region
          %167 = dma.done [#allocation3], 256
        $region36: #{mnistcnn_forward.5} parent=31 // pred_fallthru
          _
        // Predicated region
        $region37: #{mnistcnn_forward.5} parent=31 // pred_check
          %p168 = pneg %p79
        $region38: #{mnistcnn_forward.5} parent=31 // pred_check_branch
          %170 = sbr.rel (%p168) target = $region40
        $region39: #{mnistcnn_forward.5} parent=31 // pred_region
          %171 = dma.done [#allocation5], 16
        $region40: #{mnistcnn_forward.5} parent=31 // pred_fallthru
          _
        %s172 = smul.u32 64, %s16
        %p173 = scmp.lt.s32.totalorder %s172, 191
        %s174 = scalar_select %p173, %s172, 191
        %s175 = smul.addr %s174, 4
        %s176 = scalar_lea.vmem %s0, %s175
        %p177 = pneg %p37
        %p178 = pneg %p34
        %p179 = pneg %p58
        %p180 = pneg %p55
        %p181 = pneg %p79
        %p182 = pneg %p76
        %p183 = pneg %p105
        %p184 = pneg %p102
        %s185 = smul.u32 64, %s16
        %p186 = scmp.lt.s32.totalorder %s185, 191
        %s187 = scalar_select %p186, %s185, 191
        %s188 = smul.addr %s187, 8
        %s189 = scalar_lea.vmem %s3, %s188
        %s190 = smul.u32 64, %s16
        %p191 = scmp.lt.s32.totalorder %s190, 191
        %s192 = scalar_select %p191, %s190, 191
        %s193 = smul.addr %s192, 4
        %s194 = scalar_lea.vmem %s0, %s193
        %s195 = smul.u32 64, %s16
        %s196 = smul.u32 64, %s16
        %p197 = scmp.lt.s32.totalorder %s196, 191
        %s198 = scalar_select %p197, %s196, 191
        %s199 = smul.addr %s198, 8
        %s200 = scalar_lea.vmem %s3, %s199
        %s201 = smul.u32 64, %s16
        %v203 = vld [vmem:[%s194] sm:$0xf]
        %v204 = vld [vmem:[%s194 + $0x4] sm:$0xf]
        %v205 = vld [vmem:[%s194 + $0x8] sm:$0xf]
        %v206 = vld [vmem:[%s194 + $0xc] sm:$0xf]
        %v207 = vld [vmem:[%s194 + $0x10] sm:$0xf]
        %v208 = vld [vmem:[%s194 + $0x14] sm:$0xf]
        %v209 = vld [vmem:[%s194 + $0x18] sm:$0xf]
        %v210 = vld [vmem:[%s194 + $0x1c] sm:$0xf]
        %v211 = vld [vmem:[%s194 + $0x20] sm:$0xf]
        %v212 = vld [vmem:[%s194 + $0x24] sm:$0xf]
        %v213 = vld [vmem:[%s194 + $0x28] sm:$0xf]
        %v214 = vld [vmem:[%s194 + $0x2c] sm:$0xf]
        %v215 = vld [vmem:[%s194 + $0x30] sm:$0xf]
        %v216 = vld [vmem:[%s194 + $0x34] sm:$0xf]
        %v217 = vld [vmem:[%s194 + $0x38] sm:$0xf]
        %v218 = vld [vmem:[%s194 + $0x3c] sm:$0xf]
        %v219 = vld [vmem:[%s194 + $0x40] sm:$0xf]
        %v220 = vld [vmem:[%s194 + $0x44] sm:$0xf]
        %v221 = vld [vmem:[%s194 + $0x48] sm:$0xf]
        %v222 = vld [vmem:[%s194 + $0x4c] sm:$0xf]
        %v223 = vld [vmem:[%s194 + $0x50] sm:$0xf]
        %v224 = vld [vmem:[%s194 + $0x54] sm:$0xf]
        %v225 = vld [vmem:[%s194 + $0x58] sm:$0xf]
        %v226 = vld [vmem:[%s194 + $0x5c] sm:$0xf]
        %v227 = vld [vmem:[%s194 + $0x60] sm:$0xf]
        %v228 = vld [vmem:[%s194 + $0x64] sm:$0xf]
        %v229 = vld [vmem:[%s194 + $0x68] sm:$0xf]
        %v230 = vld [vmem:[%s194 + $0x6c] sm:$0xf]
        %v231 = vld [vmem:[%s194 + $0x70] sm:$0xf]
        %v232 = vld [vmem:[%s194 + $0x74] sm:$0xf]
        %v233 = vld [vmem:[%s194 + $0x78] sm:$0xf]
        %v234 = vld [vmem:[%s194 + $0x7c] sm:$0xf]
        %v235 = vld [vmem:[%s194 + $0x80] sm:$0xf]
        %v236 = vld [vmem:[%s194 + $0x84] sm:$0xf]
        %v237 = vld [vmem:[%s194 + $0x88] sm:$0xf]
        %v238 = vld [vmem:[%s194 + $0x8c] sm:$0xf]
        %v239 = vld [vmem:[%s194 + $0x90] sm:$0xf]
        %v240 = vld [vmem:[%s194 + $0x94] sm:$0xf]
        %v241 = vld [vmem:[%s194 + $0x98] sm:$0xf]
        %v242 = vld [vmem:[%s194 + $0x9c] sm:$0xf]
        %v243 = vld [vmem:[%s194 + $0xa0] sm:$0xf]
        %v244 = vld [vmem:[%s194 + $0xa4] sm:$0xf]
        %v245 = vld [vmem:[%s194 + $0xa8] sm:$0xf]
        %v246 = vld [vmem:[%s194 + $0xac] sm:$0xf]
        %v247 = vld [vmem:[%s194 + $0xb0] sm:$0xf]
        %v248 = vld [vmem:[%s194 + $0xb4] sm:$0xf]
        %v249 = vld [vmem:[%s194 + $0xb8] sm:$0xf]
        %v250 = vld [vmem:[%s194 + $0xbc] sm:$0xf]
        %v251 = vld [vmem:[%s194 + $0xc0] sm:$0xf]
        %v252 = vld [vmem:[%s194 + $0xc4] sm:$0xf]
        %v253 = vld [vmem:[%s194 + $0xc8] sm:$0xf]
        %v254 = vld [vmem:[%s194 + $0xcc] sm:$0xf]
        %v255 = vld [vmem:[%s194 + $0xd0] sm:$0xf]
        %v256 = vld [vmem:[%s194 + $0xd4] sm:$0xf]
        %v257 = vld [vmem:[%s194 + $0xd8] sm:$0xf]
        %v258 = vld [vmem:[%s194 + $0xdc] sm:$0xf]
        %v259 = vld [vmem:[%s194 + $0xe0] sm:$0xf]
        %v260 = vld [vmem:[%s194 + $0xe4] sm:$0xf]
        %v261 = vld [vmem:[%s194 + $0xe8] sm:$0xf]
        %v262 = vld [vmem:[%s194 + $0xec] sm:$0xf]
        %v263 = vld [vmem:[%s194 + $0xf0] sm:$0xf]
        %v264 = vld [vmem:[%s194 + $0xf4] sm:$0xf]
        %v265 = vld [vmem:[%s194 + $0xf8] sm:$0xf]
        %v266 = vld [vmem:[%s194 + $0xfc] sm:$0xf]
        %v267 = vld [vmem:[#allocation2] sm:$0xf]
        %v268 = vld [vmem:[#allocation2 + $0x4] sm:$0xf]
        %v269 = vld [vmem:[#allocation2 + $0x8] sm:$0xf]
        %v270 = vld [vmem:[#allocation2 + $0xc] sm:$0x1]
        %v271 = vld [vmem:[#allocation4] sm:$0x1]
        %v273 = vlaneseq
        %v274 = vshrl.u32 %v273, 7
        %v275 = vsub.s32 0, %v274
        %v276 = vrot.slane %v271, %v275
        %v342 = vunpack.c.l.b16 %v203
        %v343 = vunpack.c.l.b16 %v204
        %v344 = vunpack.c.l.b16 %v205
        %v345 = vunpack.c.l.b16 %v206
        %v346 = vunpack.c.l.b16 %v207
        %v347 = vunpack.c.l.b16 %v208
        %v348 = vunpack.c.l.b16 %v209
        %v349 = vunpack.c.l.b16 %v210
        %v350 = vunpack.c.l.b16 %v211
        %v351 = vunpack.c.l.b16 %v212
        %v352 = vunpack.c.l.b16 %v213
        %v353 = vunpack.c.l.b16 %v214
        %v354 = vunpack.c.l.b16 %v215
        %v355 = vunpack.c.l.b16 %v216
        %v356 = vunpack.c.l.b16 %v217
        %v357 = vunpack.c.l.b16 %v218
        %v358 = vunpack.c.l.b16 %v219
        %v359 = vunpack.c.l.b16 %v220
        %v360 = vunpack.c.l.b16 %v221
        %v361 = vunpack.c.l.b16 %v222
        %v362 = vunpack.c.l.b16 %v223
        %v363 = vunpack.c.l.b16 %v224
        %v364 = vunpack.c.l.b16 %v225
        %v365 = vunpack.c.l.b16 %v226
        %v366 = vunpack.c.l.b16 %v227
        %v367 = vunpack.c.l.b16 %v228
        %v368 = vunpack.c.l.b16 %v229
        %v369 = vunpack.c.l.b16 %v230
        %v370 = vunpack.c.l.b16 %v231
        %v371 = vunpack.c.l.b16 %v232
        %v372 = vunpack.c.l.b16 %v233
        %v373 = vunpack.c.l.b16 %v234
        %v374 = vunpack.c.l.b16 %v235
        %v375 = vunpack.c.l.b16 %v236
        %v376 = vunpack.c.l.b16 %v237
        %v377 = vunpack.c.l.b16 %v238
        %v378 = vunpack.c.l.b16 %v239
        %v379 = vunpack.c.l.b16 %v240
        %v380 = vunpack.c.l.b16 %v241
        %v381 = vunpack.c.l.b16 %v242
        %v382 = vunpack.c.l.b16 %v243
        %v383 = vunpack.c.l.b16 %v244
        %v384 = vunpack.c.l.b16 %v245
        %v385 = vunpack.c.l.b16 %v246
        %v386 = vunpack.c.l.b16 %v247
        %v387 = vunpack.c.l.b16 %v248
        %v388 = vunpack.c.l.b16 %v249
        %v389 = vunpack.c.l.b16 %v250
        %v390 = vunpack.c.l.b16 %v251
        %v391 = vunpack.c.l.b16 %v252
        %v392 = vunpack.c.l.b16 %v253
        %v393 = vunpack.c.l.b16 %v254
        %v394 = vunpack.c.l.b16 %v255
        %v395 = vunpack.c.l.b16 %v256
        %v396 = vunpack.c.l.b16 %v257
        %v397 = vunpack.c.l.b16 %v258
        %v398 = vunpack.c.l.b16 %v259
        %v399 = vunpack.c.l.b16 %v260
        %v400 = vunpack.c.l.b16 %v261
        %v401 = vunpack.c.l.b16 %v262
        %v402 = vunpack.c.l.b16 %v263
        %v403 = vunpack.c.l.b16 %v264
        %v404 = vunpack.c.l.b16 %v265
        %v405 = vunpack.c.l.b16 %v266
        %v406 = vpack.c.b16 %v343, %v342
        %v407 = vpack.c.b16 %v345, %v344
        %v408 = vpack.c.b16 %v347, %v346
        %v409 = vpack.c.b16 %v349, %v348
        %v410 = vpack.c.b16 %v351, %v350
        %v411 = vpack.c.b16 %v353, %v352
        %v412 = vpack.c.b16 %v355, %v354
        %v413 = vpack.c.b16 %v357, %v356
        %v414 = vpack.c.b16 %v359, %v358
        %v415 = vpack.c.b16 %v361, %v360
        %v416 = vpack.c.b16 %v363, %v362
        %v417 = vpack.c.b16 %v365, %v364
        %v418 = vpack.c.b16 %v367, %v366
        %v419 = vpack.c.b16 %v369, %v368
        %v420 = vpack.c.b16 %v371, %v370
        %v421 = vpack.c.b16 %v373, %v372
        %v422 = vpack.c.b16 %v375, %v374
        %v423 = vpack.c.b16 %v377, %v376
        %v424 = vpack.c.b16 %v379, %v378
        %v425 = vpack.c.b16 %v381, %v380
        %v426 = vpack.c.b16 %v383, %v382
        %v427 = vpack.c.b16 %v385, %v384
        %v428 = vpack.c.b16 %v387, %v386
        %v429 = vpack.c.b16 %v389, %v388
        %v430 = vpack.c.b16 %v391, %v390
        %v431 = vpack.c.b16 %v393, %v392
        %v432 = vpack.c.b16 %v395, %v394
        %v433 = vpack.c.b16 %v397, %v396
        %v434 = vpack.c.b16 %v399, %v398
        %v435 = vpack.c.b16 %v401, %v400
        %v436 = vpack.c.b16 %v403, %v402
        %v437 = vpack.c.b16 %v405, %v404
        %v442 = vunpack.c.l.b16 %v267
        %v443 = vunpack.c.l.b16 %v268
        %v444 = vunpack.c.l.b16 %v269
        %v445 = vunpack.c.l.b16 %v270
        %v446 = vpack.c.b16 %v443, %v442
        %v447 = vpack.c.b16 %v445, %v444
        %vm449 = vcmask 203776
        %v451 = vsel %vm449, %v406, 0
        %v454 = vsel %vm449, %v407, 0
        %v457 = vsel %vm449, %v408, 0
        %v460 = vsel %vm449, %v409, 0
        %v463 = vsel %vm449, %v410, 0
        %v466 = vsel %vm449, %v411, 0
        %v469 = vsel %vm449, %v412, 0
        %v472 = vsel %vm449, %v413, 0
        %v475 = vsel %vm449, %v414, 0
        %v478 = vsel %vm449, %v415, 0
        %v481 = vsel %vm449, %v416, 0
        %v484 = vsel %vm449, %v417, 0
        %v487 = vsel %vm449, %v418, 0
        %v490 = vsel %vm449, %v419, 0
        %v493 = vsel %vm449, %v420, 0
        %v496 = vsel %vm449, %v421, 0
        %v499 = vsel %vm449, %v422, 0
        %v502 = vsel %vm449, %v423, 0
        %v505 = vsel %vm449, %v424, 0
        %v508 = vsel %vm449, %v425, 0
        %v511 = vsel %vm449, %v426, 0
        %v514 = vsel %vm449, %v427, 0
        %v517 = vsel %vm449, %v428, 0
        %v520 = vsel %vm449, %v429, 0
        %v523 = vsel %vm449, %v430, 0
        %v526 = vsel %vm449, %v431, 0
        %v529 = vsel %vm449, %v432, 0
        %v532 = vsel %vm449, %v433, 0
        %v535 = vsel %vm449, %v434, 0
        %v538 = vsel %vm449, %v435, 0
        %v541 = vsel %vm449, %v436, 0
        %v544 = vsel %vm449, %v437, 0
        %vm546 = vcmask 1043456
        %vm547 = vcmask 1044480
        %v548 = vsel %vm546, 4294967295, 65535
        %v549 = vsel %vm547, %v548, 0
        %v551 = vand.u32 %v447, %v549
        %553 = vmatprep.subr.bf16.mxu0 0
        %554 = vmatpush1.bf16.msra.mxu0 %v446
        %555 = vmatprep.subr.bf16.mxu0 0
        %556 = vmatpush1.bf16.msra.mxu0 %v551
        %557 = vmatprep.subr.bf16.mxu0 0
        %558 = vmatpush1.bf16.msra.mxu0 0
        %559 = vmatprep.subr.bf16.mxu0 0
        %560 = vmatpush1.bf16.msra.mxu0 0
        %561 = vmatprep.subr.bf16.mxu0 0
        %562 = vmatpush1.bf16.msra.mxu0 0
        %563 = vmatprep.subr.bf16.mxu0 0
        %564 = vmatpush1.bf16.msra.mxu0 0
        %565 = vmatprep.subr.bf16.mxu0 0
        %566 = vmatpush1.bf16.msra.mxu0 0
        %567 = vmatprep.subr.bf16.mxu0 0
        %568 = vmatpush1.bf16.msra.mxu0 0
        %569 = vmatprep.subr.bf16.mxu0 0
        %570 = vmatpush1.bf16.msra.mxu0 0
        %571 = vmatprep.subr.bf16.mxu0 0
        %572 = vmatpush1.bf16.msra.mxu0 0
        %573 = vmatprep.subr.bf16.mxu0 0
        %574 = vmatpush1.bf16.msra.mxu0 0
        %575 = vmatprep.subr.bf16.mxu0 0
        %576 = vmatpush1.bf16.msra.mxu0 0
        %577 = vmatprep.subr.bf16.mxu0 0
        %578 = vmatpush1.bf16.msra.mxu0 0
        %579 = vmatprep.subr.bf16.mxu0 0
        %580 = vmatpush1.bf16.msra.mxu0 0
        %581 = vmatprep.subr.bf16.mxu0 0
        %582 = vmatpush1.bf16.msra.mxu0 0
        %583 = vmatprep.subr.bf16.mxu0 0
        %584 = vmatpush1.bf16.msra.mxu0 0
        %585 = vmatprep.mubr.bf16.mxu0 0
        %586 = vmatmul.mubr.bf16.gmra.mrb[0].mxu0 %v451
        %v587 = vpop.f32.mrb[0].mxu0
        %v588 = vadd.f32 %v276, %v587
        %v589 = vpop.f32.mrb[0].mxu0
        %v590 = vpop.f32.mrb[0].mxu0
        %v591 = vadd.f32 %v276, %v590
        %v592 = vpop.f32.mrb[0].mxu0
        %593 = vmatprep.mubr.bf16.mxu0 0
        %594 = vmatmul.mubr.bf16.gmra.mrb[0].mxu0 %v454
        %v595 = vpop.f32.mrb[0].mxu0
        %v596 = vadd.f32 %v276, %v595
        %v597 = vpop.f32.mrb[0].mxu0
        %v598 = vpop.f32.mrb[0].mxu0
        %v599 = vadd.f32 %v276, %v598
        %v600 = vpop.f32.mrb[0].mxu0
        %601 = vmatprep.mubr.bf16.mxu0 0
        %602 = vmatmul.mubr.bf16.gmra.mrb[0].mxu0 %v457
        %v603 = vpop.f32.mrb[0].mxu0
        %v604 = vadd.f32 %v276, %v603
        %v605 = vpop.f32.mrb[0].mxu0
        %v606 = vpop.f32.mrb[0].mxu0
        %v607 = vadd.f32 %v276, %v606
        %v608 = vpop.f32.mrb[0].mxu0
        %609 = vmatprep.mubr.bf16.mxu0 0
        %610 = vmatmul.mubr.bf16.gmra.mrb[0].mxu0 %v460
        %v611 = vpop.f32.mrb[0].mxu0
        %v612 = vadd.f32 %v276, %v611
        %v613 = vpop.f32.mrb[0].mxu0
        %v614 = vpop.f32.mrb[0].mxu0
        %v615 = vadd.f32 %v276, %v614
        %v616 = vpop.f32.mrb[0].mxu0
        %617 = vmatprep.mubr.bf16.mxu0 0
        %618 = vmatmul.mubr.bf16.gmra.mrb[0].mxu0 %v463
        %v619 = vpop.f32.mrb[0].mxu0
        %v620 = vadd.f32 %v276, %v619
        %v621 = vpop.f32.mrb[0].mxu0
        %v622 = vpop.f32.mrb[0].mxu0
        %v623 = vadd.f32 %v276, %v622
        %v624 = vpop.f32.mrb[0].mxu0
        %625 = vmatprep.mubr.bf16.mxu0 0
        %626 = vmatmul.mubr.bf16.gmra.mrb[0].mxu0 %v466
        %v627 = vpop.f32.mrb[0].mxu0
        %v628 = vadd.f32 %v276, %v627
        %v629 = vpop.f32.mrb[0].mxu0
        %v630 = vpop.f32.mrb[0].mxu0
        %v631 = vadd.f32 %v276, %v630
        %v632 = vpop.f32.mrb[0].mxu0
        %633 = vmatprep.mubr.bf16.mxu0 0
        %634 = vmatmul.mubr.bf16.gmra.mrb[0].mxu0 %v469
        %v635 = vpop.f32.mrb[0].mxu0
        %v636 = vadd.f32 %v276, %v635
        %v637 = vpop.f32.mrb[0].mxu0
        %v638 = vpop.f32.mrb[0].mxu0
        %v639 = vadd.f32 %v276, %v638
        %v640 = vpop.f32.mrb[0].mxu0
        %641 = vmatprep.mubr.bf16.mxu0 0
        %642 = vmatmul.mubr.bf16.gmra.mrb[0].mxu0 %v472
        %v643 = vpop.f32.mrb[0].mxu0
        %v644 = vadd.f32 %v276, %v643
        %v645 = vpop.f32.mrb[0].mxu0
        %v646 = vpop.f32.mrb[0].mxu0
        %v647 = vadd.f32 %v276, %v646
        %v648 = vpop.f32.mrb[0].mxu0
        %649 = vmatprep.mubr.bf16.mxu0 0
        %650 = vmatmul.mubr.bf16.gmra.mrb[0].mxu0 %v475
        %v651 = vpop.f32.mrb[0].mxu0
        %v652 = vadd.f32 %v276, %v651
        %v653 = vpop.f32.mrb[0].mxu0
        %v654 = vpop.f32.mrb[0].mxu0
        %v655 = vadd.f32 %v276, %v654
        %v656 = vpop.f32.mrb[0].mxu0
        %657 = vmatprep.mubr.bf16.mxu0 0
        %658 = vmatmul.mubr.bf16.gmra.mrb[0].mxu0 %v478
        %v659 = vpop.f32.mrb[0].mxu0
        %v660 = vadd.f32 %v276, %v659
        %v661 = vpop.f32.mrb[0].mxu0
        %v662 = vpop.f32.mrb[0].mxu0
        %v663 = vadd.f32 %v276, %v662
        %v664 = vpop.f32.mrb[0].mxu0
        %665 = vmatprep.mubr.bf16.mxu0 0
        %666 = vmatmul.mubr.bf16.gmra.mrb[0].mxu0 %v481
        %v667 = vpop.f32.mrb[0].mxu0
        %v668 = vadd.f32 %v276, %v667
        %v669 = vpop.f32.mrb[0].mxu0
        %v670 = vpop.f32.mrb[0].mxu0
        %v671 = vadd.f32 %v276, %v670
        %v672 = vpop.f32.mrb[0].mxu0
        %673 = vmatprep.mubr.bf16.mxu0 0
        %674 = vmatmul.mubr.bf16.gmra.mrb[0].mxu0 %v484
        %v675 = vpop.f32.mrb[0].mxu0
        %v676 = vadd.f32 %v276, %v675
        %v677 = vpop.f32.mrb[0].mxu0
        %v678 = vpop.f32.mrb[0].mxu0
        %v679 = vadd.f32 %v276, %v678
        %v680 = vpop.f32.mrb[0].mxu0
        %681 = vmatprep.mubr.bf16.mxu0 0
        %682 = vmatmul.mubr.bf16.gmra.mrb[0].mxu0 %v487
        %v683 = vpop.f32.mrb[0].mxu0
        %v684 = vadd.f32 %v276, %v683
        %v685 = vpop.f32.mrb[0].mxu0
        %v686 = vpop.f32.mrb[0].mxu0
        %v687 = vadd.f32 %v276, %v686
        %v688 = vpop.f32.mrb[0].mxu0
        %689 = vmatprep.mubr.bf16.mxu0 0
        %690 = vmatmul.mubr.bf16.gmra.mrb[0].mxu0 %v490
        %v691 = vpop.f32.mrb[0].mxu0
        %v692 = vadd.f32 %v276, %v691
        %v693 = vpop.f32.mrb[0].mxu0
        %v694 = vpop.f32.mrb[0].mxu0
        %v695 = vadd.f32 %v276, %v694
        %v696 = vpop.f32.mrb[0].mxu0
        %697 = vmatprep.mubr.bf16.mxu0 0
        %698 = vmatmul.mubr.bf16.gmra.mrb[0].mxu0 %v493
        %v699 = vpop.f32.mrb[0].mxu0
        %v700 = vadd.f32 %v276, %v699
        %v701 = vpop.f32.mrb[0].mxu0
        %v702 = vpop.f32.mrb[0].mxu0
        %v703 = vadd.f32 %v276, %v702
        %v704 = vpop.f32.mrb[0].mxu0
        %705 = vmatprep.mubr.bf16.mxu0 0
        %706 = vmatmul.mubr.bf16.gmra.mrb[0].mxu0 %v496
        %v707 = vpop.f32.mrb[0].mxu0
        %v708 = vadd.f32 %v276, %v707
        %v709 = vpop.f32.mrb[0].mxu0
        %v710 = vpop.f32.mrb[0].mxu0
        %v711 = vadd.f32 %v276, %v710
        %v712 = vpop.f32.mrb[0].mxu0
        %713 = vmatprep.mubr.bf16.mxu0 0
        %714 = vmatmul.mubr.bf16.gmra.mrb[0].mxu0 %v499
        %v715 = vpop.f32.mrb[0].mxu0
        %v716 = vadd.f32 %v276, %v715
        %v717 = vpop.f32.mrb[0].mxu0
        %v718 = vpop.f32.mrb[0].mxu0
        %v719 = vadd.f32 %v276, %v718
        %v720 = vpop.f32.mrb[0].mxu0
        %721 = vmatprep.mubr.bf16.mxu0 0
        %722 = vmatmul.mubr.bf16.gmra.mrb[0].mxu0 %v502
        %v723 = vpop.f32.mrb[0].mxu0
        %v724 = vadd.f32 %v276, %v723
        %v725 = vpop.f32.mrb[0].mxu0
        %v726 = vpop.f32.mrb[0].mxu0
        %v727 = vadd.f32 %v276, %v726
        %v728 = vpop.f32.mrb[0].mxu0
        %729 = vmatprep.mubr.bf16.mxu0 0
        %730 = vmatmul.mubr.bf16.gmra.mrb[0].mxu0 %v505
        %v731 = vpop.f32.mrb[0].mxu0
        %v732 = vadd.f32 %v276, %v731
        %v733 = vpop.f32.mrb[0].mxu0
        %v734 = vpop.f32.mrb[0].mxu0
        %v735 = vadd.f32 %v276, %v734
        %v736 = vpop.f32.mrb[0].mxu0
        %737 = vmatprep.mubr.bf16.mxu0 0
        %738 = vmatmul.mubr.bf16.gmra.mrb[0].mxu0 %v508
        %v739 = vpop.f32.mrb[0].mxu0
        %v740 = vadd.f32 %v276, %v739
        %v741 = vpop.f32.mrb[0].mxu0
        %v742 = vpop.f32.mrb[0].mxu0
        %v743 = vadd.f32 %v276, %v742
        %v744 = vpop.f32.mrb[0].mxu0
        %745 = vmatprep.mubr.bf16.mxu0 0
        %746 = vmatmul.mubr.bf16.gmra.mrb[0].mxu0 %v511
        %v747 = vpop.f32.mrb[0].mxu0
        %v748 = vadd.f32 %v276, %v747
        %v749 = vpop.f32.mrb[0].mxu0
        %v750 = vpop.f32.mrb[0].mxu0
        %v751 = vadd.f32 %v276, %v750
        %v752 = vpop.f32.mrb[0].mxu0
        %753 = vmatprep.mubr.bf16.mxu0 0
        %754 = vmatmul.mubr.bf16.gmra.mrb[0].mxu0 %v514
        %v755 = vpop.f32.mrb[0].mxu0
        %v756 = vadd.f32 %v276, %v755
        %v757 = vpop.f32.mrb[0].mxu0
        %v758 = vpop.f32.mrb[0].mxu0
        %v759 = vadd.f32 %v276, %v758
        %v760 = vpop.f32.mrb[0].mxu0
        %761 = vmatprep.mubr.bf16.mxu0 0
        %762 = vmatmul.mubr.bf16.gmra.mrb[0].mxu0 %v517
        %v763 = vpop.f32.mrb[0].mxu0
        %v764 = vadd.f32 %v276, %v763
        %v765 = vpop.f32.mrb[0].mxu0
        %v766 = vpop.f32.mrb[0].mxu0
        %v767 = vadd.f32 %v276, %v766
        %v768 = vpop.f32.mrb[0].mxu0
        %769 = vmatprep.mubr.bf16.mxu0 0
        %770 = vmatmul.mubr.bf16.gmra.mrb[0].mxu0 %v520
        %v771 = vpop.f32.mrb[0].mxu0
        %v772 = vadd.f32 %v276, %v771
        %v773 = vpop.f32.mrb[0].mxu0
        %v774 = vpop.f32.mrb[0].mxu0
        %v775 = vadd.f32 %v276, %v774
        %v776 = vpop.f32.mrb[0].mxu0
        %777 = vmatprep.mubr.bf16.mxu0 0
        %778 = vmatmul.mubr.bf16.gmra.mrb[0].mxu0 %v523
        %v779 = vpop.f32.mrb[0].mxu0
        %v780 = vadd.f32 %v276, %v779
        %v781 = vpop.f32.mrb[0].mxu0
        %v782 = vpop.f32.mrb[0].mxu0
        %v783 = vadd.f32 %v276, %v782
        %v784 = vpop.f32.mrb[0].mxu0
        %785 = vmatprep.mubr.bf16.mxu0 0
        %786 = vmatmul.mubr.bf16.gmra.mrb[0].mxu0 %v526
        %v787 = vpop.f32.mrb[0].mxu0
        %v788 = vadd.f32 %v276, %v787
        %v789 = vpop.f32.mrb[0].mxu0
        %v790 = vpop.f32.mrb[0].mxu0
        %v791 = vadd.f32 %v276, %v790
        %v792 = vpop.f32.mrb[0].mxu0
        %793 = vmatprep.mubr.bf16.mxu0 0
        %794 = vmatmul.mubr.bf16.gmra.mrb[0].mxu0 %v529
        %v795 = vpop.f32.mrb[0].mxu0
        %v796 = vadd.f32 %v276, %v795
        %v797 = vpop.f32.mrb[0].mxu0
        %v798 = vpop.f32.mrb[0].mxu0
        %v799 = vadd.f32 %v276, %v798
        %v800 = vpop.f32.mrb[0].mxu0
        %801 = vmatprep.mubr.bf16.mxu0 0
        %802 = vmatmul.mubr.bf16.gmra.mrb[0].mxu0 %v532
        %v803 = vpop.f32.mrb[0].mxu0
        %v804 = vadd.f32 %v276, %v803
        %v805 = vpop.f32.mrb[0].mxu0
        %v806 = vpop.f32.mrb[0].mxu0
        %v807 = vadd.f32 %v276, %v806
        %v808 = vpop.f32.mrb[0].mxu0
        %809 = vmatprep.mubr.bf16.mxu0 0
        %810 = vmatmul.mubr.bf16.gmra.mrb[0].mxu0 %v535
        %v811 = vpop.f32.mrb[0].mxu0
        %v812 = vadd.f32 %v276, %v811
        %v813 = vpop.f32.mrb[0].mxu0
        %v814 = vpop.f32.mrb[0].mxu0
        %v815 = vadd.f32 %v276, %v814
        %v816 = vpop.f32.mrb[0].mxu0
        %817 = vmatprep.mubr.bf16.mxu0 0
        %818 = vmatmul.mubr.bf16.gmra.mrb[0].mxu0 %v538
        %v819 = vpop.f32.mrb[0].mxu0
        %v820 = vadd.f32 %v276, %v819
        %v821 = vpop.f32.mrb[0].mxu0
        %v822 = vpop.f32.mrb[0].mxu0
        %v823 = vadd.f32 %v276, %v822
        %v824 = vpop.f32.mrb[0].mxu0
        %825 = vmatprep.mubr.bf16.mxu0 0
        %826 = vmatmul.mubr.bf16.gmra.mrb[0].mxu0 %v541
        %v827 = vpop.f32.mrb[0].mxu0
        %v828 = vadd.f32 %v276, %v827
        %v829 = vpop.f32.mrb[0].mxu0
        %v830 = vpop.f32.mrb[0].mxu0
        %v831 = vadd.f32 %v276, %v830
        %v832 = vpop.f32.mrb[0].mxu0
        %833 = vmatprep.mubr.bf16.mxu0 0
        %834 = vmatmul.mubr.bf16.gmra.mrb[0].mxu0 %v544
        %v835 = vpop.f32.mrb[0].mxu0
        %v836 = vadd.f32 %v276, %v835
        %v837 = vpop.f32.mrb[0].mxu0
        %v838 = vpop.f32.mrb[0].mxu0
        %v839 = vadd.f32 %v276, %v838
        %v840 = vpop.f32.mrb[0].mxu0
        %841 = vdwg.mxu0
        %v842 = vmax.f32 %v588, 0.0
        %v843 = vmax.f32 %v591, 0.0
        %v844 = vmax.f32 %v596, 0.0
        %v845 = vmax.f32 %v599, 0.0
        %v846 = vmax.f32 %v604, 0.0
        %v847 = vmax.f32 %v607, 0.0
        %v848 = vmax.f32 %v612, 0.0
        %v849 = vmax.f32 %v615, 0.0
        %v850 = vmax.f32 %v620, 0.0
        %v851 = vmax.f32 %v623, 0.0
        %v852 = vmax.f32 %v628, 0.0
        %v853 = vmax.f32 %v631, 0.0
        %v854 = vmax.f32 %v636, 0.0
        %v855 = vmax.f32 %v639, 0.0
        %v856 = vmax.f32 %v644, 0.0
        %v857 = vmax.f32 %v647, 0.0
        %v858 = vmax.f32 %v652, 0.0
        %v859 = vmax.f32 %v655, 0.0
        %v860 = vmax.f32 %v660, 0.0
        %v861 = vmax.f32 %v663, 0.0
        %v862 = vmax.f32 %v668, 0.0
        %v863 = vmax.f32 %v671, 0.0
        %v864 = vmax.f32 %v676, 0.0
        %v865 = vmax.f32 %v679, 0.0
        %v866 = vmax.f32 %v684, 0.0
        %v867 = vmax.f32 %v687, 0.0
        %v868 = vmax.f32 %v692, 0.0
        %v869 = vmax.f32 %v695, 0.0
        %v870 = vmax.f32 %v700, 0.0
        %v871 = vmax.f32 %v703, 0.0
        %v872 = vmax.f32 %v708, 0.0
        %v873 = vmax.f32 %v711, 0.0
        %v874 = vmax.f32 %v716, 0.0
        %v875 = vmax.f32 %v719, 0.0
        %v876 = vmax.f32 %v724, 0.0
        %v877 = vmax.f32 %v727, 0.0
        %v878 = vmax.f32 %v732, 0.0
        %v879 = vmax.f32 %v735, 0.0
        %v880 = vmax.f32 %v740, 0.0
        %v881 = vmax.f32 %v743, 0.0
        %v882 = vmax.f32 %v748, 0.0
        %v883 = vmax.f32 %v751, 0.0
        %v884 = vmax.f32 %v756, 0.0
        %v885 = vmax.f32 %v759, 0.0
        %v886 = vmax.f32 %v764, 0.0
        %v887 = vmax.f32 %v767, 0.0
        %v888 = vmax.f32 %v772, 0.0
        %v889 = vmax.f32 %v775, 0.0
        %v890 = vmax.f32 %v780, 0.0
        %v891 = vmax.f32 %v783, 0.0
        %v892 = vmax.f32 %v788, 0.0
        %v893 = vmax.f32 %v791, 0.0
        %v894 = vmax.f32 %v796, 0.0
        %v895 = vmax.f32 %v799, 0.0
        %v896 = vmax.f32 %v804, 0.0
        %v897 = vmax.f32 %v807, 0.0
        %v898 = vmax.f32 %v812, 0.0
        %v899 = vmax.f32 %v815, 0.0
        %v900 = vmax.f32 %v820, 0.0
        %v901 = vmax.f32 %v823, 0.0
        %v902 = vmax.f32 %v828, 0.0
        %v903 = vmax.f32 %v831, 0.0
        %v904 = vmax.f32 %v836, 0.0
        %v905 = vmax.f32 %v839, 0.0
        %906 = vst [vmem:[%s200] sm:$0xff] %v842
        %907 = vst [vmem:[%s200 + $0x8] sm:$0xff] %v843
        %908 = vst [vmem:[%s200 + $0x10] sm:$0xff] %v844
        %909 = vst [vmem:[%s200 + $0x18] sm:$0xff] %v845
        %910 = vst [vmem:[%s200 + $0x20] sm:$0xff] %v846
        %911 = vst [vmem:[%s200 + $0x28] sm:$0xff] %v847
        %912 = vst [vmem:[%s200 + $0x30] sm:$0xff] %v848
        %913 = vst [vmem:[%s200 + $0x38] sm:$0xff] %v849
        %914 = vst [vmem:[%s200 + $0x40] sm:$0xff] %v850
        %915 = vst [vmem:[%s200 + $0x48] sm:$0xff] %v851
        %916 = vst [vmem:[%s200 + $0x50] sm:$0xff] %v852
        %917 = vst [vmem:[%s200 + $0x58] sm:$0xff] %v853
        %918 = vst [vmem:[%s200 + $0x60] sm:$0xff] %v854
        %919 = vst [vmem:[%s200 + $0x68] sm:$0xff] %v855
        %920 = vst [vmem:[%s200 + $0x70] sm:$0xff] %v856
        %921 = vst [vmem:[%s200 + $0x78] sm:$0xff] %v857
        %922 = vst [vmem:[%s200 + $0x80] sm:$0xff] %v858
        %923 = vst [vmem:[%s200 + $0x88] sm:$0xff] %v859
        %924 = vst [vmem:[%s200 + $0x90] sm:$0xff] %v860
        %925 = vst [vmem:[%s200 + $0x98] sm:$0xff] %v861
        %926 = vst [vmem:[%s200 + $0xa0] sm:$0xff] %v862
        %927 = vst [vmem:[%s200 + $0xa8] sm:$0xff] %v863
        %928 = vst [vmem:[%s200 + $0xb0] sm:$0xff] %v864
        %929 = vst [vmem:[%s200 + $0xb8] sm:$0xff] %v865
        %930 = vst [vmem:[%s200 + $0xc0] sm:$0xff] %v866
        %931 = vst [vmem:[%s200 + $0xc8] sm:$0xff] %v867
        %932 = vst [vmem:[%s200 + $0xd0] sm:$0xff] %v868
        %933 = vst [vmem:[%s200 + $0xd8] sm:$0xff] %v869
        %934 = vst [vmem:[%s200 + $0xe0] sm:$0xff] %v870
        %935 = vst [vmem:[%s200 + $0xe8] sm:$0xff] %v871
        %936 = vst [vmem:[%s200 + $0xf0] sm:$0xff] %v872
        %937 = vst [vmem:[%s200 + $0xf8] sm:$0xff] %v873
        %938 = vst [vmem:[%s200 + $0x100] sm:$0xff] %v874
        %939 = vst [vmem:[%s200 + $0x108] sm:$0xff] %v875
        %940 = vst [vmem:[%s200 + $0x110] sm:$0xff] %v876
        %941 = vst [vmem:[%s200 + $0x118] sm:$0xff] %v877
        %942 = vst [vmem:[%s200 + $0x120] sm:$0xff] %v878
        %943 = vst [vmem:[%s200 + $0x128] sm:$0xff] %v879
        %944 = vst [vmem:[%s200 + $0x130] sm:$0xff] %v880
        %945 = vst [vmem:[%s200 + $0x138] sm:$0xff] %v881
        %946 = vst [vmem:[%s200 + $0x140] sm:$0xff] %v882
        %947 = vst [vmem:[%s200 + $0x148] sm:$0xff] %v883
        %948 = vst [vmem:[%s200 + $0x150] sm:$0xff] %v884
        %949 = vst [vmem:[%s200 + $0x158] sm:$0xff] %v885
        %950 = vst [vmem:[%s200 + $0x160] sm:$0xff] %v886
        %951 = vst [vmem:[%s200 + $0x168] sm:$0xff] %v887
        %952 = vst [vmem:[%s200 + $0x170] sm:$0xff] %v888
        %953 = vst [vmem:[%s200 + $0x178] sm:$0xff] %v889
        %954 = vst [vmem:[%s200 + $0x180] sm:$0xff] %v890
        %955 = vst [vmem:[%s200 + $0x188] sm:$0xff] %v891
        %956 = vst [vmem:[%s200 + $0x190] sm:$0xff] %v892
        %957 = vst [vmem:[%s200 + $0x198] sm:$0xff] %v893
        %958 = vst [vmem:[%s200 + $0x1a0] sm:$0xff] %v894
        %959 = vst [vmem:[%s200 + $0x1a8] sm:$0xff] %v895
        %960 = vst [vmem:[%s200 + $0x1b0] sm:$0xff] %v896
        %961 = vst [vmem:[%s200 + $0x1b8] sm:$0xff] %v897
        %962 = vst [vmem:[%s200 + $0x1c0] sm:$0xff] %v898
        %963 = vst [vmem:[%s200 + $0x1c8] sm:$0xff] %v899
        %964 = vst [vmem:[%s200 + $0x1d0] sm:$0xff] %v900
        %965 = vst [vmem:[%s200 + $0x1d8] sm:$0xff] %v901
        %966 = vst [vmem:[%s200 + $0x1e0] sm:$0xff] %v902
        %967 = vst [vmem:[%s200 + $0x1e8] sm:$0xff] %v903
        %968 = vst [vmem:[%s200 + $0x1f0] sm:$0xff] %v904
        %969 = vst [vmem:[%s200 + $0x1f8] sm:$0xff] %v905
        %s970 = smul.u32 64, %s16
        %p971 = scmp.lt.s32.totalorder %s970, 191
        %s972 = scalar_select %p971, %s970, 191
        %s973 = smul.addr %s972, 8
        %s974 = scalar_lea.vmem %s3, %s973
        // Predicated region
        $region41: #{mnistcnn_forward.5} parent=31 // pred_check
          %p975 = pneg %p102
        $region42: #{mnistcnn_forward.5} parent=31 // pred_check_branch
          %977 = sbr.rel (%p975) target = $region44
        $region43: #{mnistcnn_forward.5} parent=31 // pred_region
          %s978 = smul.u32 64, %s16
        $region44: #{mnistcnn_forward.5} parent=31 // pred_fallthru
          _
      $region32: #{mnistcnn_forward.5} parent=5 // pred_fallthru
        _
      %p979 = scmp.le.s32.totalorder 2, %s11
      // Predicated region
      $region45: #{mnistcnn_forward.5} parent=5 // pred_check
        %p980 = pneg %p979
      $region46: #{mnistcnn_forward.5} parent=5 // pred_check_branch
        %982 = sbr.rel (%p980) target = $region48
      $region47: #{mnistcnn_forward.5} parent=5 // pred_region
        %s983 = ssub.s32 %s11, 2
        // Predicated region
        $region49: #{mnistcnn_forward.5} parent=47 // pred_check
          %p984 = pneg %p108
        $region50: #{mnistcnn_forward.5} parent=47 // pred_check_branch
          %986 = sbr.rel (%p984) target = $region52
        $region51: #{mnistcnn_forward.5} parent=47 // pred_region
          %s987 = smul.u32 64, %s17
          %p988 = scmp.lt.s32.totalorder %s987, 191
          %s989 = scalar_select %p988, %s987, 191
          %s990 = smul.addr %s989, 8
          %s991 = scalar_lea.vmem %s3, %s990
        $region52: #{mnistcnn_forward.5} parent=47 // pred_fallthru
          _
      $region48: #{mnistcnn_forward.5} parent=5 // pred_fallthru
        _
    $region6: #{mnistcnn_forward.5} parent=1 // loop_footer
      %s15 = sadd.s32 1, %s11
    $region7: #{mnistcnn_forward.5} parent=1 // loop_footer_branch
      %10 = sbr.rel target = $region3
    $region8: #{mnistcnn_forward.5} parent=1 // loop_exit
      _
    %992 = vsyncpa [#allocation3], 1
    %s993 = scalar_lea.sflag [#allocation3], 1
    %994 = vsyncpa %s993, 1
    %995 = vsyncpa [#allocation5], 1

// kernel: mnistcnn_forward.6
$region0: #{mnistcnn_forward.6}
  #allocation0 [shape = 'u32[]', space=smem, size = 0x4, offset = 0x4, fixed_abs, tag = 'smem constant byte address 0x4 - core index']
  #allocation1 [shape = 'u32[144,128]{1,0:T(1,128)}', space=vmem, size = 0x12000, scoped, tag = 'internal scratch']
  %s0 = inlined_call_operand.vmem [shape: f32[24,2,12,256], index: 0, kind: input, shape index: {}]
  %s1 = inlined_call_operand.vmem [shape: f32[24,12,128], index: 1, kind: output, shape index: {}]
  %s2 = sld [smem:[#allocation0]]
  $region14: #{mnistcnn_forward.6} parent=0
    _
  %s4 = ssub.s32 1, %s2
  %s5 = scalar_select 0, %s4, %s2
  // Predicated region
  $region2: #{mnistcnn_forward.6} parent=0 // pred_check
    _
  $region3: #{mnistcnn_forward.6} parent=0 // pred_check_branch
    %7 = sbr.rel (0) target = $region5
  $region4: #{mnistcnn_forward.6} parent=0 // pred_region
    _
  $region5: #{mnistcnn_forward.6} parent=0 // pred_fallthru
    _
  %v8 = vld [vmem:[%s0] sm:$0xff]
  %v9 = vld [vmem:[%s0 + $0x8] sm:$0xff]
  %v10 = vld [vmem:[%s0 + $0x10] sm:$0xf]
  %v11 = vld [vmem:[%s0 + $0x18] sm:$0xf]
  %v12 = vld [vmem:[%s0 + $0x40] sm:$0xff]
  %v13 = vld [vmem:[%s0 + $0x48] sm:$0xff]
  %v14 = vld [vmem:[%s0 + $0x50] sm:$0xf]
  %v15 = vld [vmem:[%s0 + $0x58] sm:$0xf]
  %v16 = vld [vmem:[%s0 + $0x80] sm:$0xff]
  %v17 = vld [vmem:[%s0 + $0x88] sm:$0xff]
  %v18 = vld [vmem:[%s0 + $0x90] sm:$0xf]
  %v19 = vld [vmem:[%s0 + $0x98] sm:$0xf]
  %v20 = vld [vmem:[%s0 + $0xc0] sm:$0xff]
  %v21 = vld [vmem:[%s0 + $0xc8] sm:$0xff]
  %v22 = vld [vmem:[%s0 + $0xd0] sm:$0xf]
  %v23 = vld [vmem:[%s0 + $0xd8] sm:$0xf]
  %v24 = vld [vmem:[%s0 + $0x100] sm:$0xff]
  %v25 = vld [vmem:[%s0 + $0x108] sm:$0xff]
  %v26 = vld [vmem:[%s0 + $0x110] sm:$0xf]
  %v27 = vld [vmem:[%s0 + $0x118] sm:$0xf]
  %v28 = vld [vmem:[%s0 + $0x140] sm:$0xff]
  %v29 = vld [vmem:[%s0 + $0x148] sm:$0xff]
  %v30 = vld [vmem:[%s0 + $0x150] sm:$0xf]
  %v31 = vld [vmem:[%s0 + $0x158] sm:$0xf]
  %v32 = vld [vmem:[%s0 + $0x180] sm:$0xff]
  %v33 = vld [vmem:[%s0 + $0x188] sm:$0xff]
  %v34 = vld [vmem:[%s0 + $0x190] sm:$0xf]
  %v35 = vld [vmem:[%s0 + $0x198] sm:$0xf]
  %v36 = vld [vmem:[%s0 + $0x1c0] sm:$0xff]
  %v37 = vld [vmem:[%s0 + $0x1c8] sm:$0xff]
  %v38 = vld [vmem:[%s0 + $0x1d0] sm:$0xf]
  %v39 = vld [vmem:[%s0 + $0x1d8] sm:$0xf]
  %v40 = vld [vmem:[%s0 + $0x200] sm:$0xff]
  %v41 = vld [vmem:[%s0 + $0x208] sm:$0xff]
  %v42 = vld [vmem:[%s0 + $0x210] sm:$0xf]
  %v43 = vld [vmem:[%s0 + $0x218] sm:$0xf]
  %v44 = vld [vmem:[%s0 + $0x240] sm:$0xff]
  %v45 = vld [vmem:[%s0 + $0x248] sm:$0xff]
  %v46 = vld [vmem:[%s0 + $0x250] sm:$0xf]
  %v47 = vld [vmem:[%s0 + $0x258] sm:$0xf]
  %v48 = vld [vmem:[%s0 + $0x280] sm:$0xff]
  %v49 = vld [vmem:[%s0 + $0x288] sm:$0xff]
  %v50 = vld [vmem:[%s0 + $0x290] sm:$0xf]
  %v51 = vld [vmem:[%s0 + $0x298] sm:$0xf]
  %v52 = vld [vmem:[%s0 + $0x2c0] sm:$0xff]
  %v53 = vld [vmem:[%s0 + $0x2c8] sm:$0xff]
  %v54 = vld [vmem:[%s0 + $0x2d0] sm:$0xf]
  %v55 = vld [vmem:[%s0 + $0x2d8] sm:$0xf]
  %v56 = vld [vmem:[%s0 + $0x300] sm:$0xff]
  %v57 = vld [vmem:[%s0 + $0x308] sm:$0xff]
  %v58 = vld [vmem:[%s0 + $0x310] sm:$0xf]
  %v59 = vld [vmem:[%s0 + $0x318] sm:$0xf]
  %v60 = vld [vmem:[%s0 + $0x340] sm:$0xff]
  %v61 = vld [vmem:[%s0 + $0x348] sm:$0xff]
  %v62 = vld [vmem:[%s0 + $0x350] sm:$0xf]
  %v63 = vld [vmem:[%s0 + $0x358] sm:$0xf]
  %v64 = vld [vmem:[%s0 + $0x380] sm:$0xff]
  %v65 = vld [vmem:[%s0 + $0x388] sm:$0xff]
  %v66 = vld [vmem:[%s0 + $0x390] sm:$0xf]
  %v67 = vld [vmem:[%s0 + $0x398] sm:$0xf]
  %v68 = vld [vmem:[%s0 + $0x3c0] sm:$0xff]
  %v69 = vld [vmem:[%s0 + $0x3c8] sm:$0xff]
  %v70 = vld [vmem:[%s0 + $0x3d0] sm:$0xf]
  %v71 = vld [vmem:[%s0 + $0x3d8] sm:$0xf]
  %v72 = vld [vmem:[%s0 + $0x400] sm:$0xff]
  %v73 = vld [vmem:[%s0 + $0x408] sm:$0xff]
  %v74 = vld [vmem:[%s0 + $0x410] sm:$0xf]
  %v75 = vld [vmem:[%s0 + $0x418] sm:$0xf]
  %v76 = vld [vmem:[%s0 + $0x440] sm:$0xff]
  %v77 = vld [vmem:[%s0 + $0x448] sm:$0xff]
  %v78 = vld [vmem:[%s0 + $0x450] sm:$0xf]
  %v79 = vld [vmem:[%s0 + $0x458] sm:$0xf]
  %v80 = vld [vmem:[%s0 + $0x480] sm:$0xff]
  %v81 = vld [vmem:[%s0 + $0x488] sm:$0xff]
  %v82 = vld [vmem:[%s0 + $0x490] sm:$0xf]
  %v83 = vld [vmem:[%s0 + $0x498] sm:$0xf]
  %v84 = vld [vmem:[%s0 + $0x4c0] sm:$0xff]
  %v85 = vld [vmem:[%s0 + $0x4c8] sm:$0xff]
  %v86 = vld [vmem:[%s0 + $0x4d0] sm:$0xf]
  %v87 = vld [vmem:[%s0 + $0x4d8] sm:$0xf]
  %v88 = vld [vmem:[%s0 + $0x500] sm:$0xff]
  %v89 = vld [vmem:[%s0 + $0x508] sm:$0xff]
  %v90 = vld [vmem:[%s0 + $0x510] sm:$0xf]
  %v91 = vld [vmem:[%s0 + $0x518] sm:$0xf]
  %v92 = vld [vmem:[%s0 + $0x540] sm:$0xff]
  %v93 = vld [vmem:[%s0 + $0x548] sm:$0xff]
  %v94 = vld [vmem:[%s0 + $0x550] sm:$0xf]
  %v95 = vld [vmem:[%s0 + $0x558] sm:$0xf]
  %v96 = vld [vmem:[%s0 + $0x580] sm:$0xff]
  %v97 = vld [vmem:[%s0 + $0x588] sm:$0xff]
  %v98 = vld [vmem:[%s0 + $0x590] sm:$0xf]
  %v99 = vld [vmem:[%s0 + $0x598] sm:$0xf]
  %v100 = vld [vmem:[%s0 + $0x5c0] sm:$0xff]
  %v101 = vld [vmem:[%s0 + $0x5c8] sm:$0xff]
  %v102 = vld [vmem:[%s0 + $0x5d0] sm:$0xf]
  %v103 = vld [vmem:[%s0 + $0x5d8] sm:$0xf]
  %s104 = scalar_lea.vmem %s0, 32
  %v105 = vld [vmem:[%s104] sm:$0xff]
  %v106 = vld [vmem:[%s104 + $0x8] sm:$0xff]
  %v107 = vld [vmem:[%s104 + $0x10] sm:$0xf]
  %v108 = vld [vmem:[%s104 + $0x18] sm:$0xf]
  %v109 = vld [vmem:[%s104 + $0x40] sm:$0xff]
  %v110 = vld [vmem:[%s104 + $0x48] sm:$0xff]
  %v111 = vld [vmem:[%s104 + $0x50] sm:$0xf]
  %v112 = vld [vmem:[%s104 + $0x58] sm:$0xf]
  %v113 = vld [vmem:[%s104 + $0x80] sm:$0xff]
  %v114 = vld [vmem:[%s104 + $0x88] sm:$0xff]
  %v115 = vld [vmem:[%s104 + $0x90] sm:$0xf]
  %v116 = vld [vmem:[%s104 + $0x98] sm:$0xf]
  %v117 = vld [vmem:[%s104 + $0xc0] sm:$0xff]
  %v118 = vld [vmem:[%s104 + $0xc8] sm:$0xff]
  %v119 = vld [vmem:[%s104 + $0xd0] sm:$0xf]
  %v120 = vld [vmem:[%s104 + $0xd8] sm:$0xf]
  %v121 = vld [vmem:[%s104 + $0x100] sm:$0xff]
  %v122 = vld [vmem:[%s104 + $0x108] sm:$0xff]
  %v123 = vld [vmem:[%s104 + $0x110] sm:$0xf]
  %v124 = vld [vmem:[%s104 + $0x118] sm:$0xf]
  %v125 = vld [vmem:[%s104 + $0x140] sm:$0xff]
  %v126 = vld [vmem:[%s104 + $0x148] sm:$0xff]
  %v127 = vld [vmem:[%s104 + $0x150] sm:$0xf]
  %v128 = vld [vmem:[%s104 + $0x158] sm:$0xf]
  %v129 = vld [vmem:[%s104 + $0x180] sm:$0xff]
  %v130 = vld [vmem:[%s104 + $0x188] sm:$0xff]
  %v131 = vld [vmem:[%s104 + $0x190] sm:$0xf]
  %v132 = vld [vmem:[%s104 + $0x198] sm:$0xf]
  %v133 = vld [vmem:[%s104 + $0x1c0] sm:$0xff]
  %v134 = vld [vmem:[%s104 + $0x1c8] sm:$0xff]
  %v135 = vld [vmem:[%s104 + $0x1d0] sm:$0xf]
  %v136 = vld [vmem:[%s104 + $0x1d8] sm:$0xf]
  %v137 = vld [vmem:[%s104 + $0x200] sm:$0xff]
  %v138 = vld [vmem:[%s104 + $0x208] sm:$0xff]
  %v139 = vld [vmem:[%s104 + $0x210] sm:$0xf]
  %v140 = vld [vmem:[%s104 + $0x218] sm:$0xf]
  %v141 = vld [vmem:[%s104 + $0x240] sm:$0xff]
  %v142 = vld [vmem:[%s104 + $0x248] sm:$0xff]
  %v143 = vld [vmem:[%s104 + $0x250] sm:$0xf]
  %v144 = vld [vmem:[%s104 + $0x258] sm:$0xf]
  %v145 = vld [vmem:[%s104 + $0x280] sm:$0xff]
  %v146 = vld [vmem:[%s104 + $0x288] sm:$0xff]
  %v147 = vld [vmem:[%s104 + $0x290] sm:$0xf]
  %v148 = vld [vmem:[%s104 + $0x298] sm:$0xf]
  %v149 = vld [vmem:[%s104 + $0x2c0] sm:$0xff]
  %v150 = vld [vmem:[%s104 + $0x2c8] sm:$0xff]
  %v151 = vld [vmem:[%s104 + $0x2d0] sm:$0xf]
  %v152 = vld [vmem:[%s104 + $0x2d8] sm:$0xf]
  %v153 = vld [vmem:[%s104 + $0x300] sm:$0xff]
  %v154 = vld [vmem:[%s104 + $0x308] sm:$0xff]
  %v155 = vld [vmem:[%s104 + $0x310] sm:$0xf]
  %v156 = vld [vmem:[%s104 + $0x318] sm:$0xf]
  %v157 = vld [vmem:[%s104 + $0x340] sm:$0xff]
  %v158 = vld [vmem:[%s104 + $0x348] sm:$0xff]
  %v159 = vld [vmem:[%s104 + $0x350] sm:$0xf]
  %v160 = vld [vmem:[%s104 + $0x358] sm:$0xf]
  %v161 = vld [vmem:[%s104 + $0x380] sm:$0xff]
  %v162 = vld [vmem:[%s104 + $0x388] sm:$0xff]
  %v163 = vld [vmem:[%s104 + $0x390] sm:$0xf]
  %v164 = vld [vmem:[%s104 + $0x398] sm:$0xf]
  %v165 = vld [vmem:[%s104 + $0x3c0] sm:$0xff]
  %v166 = vld [vmem:[%s104 + $0x3c8] sm:$0xff]
  %v167 = vld [vmem:[%s104 + $0x3d0] sm:$0xf]
  %v168 = vld [vmem:[%s104 + $0x3d8] sm:$0xf]
  %v169 = vld [vmem:[%s104 + $0x400] sm:$0xff]
  %v170 = vld [vmem:[%s104 + $0x408] sm:$0xff]
  %v171 = vld [vmem:[%s104 + $0x410] sm:$0xf]
  %v172 = vld [vmem:[%s104 + $0x418] sm:$0xf]
  %v173 = vld [vmem:[%s104 + $0x440] sm:$0xff]
  %v174 = vld [vmem:[%s104 + $0x448] sm:$0xff]
  %v175 = vld [vmem:[%s104 + $0x450] sm:$0xf]
  %v176 = vld [vmem:[%s104 + $0x458] sm:$0xf]
  %v177 = vld [vmem:[%s104 + $0x480] sm:$0xff]
  %v178 = vld [vmem:[%s104 + $0x488] sm:$0xff]
  %v179 = vld [vmem:[%s104 + $0x490] sm:$0xf]
  %v180 = vld [vmem:[%s104 + $0x498] sm:$0xf]
  %v181 = vld [vmem:[%s104 + $0x4c0] sm:$0xff]
  %v182 = vld [vmem:[%s104 + $0x4c8] sm:$0xff]
  %v183 = vld [vmem:[%s104 + $0x4d0] sm:$0xf]
  %v184 = vld [vmem:[%s104 + $0x4d8] sm:$0xf]
  %v185 = vld [vmem:[%s104 + $0x500] sm:$0xff]
  %v186 = vld [vmem:[%s104 + $0x508] sm:$0xff]
  %v187 = vld [vmem:[%s104 + $0x510] sm:$0xf]
  %v188 = vld [vmem:[%s104 + $0x518] sm:$0xf]
  %v189 = vld [vmem:[%s104 + $0x540] sm:$0xff]
  %v190 = vld [vmem:[%s104 + $0x548] sm:$0xff]
  %v191 = vld [vmem:[%s104 + $0x550] sm:$0xf]
  %v192 = vld [vmem:[%s104 + $0x558] sm:$0xf]
  %v193 = vld [vmem:[%s104 + $0x580] sm:$0xff]
  %v194 = vld [vmem:[%s104 + $0x588] sm:$0xff]
  %v195 = vld [vmem:[%s104 + $0x590] sm:$0xf]
  %v196 = vld [vmem:[%s104 + $0x598] sm:$0xf]
  %v197 = vld [vmem:[%s104 + $0x5c0] sm:$0xff]
  %v198 = vld [vmem:[%s104 + $0x5c8] sm:$0xff]
  %v199 = vld [vmem:[%s104 + $0x5d0] sm:$0xf]
  %v200 = vld [vmem:[%s104 + $0x5d8] sm:$0xf]
  %v201 = vmax.f32 %v8, %v105
  %v202 = vmax.f32 %v9, %v106
  %v203 = vmax.f32 %v10, %v107
  %v204 = vmax.f32 %v11, %v108
  %v205 = vmax.f32 %v12, %v109
  %v206 = vmax.f32 %v13, %v110
  %v207 = vmax.f32 %v14, %v111
  %v208 = vmax.f32 %v15, %v112
  %v209 = vmax.f32 %v16, %v113
  %v210 = vmax.f32 %v17, %v114
  %v211 = vmax.f32 %v18, %v115
  %v212 = vmax.f32 %v19, %v116
  %v213 = vmax.f32 %v20, %v117
  %v214 = vmax.f32 %v21, %v118
  %v215 = vmax.f32 %v22, %v119
  %v216 = vmax.f32 %v23, %v120
  %v217 = vmax.f32 %v24, %v121
  %v218 = vmax.f32 %v25, %v122
  %v219 = vmax.f32 %v26, %v123
  %v220 = vmax.f32 %v27, %v124
  %v221 = vmax.f32 %v28, %v125
  %v222 = vmax.f32 %v29, %v126
  %v223 = vmax.f32 %v30, %v127
  %v224 = vmax.f32 %v31, %v128
  %v225 = vmax.f32 %v32, %v129
  %v226 = vmax.f32 %v33, %v130
  %v227 = vmax.f32 %v34, %v131
  %v228 = vmax.f32 %v35, %v132
  %v229 = vmax.f32 %v36, %v133
  %v230 = vmax.f32 %v37, %v134
  %v231 = vmax.f32 %v38, %v135
  %v232 = vmax.f32 %v39, %v136
  %v233 = vmax.f32 %v40, %v137
  %v234 = vmax.f32 %v41, %v138
  %v235 = vmax.f32 %v42, %v139
  %v236 = vmax.f32 %v43, %v140
  %v237 = vmax.f32 %v44, %v141
  %v238 = vmax.f32 %v45, %v142
  %v239 = vmax.f32 %v46, %v143
  %v240 = vmax.f32 %v47, %v144
  %v241 = vmax.f32 %v48, %v145
  %v242 = vmax.f32 %v49, %v146
  %v243 = vmax.f32 %v50, %v147
  %v244 = vmax.f32 %v51, %v148
  %v245 = vmax.f32 %v52, %v149
  %v246 = vmax.f32 %v53, %v150
  %v247 = vmax.f32 %v54, %v151
  %v248 = vmax.f32 %v55, %v152
  %v249 = vmax.f32 %v56, %v153
  %v250 = vmax.f32 %v57, %v154
  %v251 = vmax.f32 %v58, %v155
  %v252 = vmax.f32 %v59, %v156
  %v253 = vmax.f32 %v60, %v157
  %v254 = vmax.f32 %v61, %v158
  %v255 = vmax.f32 %v62, %v159
  %v256 = vmax.f32 %v63, %v160
  %v257 = vmax.f32 %v64, %v161
  %v258 = vmax.f32 %v65, %v162
  %v259 = vmax.f32 %v66, %v163
  %v260 = vmax.f32 %v67, %v164
  %v261 = vmax.f32 %v68, %v165
  %v262 = vmax.f32 %v69, %v166
  %v263 = vmax.f32 %v70, %v167
  %v264 = vmax.f32 %v71, %v168
  %v265 = vmax.f32 %v72, %v169
  %v266 = vmax.f32 %v73, %v170
  %v267 = vmax.f32 %v74, %v171
  %v268 = vmax.f32 %v75, %v172
  %v269 = vmax.f32 %v76, %v173
  %v270 = vmax.f32 %v77, %v174
  %v271 = vmax.f32 %v78, %v175
  %v272 = vmax.f32 %v79, %v176
  %v273 = vmax.f32 %v80, %v177
  %v274 = vmax.f32 %v81, %v178
  %v275 = vmax.f32 %v82, %v179
  %v276 = vmax.f32 %v83, %v180
  %v277 = vmax.f32 %v84, %v181
  %v278 = vmax.f32 %v85, %v182
  %v279 = vmax.f32 %v86, %v183
  %v280 = vmax.f32 %v87, %v184
  %v281 = vmax.f32 %v88, %v185
  %v282 = vmax.f32 %v89, %v186
  %v283 = vmax.f32 %v90, %v187
  %v284 = vmax.f32 %v91, %v188
  %v285 = vmax.f32 %v92, %v189
  %v286 = vmax.f32 %v93, %v190
  %v287 = vmax.f32 %v94, %v191
  %v288 = vmax.f32 %v95, %v192
  %v289 = vmax.f32 %v96, %v193
  %v290 = vmax.f32 %v97, %v194
  %v291 = vmax.f32 %v98, %v195
  %v292 = vmax.f32 %v99, %v196
  %v293 = vmax.f32 %v100, %v197
  %v294 = vmax.f32 %v101, %v198
  %v295 = vmax.f32 %v102, %v199
  %v296 = vmax.f32 %v103, %v200
  %v297 = vmax.f32 %v201, %v202
  %v298 = vmax.f32 %v203, %v204
  %v299 = vmax.f32 %v205, %v206
  %v300 = vmax.f32 %v207, %v208
  %v301 = vmax.f32 %v209, %v210
  %v302 = vmax.f32 %v211, %v212
  %v303 = vmax.f32 %v213, %v214
  %v304 = vmax.f32 %v215, %v216
  %v305 = vmax.f32 %v217, %v218
  %v306 = vmax.f32 %v219, %v220
  %v307 = vmax.f32 %v221, %v222
  %v308 = vmax.f32 %v223, %v224
  %v309 = vmax.f32 %v225, %v226
  %v310 = vmax.f32 %v227, %v228
  %v311 = vmax.f32 %v229, %v230
  %v312 = vmax.f32 %v231, %v232
  %v313 = vmax.f32 %v233, %v234
  %v314 = vmax.f32 %v235, %v236
  %v315 = vmax.f32 %v237, %v238
  %v316 = vmax.f32 %v239, %v240
  %v317 = vmax.f32 %v241, %v242
  %v318 = vmax.f32 %v243, %v244
  %v319 = vmax.f32 %v245, %v246
  %v320 = vmax.f32 %v247, %v248
  %v321 = vmax.f32 %v249, %v250
  %v322 = vmax.f32 %v251, %v252
  %v323 = vmax.f32 %v253, %v254
  %v324 = vmax.f32 %v255, %v256
  %v325 = vmax.f32 %v257, %v258
  %v326 = vmax.f32 %v259, %v260
  %v327 = vmax.f32 %v261, %v262
  %v328 = vmax.f32 %v263, %v264
  %v329 = vmax.f32 %v265, %v266
  %v330 = vmax.f32 %v267, %v268
  %v331 = vmax.f32 %v269, %v270
  %v332 = vmax.f32 %v271, %v272
  %v333 = vmax.f32 %v273, %v274
  %v334 = vmax.f32 %v275, %v276
  %v335 = vmax.f32 %v277, %v278
  %v336 = vmax.f32 %v279, %v280
  %v337 = vmax.f32 %v281, %v282
  %v338 = vmax.f32 %v283, %v284
  %v339 = vmax.f32 %v285, %v286
  %v340 = vmax.f32 %v287, %v288
  %v341 = vmax.f32 %v289, %v290
  %v342 = vmax.f32 %v291, %v292
  %v343 = vmax.f32 %v293, %v294
  %v344 = vmax.f32 %v295, %v296
  %345 = vst [vmem:[%s1] sm:$0xff] %v297
  %346 = vst [vmem:[%s1 + $0x8] sm:$0xf] %v298
  %347 = vst [vmem:[%s1 + $0x10] sm:$0xff] %v299
  %348 = vst [vmem:[%s1 + $0x18] sm:$0xf] %v300
  %349 = vst [vmem:[%s1 + $0x20] sm:$0xff] %v301
  %350 = vst [vmem:[%s1 + $0x28] sm:$0xf] %v302
  %351 = vst [vmem:[%s1 + $0x30] sm:$0xff] %v303
  %352 = vst [vmem:[%s1 + $0x38] sm:$0xf] %v304
  %353 = vst [vmem:[%s1 + $0x40] sm:$0xff] %v305
  %354 = vst [vmem:[%s1 + $0x48] sm:$0xf] %v306
  %355 = vst [vmem:[%s1 + $0x50] sm:$0xff] %v307
  %356 = vst [vmem:[%s1 + $0x58] sm:$0xf] %v308
  %357 = vst [vmem:[%s1 + $0x60] sm:$0xff] %v309
  %358 = vst [vmem:[%s1 + $0x68] sm:$0xf] %v310
  %359 = vst [vmem:[%s1 + $0x70] sm:$0xff] %v311
  %360 = vst [vmem:[%s1 + $0x78] sm:$0xf] %v312
  %361 = vst [vmem:[%s1 + $0x80] sm:$0xff] %v313
  %362 = vst [vmem:[%s1 + $0x88] sm:$0xf] %v314
  %363 = vst [vmem:[%s1 + $0x90] sm:$0xff] %v315
  %364 = vst [vmem:[%s1 + $0x98] sm:$0xf] %v316
  %365 = vst [vmem:[%s1 + $0xa0] sm:$0xff] %v317
  %366 = vst [vmem:[%s1 + $0xa8] sm:$0xf] %v318
  %367 = vst [vmem:[%s1 + $0xb0] sm:$0xff] %v319
  %368 = vst [vmem:[%s1 + $0xb8] sm:$0xf] %v320
  %369 = vst [vmem:[%s1 + $0xc0] sm:$0xff] %v321
  %370 = vst [vmem:[%s1 + $0xc8] sm:$0xf] %v322
  %371 = vst [vmem:[%s1 + $0xd0] sm:$0xff] %v323
  %372 = vst [vmem:[%s1 + $0xd8] sm:$0xf] %v324
  %373 = vst [vmem:[%s1 + $0xe0] sm:$0xff] %v325
  %374 = vst [vmem:[%s1 + $0xe8] sm:$0xf] %v326
  %375 = vst [vmem:[%s1 + $0xf0] sm:$0xff] %v327
  %376 = vst [vmem:[%s1 + $0xf8] sm:$0xf] %v328
  %377 = vst [vmem:[%s1 + $0x100] sm:$0xff] %v329
  %378 = vst [vmem:[%s1 + $0x108] sm:$0xf] %v330
  %379 = vst [vmem:[%s1 + $0x110] sm:$0xff] %v331
  %380 = vst [vmem:[%s1 + $0x118] sm:$0xf] %v332
  %381 = vst [vmem:[%s1 + $0x120] sm:$0xff] %v333
  %382 = vst [vmem:[%s1 + $0x128] sm:$0xf] %v334
  %383 = vst [vmem:[%s1 + $0x130] sm:$0xff] %v335
  %384 = vst [vmem:[%s1 + $0x138] sm:$0xf] %v336
  %385 = vst [vmem:[%s1 + $0x140] sm:$0xff] %v337
  %386 = vst [vmem:[%s1 + $0x148] sm:$0xf] %v338
  %387 = vst [vmem:[%s1 + $0x150] sm:$0xff] %v339
  %388 = vst [vmem:[%s1 + $0x158] sm:$0xf] %v340
  %389 = vst [vmem:[%s1 + $0x160] sm:$0xff] %v341
  %390 = vst [vmem:[%s1 + $0x168] sm:$0xf] %v342
  %391 = vst [vmem:[%s1 + $0x170] sm:$0xff] %v343
  %392 = vst [vmem:[%s1 + $0x178] sm:$0xf] %v344
  // Predicated region
  $region6: #{mnistcnn_forward.6} parent=0 // pred_check
    _
  $region7: #{mnistcnn_forward.6} parent=0 // pred_check_branch
    %394 = sbr.rel (0) target = $region9
  $region8: #{mnistcnn_forward.6} parent=0 // pred_region
    _
  $region9: #{mnistcnn_forward.6} parent=0 // pred_fallthru
    _
  // Predicated region
  $region10: #{mnistcnn_forward.6} parent=0 // pred_check
    _
  $region11: #{mnistcnn_forward.6} parent=0 // pred_check_branch
    %396 = sbr.rel (0) target = $region13
  $region12: #{mnistcnn_forward.6} parent=0 // pred_region
    _
  $region13: #{mnistcnn_forward.6} parent=0 // pred_fallthru
    _

// kernel: mnistcnn_forward.8
$region0: #{mnistcnn_forward.8}
  #allocation0 [shape = 'u32[]', space=smem, size = 0x4, offset = 0x4, fixed_abs, tag = 'smem constant byte address 0x4 - core index']
  #allocation1 [shape = 'u32[144,128]{1,0:T(1,128)}', space=vmem, size = 0x12000, scoped, tag = 'internal scratch']
  %s0 = inlined_call_operand.vmem [shape: f32[8,2,4,256], index: 0, kind: input, shape index: {}]
  %s1 = inlined_call_operand.vmem [shape: f32[8,4,128], index: 1, kind: output, shape index: {}]
  %s2 = sld [smem:[#allocation0]]
  $region14: #{mnistcnn_forward.8} parent=0
    _
  %s4 = ssub.s32 1, %s2
  %s5 = scalar_select 0, %s4, %s2
  // Predicated region
  $region2: #{mnistcnn_forward.8} parent=0 // pred_check
    _
  $region3: #{mnistcnn_forward.8} parent=0 // pred_check_branch
    %7 = sbr.rel (0) target = $region5
  $region4: #{mnistcnn_forward.8} parent=0 // pred_region
    _
  $region5: #{mnistcnn_forward.8} parent=0 // pred_fallthru
    _
  %v8 = vld [vmem:[%s0] sm:$0xff]
  %v9 = vld [vmem:[%s0 + $0x10] sm:$0xff]
  %v10 = vld [vmem:[%s0 + $0x20] sm:$0xff]
  %v11 = vld [vmem:[%s0 + $0x30] sm:$0xff]
  %v12 = vld [vmem:[%s0 + $0x40] sm:$0xff]
  %v13 = vld [vmem:[%s0 + $0x50] sm:$0xff]
  %v14 = vld [vmem:[%s0 + $0x60] sm:$0xff]
  %v15 = vld [vmem:[%s0 + $0x70] sm:$0xff]
  %s16 = scalar_lea.vmem %s0, 8
  %v17 = vld [vmem:[%s16] sm:$0xff]
  %v18 = vld [vmem:[%s16 + $0x10] sm:$0xff]
  %v19 = vld [vmem:[%s16 + $0x20] sm:$0xff]
  %v20 = vld [vmem:[%s16 + $0x30] sm:$0xff]
  %v21 = vld [vmem:[%s16 + $0x40] sm:$0xff]
  %v22 = vld [vmem:[%s16 + $0x50] sm:$0xff]
  %v23 = vld [vmem:[%s16 + $0x60] sm:$0xff]
  %v24 = vld [vmem:[%s16 + $0x70] sm:$0xff]
  %v25 = vmax.f32 %v8, %v17
  %v26 = vmax.f32 %v9, %v18
  %v27 = vmax.f32 %v10, %v19
  %v28 = vmax.f32 %v11, %v20
  %v29 = vmax.f32 %v12, %v21
  %v30 = vmax.f32 %v13, %v22
  %v31 = vmax.f32 %v14, %v23
  %v32 = vmax.f32 %v15, %v24
  %v41 = vrot.slane %v25, 4
  %v42 = vrot.slane %v26, 4
  %v43 = vrot.slane %v27, 4
  %v44 = vrot.slane %v28, 4
  %v45 = vrot.slane %v29, 4
  %v46 = vrot.slane %v30, 4
  %v47 = vrot.slane %v31, 4
  %v48 = vrot.slane %v32, 4
  %v57 = vmax.f32 %v25, %v41
  %v58 = vmax.f32 %v26, %v42
  %v59 = vmax.f32 %v27, %v43
  %v60 = vmax.f32 %v28, %v44
  %v61 = vmax.f32 %v29, %v45
  %v62 = vmax.f32 %v30, %v46
  %v63 = vmax.f32 %v31, %v47
  %v64 = vmax.f32 %v32, %v48
  %65 = vst [vmem:[%s1] sm:$0xf] %v57
  %66 = vst [vmem:[%s1 + $0x4] sm:$0xf] %v58
  %67 = vst [vmem:[%s1 + $0x8] sm:$0xf] %v59
  %68 = vst [vmem:[%s1 + $0xc] sm:$0xf] %v60
  %69 = vst [vmem:[%s1 + $0x10] sm:$0xf] %v61
  %70 = vst [vmem:[%s1 + $0x14] sm:$0xf] %v62
  %71 = vst [vmem:[%s1 + $0x18] sm:$0xf] %v63
  %72 = vst [vmem:[%s1 + $0x1c] sm:$0xf] %v64
  // Predicated region
  $region6: #{mnistcnn_forward.8} parent=0 // pred_check
    _
  $region7: #{mnistcnn_forward.8} parent=0 // pred_check_branch
    %74 = sbr.rel (0) target = $region9
  $region8: #{mnistcnn_forward.8} parent=0 // pred_region
    _
  $region9: #{mnistcnn_forward.8} parent=0 // pred_fallthru
    _
  // Predicated region
  $region10: #{mnistcnn_forward.8} parent=0 // pred_check
    _
  $region11: #{mnistcnn_forward.8} parent=0 // pred_check_branch
    %76 = sbr.rel (0) target = $region13
  $region12: #{mnistcnn_forward.8} parent=0 // pred_region
    _
  $region13: #{mnistcnn_forward.8} parent=0 // pred_fallthru
    _

// kernel: mnistcnn_forward.7
$region0: #{mnistcnn_forward.7}
  #allocation0 [shape = 'u32[]', space=smem, size = 0x4, offset = 0x4, fixed_abs, tag = 'smem constant byte address 0x4 - core index']
  #allocation1 [shape = 'u32[144,128]{1,0:T(1,128)}', space=vmem, size = 0x12000, scoped, tag = 'internal scratch']
  %s0 = inlined_call_operand.vmem [shape: bf16[128,800], index: 0, kind: input, shape index: {}]
  %s1 = inlined_call_operand.vmem [shape: bf16[800,128], index: 1, kind: input, shape index: {}]
  %s2 = inlined_call_operand.vmem [shape: f32[1,128], index: 2, kind: input, shape index: {}]
  %s3 = inlined_call_operand.vmem [shape: f32[128,128], index: 3, kind: output, shape index: {}]
  %s4 = sld [smem:[#allocation0]]
  $region22: #{mnistcnn_forward.7} parent=0
    _
  %s6 = ssub.s32 1, %s4
  %s7 = scalar_select 0, %s6, %s4
  // Predicated region
  $region2: #{mnistcnn_forward.7} parent=0 // pred_check
    _
  $region3: #{mnistcnn_forward.7} parent=0 // pred_check_branch
    %9 = sbr.rel (0) target = $region5
  $region4: #{mnistcnn_forward.7} parent=0 // pred_region
    _
  $region5: #{mnistcnn_forward.7} parent=0 // pred_fallthru
    _
  // Predicated region
  $region6: #{mnistcnn_forward.7} parent=0 // pred_check
    _
  $region7: #{mnistcnn_forward.7} parent=0 // pred_check_branch
    %11 = sbr.rel (0) target = $region9
  $region8: #{mnistcnn_forward.7} parent=0 // pred_region
    _
  $region9: #{mnistcnn_forward.7} parent=0 // pred_fallthru
    _
  // Predicated region
  $region10: #{mnistcnn_forward.7} parent=0 // pred_check
    _
  $region11: #{mnistcnn_forward.7} parent=0 // pred_check_branch
    %13 = sbr.rel (0) target = $region13
  $region12: #{mnistcnn_forward.7} parent=0 // pred_region
    _
  $region13: #{mnistcnn_forward.7} parent=0 // pred_fallthru
    _
  %v15 = vld [vmem:[%s0] sm:$0xff]
  %v16 = vld [vmem:[%s0 + $0x8] sm:$0xff]
  %v17 = vld [vmem:[%s0 + $0x10] sm:$0xff]
  %v18 = vld [vmem:[%s0 + $0x18] sm:$0xf]
  %v19 = vld [vmem:[%s0 + $0x1c] sm:$0xff]
  %v20 = vld [vmem:[%s0 + $0x24] sm:$0xff]
  %v21 = vld [vmem:[%s0 + $0x2c] sm:$0xff]
  %v22 = vld [vmem:[%s0 + $0x34] sm:$0xf]
  %v23 = vld [vmem:[%s0 + $0x38] sm:$0xff]
  %v24 = vld [vmem:[%s0 + $0x40] sm:$0xff]
  %v25 = vld [vmem:[%s0 + $0x48] sm:$0xff]
  %v26 = vld [vmem:[%s0 + $0x50] sm:$0xf]
  %v27 = vld [vmem:[%s0 + $0x54] sm:$0xff]
  %v28 = vld [vmem:[%s0 + $0x5c] sm:$0xff]
  %v29 = vld [vmem:[%s0 + $0x64] sm:$0xff]
  %v30 = vld [vmem:[%s0 + $0x6c] sm:$0xf]
  %v31 = vld [vmem:[%s0 + $0x70] sm:$0xff]
  %v32 = vld [vmem:[%s0 + $0x78] sm:$0xff]
  %v33 = vld [vmem:[%s0 + $0x80] sm:$0xff]
  %v34 = vld [vmem:[%s0 + $0x88] sm:$0xf]
  %v35 = vld [vmem:[%s0 + $0x8c] sm:$0xff]
  %v36 = vld [vmem:[%s0 + $0x94] sm:$0xff]
  %v37 = vld [vmem:[%s0 + $0x9c] sm:$0xff]
  %v38 = vld [vmem:[%s0 + $0xa4] sm:$0xf]
  %v39 = vld [vmem:[%s0 + $0xa8] sm:$0xff]
  %v40 = vld [vmem:[%s0 + $0xb0] sm:$0xff]
  %v41 = vld [vmem:[%s0 + $0xb8] sm:$0xff]
  %v42 = vld [vmem:[%s0 + $0xc0] sm:$0xf]
  %v43 = vld [vmem:[%s0 + $0xc4] sm:$0xff]
  %v44 = vld [vmem:[%s0 + $0xcc] sm:$0xff]
  %v45 = vld [vmem:[%s0 + $0xd4] sm:$0xff]
  %v46 = vld [vmem:[%s0 + $0xdc] sm:$0xf]
  %v47 = vld [vmem:[%s0 + $0xe0] sm:$0xff]
  %v48 = vld [vmem:[%s0 + $0xe8] sm:$0xff]
  %v49 = vld [vmem:[%s0 + $0xf0] sm:$0xff]
  %v50 = vld [vmem:[%s0 + $0xf8] sm:$0xf]
  %v51 = vld [vmem:[%s0 + $0xfc] sm:$0xff]
  %v52 = vld [vmem:[%s0 + $0x104] sm:$0xff]
  %v53 = vld [vmem:[%s0 + $0x10c] sm:$0xff]
  %v54 = vld [vmem:[%s0 + $0x114] sm:$0xf]
  %v55 = vld [vmem:[%s0 + $0x118] sm:$0xff]
  %v56 = vld [vmem:[%s0 + $0x120] sm:$0xff]
  %v57 = vld [vmem:[%s0 + $0x128] sm:$0xff]
  %v58 = vld [vmem:[%s0 + $0x130] sm:$0xf]
  %v59 = vld [vmem:[%s0 + $0x134] sm:$0xff]
  %v60 = vld [vmem:[%s0 + $0x13c] sm:$0xff]
  %v61 = vld [vmem:[%s0 + $0x144] sm:$0xff]
  %v62 = vld [vmem:[%s0 + $0x14c] sm:$0xf]
  %v63 = vld [vmem:[%s0 + $0x150] sm:$0xff]
  %v64 = vld [vmem:[%s0 + $0x158] sm:$0xff]
  %v65 = vld [vmem:[%s0 + $0x160] sm:$0xff]
  %v66 = vld [vmem:[%s0 + $0x168] sm:$0xf]
  %v67 = vld [vmem:[%s0 + $0x16c] sm:$0xff]
  %v68 = vld [vmem:[%s0 + $0x174] sm:$0xff]
  %v69 = vld [vmem:[%s0 + $0x17c] sm:$0xff]
  %v70 = vld [vmem:[%s0 + $0x184] sm:$0xf]
  %v71 = vld [vmem:[%s0 + $0x188] sm:$0xff]
  %v72 = vld [vmem:[%s0 + $0x190] sm:$0xff]
  %v73 = vld [vmem:[%s0 + $0x198] sm:$0xff]
  %v74 = vld [vmem:[%s0 + $0x1a0] sm:$0xf]
  %v75 = vld [vmem:[%s0 + $0x1a4] sm:$0xff]
  %v76 = vld [vmem:[%s0 + $0x1ac] sm:$0xff]
  %v77 = vld [vmem:[%s0 + $0x1b4] sm:$0xff]
  %v78 = vld [vmem:[%s0 + $0x1bc] sm:$0xf]
  %v79 = vld [vmem:[%s1] sm:$0xf]
  %v80 = vld [vmem:[%s1 + $0x4] sm:$0xf]
  %v81 = vld [vmem:[%s1 + $0x8] sm:$0xf]
  %v82 = vld [vmem:[%s1 + $0xc] sm:$0xf]
  %v83 = vld [vmem:[%s1 + $0x10] sm:$0xf]
  %v84 = vld [vmem:[%s1 + $0x14] sm:$0xf]
  %v85 = vld [vmem:[%s1 + $0x18] sm:$0xf]
  %v86 = vld [vmem:[%s1 + $0x1c] sm:$0xf]
  %v87 = vld [vmem:[%s1 + $0x20] sm:$0xf]
  %v88 = vld [vmem:[%s1 + $0x24] sm:$0xf]
  %v89 = vld [vmem:[%s1 + $0x28] sm:$0xf]
  %v90 = vld [vmem:[%s1 + $0x2c] sm:$0xf]
  %v91 = vld [vmem:[%s1 + $0x30] sm:$0xf]
  %v92 = vld [vmem:[%s1 + $0x34] sm:$0xf]
  %v93 = vld [vmem:[%s1 + $0x38] sm:$0xf]
  %v94 = vld [vmem:[%s1 + $0x3c] sm:$0xf]
  %v95 = vld [vmem:[%s1 + $0x40] sm:$0xf]
  %v96 = vld [vmem:[%s1 + $0x44] sm:$0xf]
  %v97 = vld [vmem:[%s1 + $0x48] sm:$0xf]
  %v98 = vld [vmem:[%s1 + $0x4c] sm:$0xf]
  %v99 = vld [vmem:[%s1 + $0x50] sm:$0xf]
  %v100 = vld [vmem:[%s1 + $0x54] sm:$0xf]
  %v101 = vld [vmem:[%s1 + $0x58] sm:$0xf]
  %v102 = vld [vmem:[%s1 + $0x5c] sm:$0xf]
  %v103 = vld [vmem:[%s1 + $0x60] sm:$0xf]
  %v104 = vld [vmem:[%s1 + $0x64] sm:$0xf]
  %v105 = vld [vmem:[%s1 + $0x68] sm:$0xf]
  %v106 = vld [vmem:[%s1 + $0x6c] sm:$0xf]
  %v107 = vld [vmem:[%s1 + $0x70] sm:$0xf]
  %v108 = vld [vmem:[%s1 + $0x74] sm:$0xf]
  %v109 = vld [vmem:[%s1 + $0x78] sm:$0xf]
  %v110 = vld [vmem:[%s1 + $0x7c] sm:$0xf]
  %v111 = vld [vmem:[%s1 + $0x80] sm:$0xf]
  %v112 = vld [vmem:[%s1 + $0x84] sm:$0xf]
  %v113 = vld [vmem:[%s1 + $0x88] sm:$0xf]
  %v114 = vld [vmem:[%s1 + $0x8c] sm:$0xf]
  %v115 = vld [vmem:[%s1 + $0x90] sm:$0xf]
  %v116 = vld [vmem:[%s1 + $0x94] sm:$0xf]
  %v117 = vld [vmem:[%s1 + $0x98] sm:$0xf]
  %v118 = vld [vmem:[%s1 + $0x9c] sm:$0xf]
  %v119 = vld [vmem:[%s1 + $0xa0] sm:$0xf]
  %v120 = vld [vmem:[%s1 + $0xa4] sm:$0xf]
  %v121 = vld [vmem:[%s1 + $0xa8] sm:$0xf]
  %v122 = vld [vmem:[%s1 + $0xac] sm:$0xf]
  %v123 = vld [vmem:[%s1 + $0xb0] sm:$0xf]
  %v124 = vld [vmem:[%s1 + $0xb4] sm:$0xf]
  %v125 = vld [vmem:[%s1 + $0xb8] sm:$0xf]
  %v126 = vld [vmem:[%s1 + $0xbc] sm:$0xf]
  %v127 = vld [vmem:[%s1 + $0xc0] sm:$0xf]
  %v128 = vld [vmem:[%s1 + $0xc4] sm:$0xf]
  %v129 = vld [vmem:[%s1 + $0xc8] sm:$0xf]
  %v130 = vld [vmem:[%s1 + $0xcc] sm:$0xf]
  %v131 = vld [vmem:[%s1 + $0xd0] sm:$0xf]
  %v132 = vld [vmem:[%s1 + $0xd4] sm:$0xf]
  %v133 = vld [vmem:[%s1 + $0xd8] sm:$0xf]
  %v134 = vld [vmem:[%s1 + $0xdc] sm:$0xf]
  %v135 = vld [vmem:[%s1 + $0xe0] sm:$0xf]
  %v136 = vld [vmem:[%s1 + $0xe4] sm:$0xf]
  %v137 = vld [vmem:[%s1 + $0xe8] sm:$0xf]
  %v138 = vld [vmem:[%s1 + $0xec] sm:$0xf]
  %v139 = vld [vmem:[%s1 + $0xf0] sm:$0xf]
  %v140 = vld [vmem:[%s1 + $0xf4] sm:$0xf]
  %v141 = vld [vmem:[%s1 + $0xf8] sm:$0xf]
  %v142 = vld [vmem:[%s1 + $0xfc] sm:$0xf]
  %v143 = vld [vmem:[%s1 + $0x100] sm:$0xf]
  %v144 = vld [vmem:[%s1 + $0x104] sm:$0xf]
  %v145 = vld [vmem:[%s1 + $0x108] sm:$0xf]
  %v146 = vld [vmem:[%s1 + $0x10c] sm:$0xf]
  %v147 = vld [vmem:[%s1 + $0x110] sm:$0xf]
  %v148 = vld [vmem:[%s1 + $0x114] sm:$0xf]
  %v149 = vld [vmem:[%s1 + $0x118] sm:$0xf]
  %v150 = vld [vmem:[%s1 + $0x11c] sm:$0xf]
  %v151 = vld [vmem:[%s1 + $0x120] sm:$0xf]
  %v152 = vld [vmem:[%s1 + $0x124] sm:$0xf]
  %v153 = vld [vmem:[%s1 + $0x128] sm:$0xf]
  %v154 = vld [vmem:[%s1 + $0x12c] sm:$0xf]
  %v155 = vld [vmem:[%s1 + $0x130] sm:$0xf]
  %v156 = vld [vmem:[%s1 + $0x134] sm:$0xf]
  %v157 = vld [vmem:[%s1 + $0x138] sm:$0xf]
  %v158 = vld [vmem:[%s1 + $0x13c] sm:$0xf]
  %v159 = vld [vmem:[%s1 + $0x140] sm:$0xf]
  %v160 = vld [vmem:[%s1 + $0x144] sm:$0xf]
  %v161 = vld [vmem:[%s1 + $0x148] sm:$0xf]
  %v162 = vld [vmem:[%s1 + $0x14c] sm:$0xf]
  %v163 = vld [vmem:[%s1 + $0x150] sm:$0xf]
  %v164 = vld [vmem:[%s1 + $0x154] sm:$0xf]
  %v165 = vld [vmem:[%s1 + $0x158] sm:$0xf]
  %v166 = vld [vmem:[%s1 + $0x15c] sm:$0xf]
  %v167 = vld [vmem:[%s1 + $0x160] sm:$0xf]
  %v168 = vld [vmem:[%s1 + $0x164] sm:$0xf]
  %v169 = vld [vmem:[%s1 + $0x168] sm:$0xf]
  %v170 = vld [vmem:[%s1 + $0x16c] sm:$0xf]
  %v171 = vld [vmem:[%s1 + $0x170] sm:$0xf]
  %v172 = vld [vmem:[%s1 + $0x174] sm:$0xf]
  %v173 = vld [vmem:[%s1 + $0x178] sm:$0xf]
  %v174 = vld [vmem:[%s1 + $0x17c] sm:$0xf]
  %v175 = vld [vmem:[%s1 + $0x180] sm:$0xf]
  %v176 = vld [vmem:[%s1 + $0x184] sm:$0xf]
  %v177 = vld [vmem:[%s1 + $0x188] sm:$0xf]
  %v178 = vld [vmem:[%s1 + $0x18c] sm:$0xf]
  %v179 = vld [vmem:[%s2] sm:$0x1]
  %v181 = vlaneseq
  %v182 = vshrl.u32 %v181, 7
  %v183 = vsub.s32 0, %v182
  %v184 = vrot.slane %v179, %v183
  %v250 = vunpack.c.l.b16 %v15
  %v251 = vunpack.c.h.b16 %v15
  %v252 = vunpack.c.l.b16 %v16
  %v253 = vunpack.c.h.b16 %v16
  %v254 = vunpack.c.l.b16 %v17
  %v255 = vunpack.c.h.b16 %v17
  %v256 = vunpack.c.l.b16 %v18
  %v257 = vunpack.c.l.b16 %v19
  %v258 = vunpack.c.h.b16 %v19
  %v259 = vunpack.c.l.b16 %v20
  %v260 = vunpack.c.h.b16 %v20
  %v261 = vunpack.c.l.b16 %v21
  %v262 = vunpack.c.h.b16 %v21
  %v263 = vunpack.c.l.b16 %v22
  %v264 = vunpack.c.l.b16 %v23
  %v265 = vunpack.c.h.b16 %v23
  %v266 = vunpack.c.l.b16 %v24
  %v267 = vunpack.c.h.b16 %v24
  %v268 = vunpack.c.l.b16 %v25
  %v269 = vunpack.c.h.b16 %v25
  %v270 = vunpack.c.l.b16 %v26
  %v271 = vunpack.c.l.b16 %v27
  %v272 = vunpack.c.h.b16 %v27
  %v273 = vunpack.c.l.b16 %v28
  %v274 = vunpack.c.h.b16 %v28
  %v275 = vunpack.c.l.b16 %v29
  %v276 = vunpack.c.h.b16 %v29
  %v277 = vunpack.c.l.b16 %v30
  %v278 = vunpack.c.l.b16 %v31
  %v279 = vunpack.c.h.b16 %v31
  %v280 = vunpack.c.l.b16 %v32
  %v281 = vunpack.c.h.b16 %v32
  %v282 = vunpack.c.l.b16 %v33
  %v283 = vunpack.c.h.b16 %v33
  %v284 = vunpack.c.l.b16 %v34
  %v285 = vunpack.c.l.b16 %v35
  %v286 = vunpack.c.h.b16 %v35
  %v287 = vunpack.c.l.b16 %v36
  %v288 = vunpack.c.h.b16 %v36
  %v289 = vunpack.c.l.b16 %v37
  %v290 = vunpack.c.h.b16 %v37
  %v291 = vunpack.c.l.b16 %v38
  %v292 = vunpack.c.l.b16 %v39
  %v293 = vunpack.c.h.b16 %v39
  %v294 = vunpack.c.l.b16 %v40
  %v295 = vunpack.c.h.b16 %v40
  %v296 = vunpack.c.l.b16 %v41
  %v297 = vunpack.c.h.b16 %v41
  %v298 = vunpack.c.l.b16 %v42
  %v299 = vunpack.c.l.b16 %v43
  %v300 = vunpack.c.h.b16 %v43
  %v301 = vunpack.c.l.b16 %v44
  %v302 = vunpack.c.h.b16 %v44
  %v303 = vunpack.c.l.b16 %v45
  %v304 = vunpack.c.h.b16 %v45
  %v305 = vunpack.c.l.b16 %v46
  %v306 = vunpack.c.l.b16 %v47
  %v307 = vunpack.c.h.b16 %v47
  %v308 = vunpack.c.l.b16 %v48
  %v309 = vunpack.c.h.b16 %v48
  %v310 = vunpack.c.l.b16 %v49
  %v311 = vunpack.c.h.b16 %v49
  %v312 = vunpack.c.l.b16 %v50
  %v313 = vunpack.c.l.b16 %v51
  %v314 = vunpack.c.h.b16 %v51
  %v315 = vunpack.c.l.b16 %v52
  %v316 = vunpack.c.h.b16 %v52
  %v317 = vunpack.c.l.b16 %v53
  %v318 = vunpack.c.h.b16 %v53
  %v319 = vunpack.c.l.b16 %v54
  %v320 = vunpack.c.l.b16 %v55
  %v321 = vunpack.c.h.b16 %v55
  %v322 = vunpack.c.l.b16 %v56
  %v323 = vunpack.c.h.b16 %v56
  %v324 = vunpack.c.l.b16 %v57
  %v325 = vunpack.c.h.b16 %v57
  %v326 = vunpack.c.l.b16 %v58
  %v327 = vunpack.c.l.b16 %v59
  %v328 = vunpack.c.h.b16 %v59
  %v329 = vunpack.c.l.b16 %v60
  %v330 = vunpack.c.h.b16 %v60
  %v331 = vunpack.c.l.b16 %v61
  %v332 = vunpack.c.h.b16 %v61
  %v333 = vunpack.c.l.b16 %v62
  %v334 = vunpack.c.l.b16 %v63
  %v335 = vunpack.c.h.b16 %v63
  %v336 = vunpack.c.l.b16 %v64
  %v337 = vunpack.c.h.b16 %v64
  %v338 = vunpack.c.l.b16 %v65
  %v339 = vunpack.c.h.b16 %v65
  %v340 = vunpack.c.l.b16 %v66
  %v341 = vunpack.c.l.b16 %v67
  %v342 = vunpack.c.h.b16 %v67
  %v343 = vunpack.c.l.b16 %v68
  %v344 = vunpack.c.h.b16 %v68
  %v345 = vunpack.c.l.b16 %v69
  %v346 = vunpack.c.h.b16 %v69
  %v347 = vunpack.c.l.b16 %v70
  %v348 = vunpack.c.l.b16 %v71
  %v349 = vunpack.c.h.b16 %v71
  %v350 = vunpack.c.l.b16 %v72
  %v351 = vunpack.c.h.b16 %v72
  %v352 = vunpack.c.l.b16 %v73
  %v353 = vunpack.c.h.b16 %v73
  %v354 = vunpack.c.l.b16 %v74
  %v355 = vunpack.c.l.b16 %v75
  %v356 = vunpack.c.h.b16 %v75
  %v357 = vunpack.c.l.b16 %v76
  %v358 = vunpack.c.h.b16 %v76
  %v359 = vunpack.c.l.b16 %v77
  %v360 = vunpack.c.h.b16 %v77
  %v361 = vunpack.c.l.b16 %v78
  %v362 = vpack.c.b16 %v257, %v250
  %v363 = vpack.c.b16 %v258, %v251
  %v364 = vpack.c.b16 %v259, %v252
  %v365 = vpack.c.b16 %v260, %v253
  %v366 = vpack.c.b16 %v261, %v254
  %v367 = vpack.c.b16 %v262, %v255
  %v368 = vpack.c.b16 %v263, %v256
  %v369 = vpack.c.b16 %v271, %v264
  %v370 = vpack.c.b16 %v272, %v265
  %v371 = vpack.c.b16 %v273, %v266
  %v372 = vpack.c.b16 %v274, %v267
  %v373 = vpack.c.b16 %v275, %v268
  %v374 = vpack.c.b16 %v276, %v269
  %v375 = vpack.c.b16 %v277, %v270
  %v376 = vpack.c.b16 %v285, %v278
  %v377 = vpack.c.b16 %v286, %v279
  %v378 = vpack.c.b16 %v287, %v280
  %v379 = vpack.c.b16 %v288, %v281
  %v380 = vpack.c.b16 %v289, %v282
  %v381 = vpack.c.b16 %v290, %v283
  %v382 = vpack.c.b16 %v291, %v284
  %v383 = vpack.c.b16 %v299, %v292
  %v384 = vpack.c.b16 %v300, %v293
  %v385 = vpack.c.b16 %v301, %v294
  %v386 = vpack.c.b16 %v302, %v295
  %v387 = vpack.c.b16 %v303, %v296
  %v388 = vpack.c.b16 %v304, %v297
  %v389 = vpack.c.b16 %v305, %v298
  %v390 = vpack.c.b16 %v313, %v306
  %v391 = vpack.c.b16 %v314, %v307
  %v392 = vpack.c.b16 %v315, %v308
  %v393 = vpack.c.b16 %v316, %v309
  %v394 = vpack.c.b16 %v317, %v310
  %v395 = vpack.c.b16 %v318, %v311
  %v396 = vpack.c.b16 %v319, %v312
  %v397 = vpack.c.b16 %v327, %v320
  %v398 = vpack.c.b16 %v328, %v321
  %v399 = vpack.c.b16 %v329, %v322
  %v400 = vpack.c.b16 %v330, %v323
  %v401 = vpack.c.b16 %v331, %v324
  %v402 = vpack.c.b16 %v332, %v325
  %v403 = vpack.c.b16 %v333, %v326
  %v404 = vpack.c.b16 %v341, %v334
  %v405 = vpack.c.b16 %v342, %v335
  %v406 = vpack.c.b16 %v343, %v336
  %v407 = vpack.c.b16 %v344, %v337
  %v408 = vpack.c.b16 %v345, %v338
  %v409 = vpack.c.b16 %v346, %v339
  %v410 = vpack.c.b16 %v347, %v340
  %v411 = vpack.c.b16 %v355, %v348
  %v412 = vpack.c.b16 %v356, %v349
  %v413 = vpack.c.b16 %v357, %v350
  %v414 = vpack.c.b16 %v358, %v351
  %v415 = vpack.c.b16 %v359, %v352
  %v416 = vpack.c.b16 %v360, %v353
  %v417 = vpack.c.b16 %v361, %v354
  %v566 = vunpack.c.l.b16 %v79
  %v567 = vunpack.c.l.b16 %v80
  %v568 = vunpack.c.l.b16 %v81
  %v569 = vunpack.c.l.b16 %v82
  %v570 = vunpack.c.l.b16 %v83
  %v571 = vunpack.c.l.b16 %v84
  %v572 = vunpack.c.l.b16 %v85
  %v573 = vunpack.c.l.b16 %v86
  %v574 = vunpack.c.l.b16 %v87
  %v575 = vunpack.c.l.b16 %v88
  %v576 = vunpack.c.l.b16 %v89
  %v577 = vunpack.c.l.b16 %v90
  %v578 = vunpack.c.l.b16 %v91
  %v579 = vunpack.c.l.b16 %v92
  %v580 = vunpack.c.l.b16 %v93
  %v581 = vunpack.c.l.b16 %v94
  %v582 = vunpack.c.l.b16 %v95
  %v583 = vunpack.c.l.b16 %v96
  %v584 = vunpack.c.l.b16 %v97
  %v585 = vunpack.c.l.b16 %v98
  %v586 = vunpack.c.l.b16 %v99
  %v587 = vunpack.c.l.b16 %v100
  %v588 = vunpack.c.l.b16 %v101
  %v589 = vunpack.c.l.b16 %v102
  %v590 = vunpack.c.l.b16 %v103
  %v591 = vunpack.c.l.b16 %v104
  %v592 = vunpack.c.l.b16 %v105
  %v593 = vunpack.c.l.b16 %v106
  %v594 = vunpack.c.l.b16 %v107
  %v595 = vunpack.c.l.b16 %v108
  %v596 = vunpack.c.l.b16 %v109
  %v597 = vunpack.c.l.b16 %v110
  %v598 = vunpack.c.l.b16 %v111
  %v599 = vunpack.c.l.b16 %v112
  %v600 = vunpack.c.l.b16 %v113
  %v601 = vunpack.c.l.b16 %v114
  %v602 = vunpack.c.l.b16 %v115
  %v603 = vunpack.c.l.b16 %v116
  %v604 = vunpack.c.l.b16 %v117
  %v605 = vunpack.c.l.b16 %v118
  %v606 = vunpack.c.l.b16 %v119
  %v607 = vunpack.c.l.b16 %v120
  %v608 = vunpack.c.l.b16 %v121
  %v609 = vunpack.c.l.b16 %v122
  %v610 = vunpack.c.l.b16 %v123
  %v611 = vunpack.c.l.b16 %v124
  %v612 = vunpack.c.l.b16 %v125
  %v613 = vunpack.c.l.b16 %v126
  %v614 = vunpack.c.l.b16 %v127
  %v615 = vunpack.c.l.b16 %v128
  %v616 = vunpack.c.l.b16 %v129
  %v617 = vunpack.c.l.b16 %v130
  %v618 = vunpack.c.l.b16 %v131
  %v619 = vunpack.c.l.b16 %v132
  %v620 = vunpack.c.l.b16 %v133
  %v621 = vunpack.c.l.b16 %v134
  %v622 = vunpack.c.l.b16 %v135
  %v623 = vunpack.c.l.b16 %v136
  %v624 = vunpack.c.l.b16 %v137
  %v625 = vunpack.c.l.b16 %v138
  %v626 = vunpack.c.l.b16 %v139
  %v627 = vunpack.c.l.b16 %v140
  %v628 = vunpack.c.l.b16 %v141
  %v629 = vunpack.c.l.b16 %v142
  %v630 = vunpack.c.l.b16 %v143
  %v631 = vunpack.c.l.b16 %v144
  %v632 = vunpack.c.l.b16 %v145
  %v633 = vunpack.c.l.b16 %v146
  %v634 = vunpack.c.l.b16 %v147
  %v635 = vunpack.c.l.b16 %v148
  %v636 = vunpack.c.l.b16 %v149
  %v637 = vunpack.c.l.b16 %v150
  %v638 = vunpack.c.l.b16 %v151
  %v639 = vunpack.c.l.b16 %v152
  %v640 = vunpack.c.l.b16 %v153
  %v641 = vunpack.c.l.b16 %v154
  %v642 = vunpack.c.l.b16 %v155
  %v643 = vunpack.c.l.b16 %v156
  %v644 = vunpack.c.l.b16 %v157
  %v645 = vunpack.c.l.b16 %v158
  %v646 = vunpack.c.l.b16 %v159
  %v647 = vunpack.c.l.b16 %v160
  %v648 = vunpack.c.l.b16 %v161
  %v649 = vunpack.c.l.b16 %v162
  %v650 = vunpack.c.l.b16 %v163
  %v651 = vunpack.c.l.b16 %v164
  %v652 = vunpack.c.l.b16 %v165
  %v653 = vunpack.c.l.b16 %v166
  %v654 = vunpack.c.l.b16 %v167
  %v655 = vunpack.c.l.b16 %v168
  %v656 = vunpack.c.l.b16 %v169
  %v657 = vunpack.c.l.b16 %v170
  %v658 = vunpack.c.l.b16 %v171
  %v659 = vunpack.c.l.b16 %v172
  %v660 = vunpack.c.l.b16 %v173
  %v661 = vunpack.c.l.b16 %v174
  %v662 = vunpack.c.l.b16 %v175
  %v663 = vunpack.c.l.b16 %v176
  %v664 = vunpack.c.l.b16 %v177
  %v665 = vunpack.c.l.b16 %v178
  %v666 = vpack.c.b16 %v567, %v566
  %v667 = vpack.c.b16 %v569, %v568
  %v668 = vpack.c.b16 %v571, %v570
  %v669 = vpack.c.b16 %v573, %v572
  %v670 = vpack.c.b16 %v575, %v574
  %v671 = vpack.c.b16 %v577, %v576
  %v672 = vpack.c.b16 %v579, %v578
  %v673 = vpack.c.b16 %v581, %v580
  %v674 = vpack.c.b16 %v583, %v582
  %v675 = vpack.c.b16 %v585, %v584
  %v676 = vpack.c.b16 %v587, %v586
  %v677 = vpack.c.b16 %v589, %v588
  %v678 = vpack.c.b16 %v591, %v590
  %v679 = vpack.c.b16 %v593, %v592
  %v680 = vpack.c.b16 %v595, %v594
  %v681 = vpack.c.b16 %v597, %v596
  %v682 = vpack.c.b16 %v599, %v598
  %v683 = vpack.c.b16 %v601, %v600
  %v684 = vpack.c.b16 %v603, %v602
  %v685 = vpack.c.b16 %v605, %v604
  %v686 = vpack.c.b16 %v607, %v606
  %v687 = vpack.c.b16 %v609, %v608
  %v688 = vpack.c.b16 %v611, %v610
  %v689 = vpack.c.b16 %v613, %v612
  %v690 = vpack.c.b16 %v615, %v614
  %v691 = vpack.c.b16 %v617, %v616
  %v692 = vpack.c.b16 %v619, %v618
  %v693 = vpack.c.b16 %v621, %v620
  %v694 = vpack.c.b16 %v623, %v622
  %v695 = vpack.c.b16 %v625, %v624
  %v696 = vpack.c.b16 %v627, %v626
  %v697 = vpack.c.b16 %v629, %v628
  %v698 = vpack.c.b16 %v631, %v630
  %v699 = vpack.c.b16 %v633, %v632
  %v700 = vpack.c.b16 %v635, %v634
  %v701 = vpack.c.b16 %v637, %v636
  %v702 = vpack.c.b16 %v639, %v638
  %v703 = vpack.c.b16 %v641, %v640
  %v704 = vpack.c.b16 %v643, %v642
  %v705 = vpack.c.b16 %v645, %v644
  %v706 = vpack.c.b16 %v647, %v646
  %v707 = vpack.c.b16 %v649, %v648
  %v708 = vpack.c.b16 %v651, %v650
  %v709 = vpack.c.b16 %v653, %v652
  %v710 = vpack.c.b16 %v655, %v654
  %v711 = vpack.c.b16 %v657, %v656
  %v712 = vpack.c.b16 %v659, %v658
  %v713 = vpack.c.b16 %v661, %v660
  %v714 = vpack.c.b16 %v663, %v662
  %v715 = vpack.c.b16 %v665, %v664
  %vm766 = vcmask 261120
  %v768 = vsel %vm766, %v368, 0
  %v771 = vsel %vm766, %v375, 0
  %v774 = vsel %vm766, %v382, 0
  %v777 = vsel %vm766, %v389, 0
  %v780 = vsel %vm766, %v396, 0
  %v783 = vsel %vm766, %v403, 0
  %v786 = vsel %vm766, %v410, 0
  %v789 = vsel %vm766, %v417, 0
  %791 = vmatprep.subr.bf16.mxu0 0
  %792 = vmatpush1.bf16.msra.mxu0 %v666
  %793 = vmatprep.subr.bf16.mxu0 0
  %794 = vmatpush1.bf16.msra.mxu0 %v667
  %795 = vmatprep.subr.bf16.mxu0 0
  %796 = vmatpush1.bf16.msra.mxu0 %v668
  %797 = vmatprep.subr.bf16.mxu0 0
  %798 = vmatpush1.bf16.msra.mxu0 %v669
  %799 = vmatprep.subr.bf16.mxu0 0
  %800 = vmatpush1.bf16.msra.mxu0 %v670
  %801 = vmatprep.subr.bf16.mxu0 0
  %802 = vmatpush1.bf16.msra.mxu0 %v671
  %803 = vmatprep.subr.bf16.mxu0 0
  %804 = vmatpush1.bf16.msra.mxu0 %v672
  %805 = vmatprep.subr.bf16.mxu0 0
  %806 = vmatpush1.bf16.msra.mxu0 %v673
  %807 = vmatprep.subr.bf16.mxu0 0
  %808 = vmatpush1.bf16.msra.mxu0 %v674
  %809 = vmatprep.subr.bf16.mxu0 0
  %810 = vmatpush1.bf16.msra.mxu0 %v675
  %811 = vmatprep.subr.bf16.mxu0 0
  %812 = vmatpush1.bf16.msra.mxu0 %v676
  %813 = vmatprep.subr.bf16.mxu0 0
  %814 = vmatpush1.bf16.msra.mxu0 %v677
  %815 = vmatprep.subr.bf16.mxu0 0
  %816 = vmatpush1.bf16.msra.mxu0 %v678
  %817 = vmatprep.subr.bf16.mxu0 0
  %818 = vmatpush1.bf16.msra.mxu0 %v679
  %819 = vmatprep.subr.bf16.mxu0 0
  %820 = vmatpush1.bf16.msra.mxu0 %v680
  %821 = vmatprep.subr.bf16.mxu0 0
  %822 = vmatpush1.bf16.msra.mxu0 %v681
  %823 = vmatprep.mubr.bf16.mxu0 %v363
  %824 = vmatmul.mubr.bf16.gmra.mrb[0].mxu0 %v362
  %v825 = vpop.f32.mrb[0].mxu0
  %v826 = vadd.f32 %v184, %v825
  %v827 = vpop.f32.mrb[0].mxu0
  %v828 = vpop.f32.mrb[0].mxu0
  %v829 = vadd.f32 %v184, %v828
  %v830 = vpop.f32.mrb[0].mxu0
  %831 = vmatprep.mubr.bf16.mxu0 %v370
  %832 = vmatmul.mubr.bf16.gmra.mrb[0].mxu0 %v369
  %v833 = vpop.f32.mrb[0].mxu0
  %v834 = vadd.f32 %v184, %v833
  %v835 = vpop.f32.mrb[0].mxu0
  %v836 = vpop.f32.mrb[0].mxu0
  %v837 = vadd.f32 %v184, %v836
  %v838 = vpop.f32.mrb[0].mxu0
  %839 = vmatprep.mubr.bf16.mxu0 %v377
  %840 = vmatmul.mubr.bf16.gmra.mrb[0].mxu0 %v376
  %v841 = vpop.f32.mrb[0].mxu0
  %v842 = vadd.f32 %v184, %v841
  %v843 = vpop.f32.mrb[0].mxu0
  %v844 = vpop.f32.mrb[0].mxu0
  %v845 = vadd.f32 %v184, %v844
  %v846 = vpop.f32.mrb[0].mxu0
  %847 = vmatprep.mubr.bf16.mxu0 %v384
  %848 = vmatmul.mubr.bf16.gmra.mrb[0].mxu0 %v383
  %v849 = vpop.f32.mrb[0].mxu0
  %v850 = vadd.f32 %v184, %v849
  %v851 = vpop.f32.mrb[0].mxu0
  %v852 = vpop.f32.mrb[0].mxu0
  %v853 = vadd.f32 %v184, %v852
  %v854 = vpop.f32.mrb[0].mxu0
  %855 = vmatprep.mubr.bf16.mxu0 %v391
  %856 = vmatmul.mubr.bf16.gmra.mrb[0].mxu0 %v390
  %v857 = vpop.f32.mrb[0].mxu0
  %v858 = vadd.f32 %v184, %v857
  %v859 = vpop.f32.mrb[0].mxu0
  %v860 = vpop.f32.mrb[0].mxu0
  %v861 = vadd.f32 %v184, %v860
  %v862 = vpop.f32.mrb[0].mxu0
  %863 = vmatprep.mubr.bf16.mxu0 %v398
  %864 = vmatmul.mubr.bf16.gmra.mrb[0].mxu0 %v397
  %v865 = vpop.f32.mrb[0].mxu0
  %v866 = vadd.f32 %v184, %v865
  %v867 = vpop.f32.mrb[0].mxu0
  %v868 = vpop.f32.mrb[0].mxu0
  %v869 = vadd.f32 %v184, %v868
  %v870 = vpop.f32.mrb[0].mxu0
  %871 = vmatprep.mubr.bf16.mxu0 %v405
  %872 = vmatmul.mubr.bf16.gmra.mrb[0].mxu0 %v404
  %v873 = vpop.f32.mrb[0].mxu0
  %v874 = vadd.f32 %v184, %v873
  %v875 = vpop.f32.mrb[0].mxu0
  %v876 = vpop.f32.mrb[0].mxu0
  %v877 = vadd.f32 %v184, %v876
  %v878 = vpop.f32.mrb[0].mxu0
  %879 = vmatprep.mubr.bf16.mxu0 %v412
  %880 = vmatmul.mubr.bf16.gmra.mrb[0].mxu0 %v411
  %v881 = vpop.f32.mrb[0].mxu0
  %v882 = vadd.f32 %v184, %v881
  %v883 = vpop.f32.mrb[0].mxu0
  %v884 = vpop.f32.mrb[0].mxu0
  %v885 = vadd.f32 %v184, %v884
  %v886 = vpop.f32.mrb[0].mxu0
  %887 = vdwg.mxu0
  %888 = vmatprep.subr.bf16.mxu0 0
  %889 = vmatpush1.bf16.msra.mxu0 %v682
  %890 = vmatprep.subr.bf16.mxu0 0
  %891 = vmatpush1.bf16.msra.mxu0 %v683
  %892 = vmatprep.subr.bf16.mxu0 0
  %893 = vmatpush1.bf16.msra.mxu0 %v684
  %894 = vmatprep.subr.bf16.mxu0 0
  %895 = vmatpush1.bf16.msra.mxu0 %v685
  %896 = vmatprep.subr.bf16.mxu0 0
  %897 = vmatpush1.bf16.msra.mxu0 %v686
  %898 = vmatprep.subr.bf16.mxu0 0
  %899 = vmatpush1.bf16.msra.mxu0 %v687
  %900 = vmatprep.subr.bf16.mxu0 0
  %901 = vmatpush1.bf16.msra.mxu0 %v688
  %902 = vmatprep.subr.bf16.mxu0 0
  %903 = vmatpush1.bf16.msra.mxu0 %v689
  %904 = vmatprep.subr.bf16.mxu0 0
  %905 = vmatpush1.bf16.msra.mxu0 %v690
  %906 = vmatprep.subr.bf16.mxu0 0
  %907 = vmatpush1.bf16.msra.mxu0 %v691
  %908 = vmatprep.subr.bf16.mxu0 0
  %909 = vmatpush1.bf16.msra.mxu0 %v692
  %910 = vmatprep.subr.bf16.mxu0 0
  %911 = vmatpush1.bf16.msra.mxu0 %v693
  %912 = vmatprep.subr.bf16.mxu0 0
  %913 = vmatpush1.bf16.msra.mxu0 %v694
  %914 = vmatprep.subr.bf16.mxu0 0
  %915 = vmatpush1.bf16.msra.mxu0 %v695
  %916 = vmatprep.subr.bf16.mxu0 0
  %917 = vmatpush1.bf16.msra.mxu0 %v696
  %918 = vmatprep.subr.bf16.mxu0 0
  %919 = vmatpush1.bf16.msra.mxu0 %v697
  %920 = vmatprep.mubr.bf16.mxu0 %v365
  %921 = vmatmul.mubr.bf16.gmra.mrb[0].mxu0 %v364
  %v922 = vpop.f32.mrb[0].mxu0
  %v923 = vadd.f32 %v826, %v922
  %v924 = vpop.f32.mrb[0].mxu0
  %v925 = vpop.f32.mrb[0].mxu0
  %v926 = vadd.f32 %v829, %v925
  %v927 = vpop.f32.mrb[0].mxu0
  %928 = vmatprep.mubr.bf16.mxu0 %v372
  %929 = vmatmul.mubr.bf16.gmra.mrb[0].mxu0 %v371
  %v930 = vpop.f32.mrb[0].mxu0
  %v931 = vadd.f32 %v834, %v930
  %v932 = vpop.f32.mrb[0].mxu0
  %v933 = vpop.f32.mrb[0].mxu0
  %v934 = vadd.f32 %v837, %v933
  %v935 = vpop.f32.mrb[0].mxu0
  %936 = vmatprep.mubr.bf16.mxu0 %v379
  %937 = vmatmul.mubr.bf16.gmra.mrb[0].mxu0 %v378
  %v938 = vpop.f32.mrb[0].mxu0
  %v939 = vadd.f32 %v842, %v938
  %v940 = vpop.f32.mrb[0].mxu0
  %v941 = vpop.f32.mrb[0].mxu0
  %v942 = vadd.f32 %v845, %v941
  %v943 = vpop.f32.mrb[0].mxu0
  %944 = vmatprep.mubr.bf16.mxu0 %v386
  %945 = vmatmul.mubr.bf16.gmra.mrb[0].mxu0 %v385
  %v946 = vpop.f32.mrb[0].mxu0
  %v947 = vadd.f32 %v850, %v946
  %v948 = vpop.f32.mrb[0].mxu0
  %v949 = vpop.f32.mrb[0].mxu0
  %v950 = vadd.f32 %v853, %v949
  %v951 = vpop.f32.mrb[0].mxu0
  %952 = vmatprep.mubr.bf16.mxu0 %v393
  %953 = vmatmul.mubr.bf16.gmra.mrb[0].mxu0 %v392
  %v954 = vpop.f32.mrb[0].mxu0
  %v955 = vadd.f32 %v858, %v954
  %v956 = vpop.f32.mrb[0].mxu0
  %v957 = vpop.f32.mrb[0].mxu0
  %v958 = vadd.f32 %v861, %v957
  %v959 = vpop.f32.mrb[0].mxu0
  %960 = vmatprep.mubr.bf16.mxu0 %v400
  %961 = vmatmul.mubr.bf16.gmra.mrb[0].mxu0 %v399
  %v962 = vpop.f32.mrb[0].mxu0
  %v963 = vadd.f32 %v866, %v962
  %v964 = vpop.f32.mrb[0].mxu0
  %v965 = vpop.f32.mrb[0].mxu0
  %v966 = vadd.f32 %v869, %v965
  %v967 = vpop.f32.mrb[0].mxu0
  %968 = vmatprep.mubr.bf16.mxu0 %v407
  %969 = vmatmul.mubr.bf16.gmra.mrb[0].mxu0 %v406
  %v970 = vpop.f32.mrb[0].mxu0
  %v971 = vadd.f32 %v874, %v970
  %v972 = vpop.f32.mrb[0].mxu0
  %v973 = vpop.f32.mrb[0].mxu0
  %v974 = vadd.f32 %v877, %v973
  %v975 = vpop.f32.mrb[0].mxu0
  %976 = vmatprep.mubr.bf16.mxu0 %v414
  %977 = vmatmul.mubr.bf16.gmra.mrb[0].mxu0 %v413
  %v978 = vpop.f32.mrb[0].mxu0
  %v979 = vadd.f32 %v882, %v978
  %v980 = vpop.f32.mrb[0].mxu0
  %v981 = vpop.f32.mrb[0].mxu0
  %v982 = vadd.f32 %v885, %v981
  %v983 = vpop.f32.mrb[0].mxu0
  %984 = vdwg.mxu0
  %985 = vmatprep.subr.bf16.mxu0 0
  %986 = vmatpush1.bf16.msra.mxu0 %v698
  %987 = vmatprep.subr.bf16.mxu0 0
  %988 = vmatpush1.bf16.msra.mxu0 %v699
  %989 = vmatprep.subr.bf16.mxu0 0
  %990 = vmatpush1.bf16.msra.mxu0 %v700
  %991 = vmatprep.subr.bf16.mxu0 0
  %992 = vmatpush1.bf16.msra.mxu0 %v701
  %993 = vmatprep.subr.bf16.mxu0 0
  %994 = vmatpush1.bf16.msra.mxu0 %v702
  %995 = vmatprep.subr.bf16.mxu0 0
  %996 = vmatpush1.bf16.msra.mxu0 %v703
  %997 = vmatprep.subr.bf16.mxu0 0
  %998 = vmatpush1.bf16.msra.mxu0 %v704
  %999 = vmatprep.subr.bf16.mxu0 0
  %1000 = vmatpush1.bf16.msra.mxu0 %v705
  %1001 = vmatprep.subr.bf16.mxu0 0
  %1002 = vmatpush1.bf16.msra.mxu0 %v706
  %1003 = vmatprep.subr.bf16.mxu0 0
  %1004 = vmatpush1.bf16.msra.mxu0 %v707
  %1005 = vmatprep.subr.bf16.mxu0 0
  %1006 = vmatpush1.bf16.msra.mxu0 %v708
  %1007 = vmatprep.subr.bf16.mxu0 0
  %1008 = vmatpush1.bf16.msra.mxu0 %v709
  %1009 = vmatprep.subr.bf16.mxu0 0
  %1010 = vmatpush1.bf16.msra.mxu0 %v710
  %1011 = vmatprep.subr.bf16.mxu0 0
  %1012 = vmatpush1.bf16.msra.mxu0 %v711
  %1013 = vmatprep.subr.bf16.mxu0 0
  %1014 = vmatpush1.bf16.msra.mxu0 %v712
  %1015 = vmatprep.subr.bf16.mxu0 0
  %1016 = vmatpush1.bf16.msra.mxu0 %v713
  %1017 = vmatprep.mubr.bf16.mxu0 %v367
  %1018 = vmatmul.mubr.bf16.gmra.mrb[0].mxu0 %v366
  %v1019 = vpop.f32.mrb[0].mxu0
  %v1020 = vadd.f32 %v923, %v1019
  %v1021 = vpop.f32.mrb[0].mxu0
  %v1022 = vpop.f32.mrb[0].mxu0
  %v1023 = vadd.f32 %v926, %v1022
  %v1024 = vpop.f32.mrb[0].mxu0
  %1025 = vmatprep.mubr.bf16.mxu0 %v374
  %1026 = vmatmul.mubr.bf16.gmra.mrb[0].mxu0 %v373
  %v1027 = vpop.f32.mrb[0].mxu0
  %v1028 = vadd.f32 %v931, %v1027
  %v1029 = vpop.f32.mrb[0].mxu0
  %v1030 = vpop.f32.mrb[0].mxu0
  %v1031 = vadd.f32 %v934, %v1030
  %v1032 = vpop.f32.mrb[0].mxu0
  %1033 = vmatprep.mubr.bf16.mxu0 %v381
  %1034 = vmatmul.mubr.bf16.gmra.mrb[0].mxu0 %v380
  %v1035 = vpop.f32.mrb[0].mxu0
  %v1036 = vadd.f32 %v939, %v1035
  %v1037 = vpop.f32.mrb[0].mxu0
  %v1038 = vpop.f32.mrb[0].mxu0
  %v1039 = vadd.f32 %v942, %v1038
  %v1040 = vpop.f32.mrb[0].mxu0
  %1041 = vmatprep.mubr.bf16.mxu0 %v388
  %1042 = vmatmul.mubr.bf16.gmra.mrb[0].mxu0 %v387
  %v1043 = vpop.f32.mrb[0].mxu0
  %v1044 = vadd.f32 %v947, %v1043
  %v1045 = vpop.f32.mrb[0].mxu0
  %v1046 = vpop.f32.mrb[0].mxu0
  %v1047 = vadd.f32 %v950, %v1046
  %v1048 = vpop.f32.mrb[0].mxu0
  %1049 = vmatprep.mubr.bf16.mxu0 %v395
  %1050 = vmatmul.mubr.bf16.gmra.mrb[0].mxu0 %v394
  %v1051 = vpop.f32.mrb[0].mxu0
  %v1052 = vadd.f32 %v955, %v1051
  %v1053 = vpop.f32.mrb[0].mxu0
  %v1054 = vpop.f32.mrb[0].mxu0
  %v1055 = vadd.f32 %v958, %v1054
  %v1056 = vpop.f32.mrb[0].mxu0
  %1057 = vmatprep.mubr.bf16.mxu0 %v402
  %1058 = vmatmul.mubr.bf16.gmra.mrb[0].mxu0 %v401
  %v1059 = vpop.f32.mrb[0].mxu0
  %v1060 = vadd.f32 %v963, %v1059
  %v1061 = vpop.f32.mrb[0].mxu0
  %v1062 = vpop.f32.mrb[0].mxu0
  %v1063 = vadd.f32 %v966, %v1062
  %v1064 = vpop.f32.mrb[0].mxu0
  %1065 = vmatprep.mubr.bf16.mxu0 %v409
  %1066 = vmatmul.mubr.bf16.gmra.mrb[0].mxu0 %v408
  %v1067 = vpop.f32.mrb[0].mxu0
  %v1068 = vadd.f32 %v971, %v1067
  %v1069 = vpop.f32.mrb[0].mxu0
  %v1070 = vpop.f32.mrb[0].mxu0
  %v1071 = vadd.f32 %v974, %v1070
  %v1072 = vpop.f32.mrb[0].mxu0
  %1073 = vmatprep.mubr.bf16.mxu0 %v416
  %1074 = vmatmul.mubr.bf16.gmra.mrb[0].mxu0 %v415
  %v1075 = vpop.f32.mrb[0].mxu0
  %v1076 = vadd.f32 %v979, %v1075
  %v1077 = vpop.f32.mrb[0].mxu0
  %v1078 = vpop.f32.mrb[0].mxu0
  %v1079 = vadd.f32 %v982, %v1078
  %v1080 = vpop.f32.mrb[0].mxu0
  %1081 = vdwg.mxu0
  %1082 = vmatprep.subr.bf16.mxu0 0
  %1083 = vmatpush1.bf16.msra.mxu0 %v714
  %1084 = vmatprep.subr.bf16.mxu0 0
  %1085 = vmatpush1.bf16.msra.mxu0 %v715
  %1086 = vmatprep.subr.bf16.mxu0 0
  %1087 = vmatpush1.bf16.msra.mxu0 0
  %1088 = vmatprep.subr.bf16.mxu0 0
  %1089 = vmatpush1.bf16.msra.mxu0 0
  %1090 = vmatprep.subr.bf16.mxu0 0
  %1091 = vmatpush1.bf16.msra.mxu0 0
  %1092 = vmatprep.subr.bf16.mxu0 0
  %1093 = vmatpush1.bf16.msra.mxu0 0
  %1094 = vmatprep.subr.bf16.mxu0 0
  %1095 = vmatpush1.bf16.msra.mxu0 0
  %1096 = vmatprep.subr.bf16.mxu0 0
  %1097 = vmatpush1.bf16.msra.mxu0 0
  %1098 = vmatprep.subr.bf16.mxu0 0
  %1099 = vmatpush1.bf16.msra.mxu0 0
  %1100 = vmatprep.subr.bf16.mxu0 0
  %1101 = vmatpush1.bf16.msra.mxu0 0
  %1102 = vmatprep.subr.bf16.mxu0 0
  %1103 = vmatpush1.bf16.msra.mxu0 0
  %1104 = vmatprep.subr.bf16.mxu0 0
  %1105 = vmatpush1.bf16.msra.mxu0 0
  %1106 = vmatprep.subr.bf16.mxu0 0
  %1107 = vmatpush1.bf16.msra.mxu0 0
  %1108 = vmatprep.subr.bf16.mxu0 0
  %1109 = vmatpush1.bf16.msra.mxu0 0
  %1110 = vmatprep.subr.bf16.mxu0 0
  %1111 = vmatpush1.bf16.msra.mxu0 0
  %1112 = vmatprep.subr.bf16.mxu0 0
  %1113 = vmatpush1.bf16.msra.mxu0 0
  %1114 = vmatprep.mubr.bf16.mxu0 0
  %1115 = vmatmul.mubr.bf16.gmra.mrb[0].mxu0 %v768
  %v1116 = vpop.f32.mrb[0].mxu0
  %v1117 = vadd.f32 %v1020, %v1116
  %v1118 = vpop.f32.mrb[0].mxu0
  %v1119 = vpop.f32.mrb[0].mxu0
  %v1120 = vadd.f32 %v1023, %v1119
  %v1121 = vpop.f32.mrb[0].mxu0
  %1122 = vmatprep.mubr.bf16.mxu0 0
  %1123 = vmatmul.mubr.bf16.gmra.mrb[0].mxu0 %v771
  %v1124 = vpop.f32.mrb[0].mxu0
  %v1125 = vadd.f32 %v1028, %v1124
  %v1126 = vpop.f32.mrb[0].mxu0
  %v1127 = vpop.f32.mrb[0].mxu0
  %v1128 = vadd.f32 %v1031, %v1127
  %v1129 = vpop.f32.mrb[0].mxu0
  %1130 = vmatprep.mubr.bf16.mxu0 0
  %1131 = vmatmul.mubr.bf16.gmra.mrb[0].mxu0 %v774
  %v1132 = vpop.f32.mrb[0].mxu0
  %v1133 = vadd.f32 %v1036, %v1132
  %v1134 = vpop.f32.mrb[0].mxu0
  %v1135 = vpop.f32.mrb[0].mxu0
  %v1136 = vadd.f32 %v1039, %v1135
  %v1137 = vpop.f32.mrb[0].mxu0
  %1138 = vmatprep.mubr.bf16.mxu0 0
  %1139 = vmatmul.mubr.bf16.gmra.mrb[0].mxu0 %v777
  %v1140 = vpop.f32.mrb[0].mxu0
  %v1141 = vadd.f32 %v1044, %v1140
  %v1142 = vpop.f32.mrb[0].mxu0
  %v1143 = vpop.f32.mrb[0].mxu0
  %v1144 = vadd.f32 %v1047, %v1143
  %v1145 = vpop.f32.mrb[0].mxu0
  %1146 = vmatprep.mubr.bf16.mxu0 0
  %1147 = vmatmul.mubr.bf16.gmra.mrb[0].mxu0 %v780
  %v1148 = vpop.f32.mrb[0].mxu0
  %v1149 = vadd.f32 %v1052, %v1148
  %v1150 = vpop.f32.mrb[0].mxu0
  %v1151 = vpop.f32.mrb[0].mxu0
  %v1152 = vadd.f32 %v1055, %v1151
  %v1153 = vpop.f32.mrb[0].mxu0
  %1154 = vmatprep.mubr.bf16.mxu0 0
  %1155 = vmatmul.mubr.bf16.gmra.mrb[0].mxu0 %v783
  %v1156 = vpop.f32.mrb[0].mxu0
  %v1157 = vadd.f32 %v1060, %v1156
  %v1158 = vpop.f32.mrb[0].mxu0
  %v1159 = vpop.f32.mrb[0].mxu0
  %v1160 = vadd.f32 %v1063, %v1159
  %v1161 = vpop.f32.mrb[0].mxu0
  %1162 = vmatprep.mubr.bf16.mxu0 0
  %1163 = vmatmul.mubr.bf16.gmra.mrb[0].mxu0 %v786
  %v1164 = vpop.f32.mrb[0].mxu0
  %v1165 = vadd.f32 %v1068, %v1164
  %v1166 = vpop.f32.mrb[0].mxu0
  %v1167 = vpop.f32.mrb[0].mxu0
  %v1168 = vadd.f32 %v1071, %v1167
  %v1169 = vpop.f32.mrb[0].mxu0
  %1170 = vmatprep.mubr.bf16.mxu0 0
  %1171 = vmatmul.mubr.bf16.gmra.mrb[0].mxu0 %v789
  %v1172 = vpop.f32.mrb[0].mxu0
  %v1173 = vadd.f32 %v1076, %v1172
  %v1174 = vpop.f32.mrb[0].mxu0
  %v1175 = vpop.f32.mrb[0].mxu0
  %v1176 = vadd.f32 %v1079, %v1175
  %v1177 = vpop.f32.mrb[0].mxu0
  %1178 = vdwg.mxu0
  %v1179 = vmax.f32 %v1117, 0.0
  %v1180 = vmax.f32 %v1120, 0.0
  %v1181 = vmax.f32 %v1125, 0.0
  %v1182 = vmax.f32 %v1128, 0.0
  %v1183 = vmax.f32 %v1133, 0.0
  %v1184 = vmax.f32 %v1136, 0.0
  %v1185 = vmax.f32 %v1141, 0.0
  %v1186 = vmax.f32 %v1144, 0.0
  %v1187 = vmax.f32 %v1149, 0.0
  %v1188 = vmax.f32 %v1152, 0.0
  %v1189 = vmax.f32 %v1157, 0.0
  %v1190 = vmax.f32 %v1160, 0.0
  %v1191 = vmax.f32 %v1165, 0.0
  %v1192 = vmax.f32 %v1168, 0.0
  %v1193 = vmax.f32 %v1173, 0.0
  %v1194 = vmax.f32 %v1176, 0.0
  %1195 = vst [vmem:[%s3] sm:$0xff] %v1179
  %1196 = vst [vmem:[%s3 + $0x8] sm:$0xff] %v1180
  %1197 = vst [vmem:[%s3 + $0x10] sm:$0xff] %v1181
  %1198 = vst [vmem:[%s3 + $0x18] sm:$0xff] %v1182
  %1199 = vst [vmem:[%s3 + $0x20] sm:$0xff] %v1183
  %1200 = vst [vmem:[%s3 + $0x28] sm:$0xff] %v1184
  %1201 = vst [vmem:[%s3 + $0x30] sm:$0xff] %v1185
  %1202 = vst [vmem:[%s3 + $0x38] sm:$0xff] %v1186
  %1203 = vst [vmem:[%s3 + $0x40] sm:$0xff] %v1187
  %1204 = vst [vmem:[%s3 + $0x48] sm:$0xff] %v1188
  %1205 = vst [vmem:[%s3 + $0x50] sm:$0xff] %v1189
  %1206 = vst [vmem:[%s3 + $0x58] sm:$0xff] %v1190
  %1207 = vst [vmem:[%s3 + $0x60] sm:$0xff] %v1191
  %1208 = vst [vmem:[%s3 + $0x68] sm:$0xff] %v1192
  %1209 = vst [vmem:[%s3 + $0x70] sm:$0xff] %v1193
  %1210 = vst [vmem:[%s3 + $0x78] sm:$0xff] %v1194
  // Predicated region
  $region14: #{mnistcnn_forward.7} parent=0 // pred_check
    _
  $region15: #{mnistcnn_forward.7} parent=0 // pred_check_branch
    %1212 = sbr.rel (0) target = $region17
  $region16: #{mnistcnn_forward.7} parent=0 // pred_region
    _
  $region17: #{mnistcnn_forward.7} parent=0 // pred_fallthru
    _
  // Predicated region
  $region18: #{mnistcnn_forward.7} parent=0 // pred_check
    _
  $region19: #{mnistcnn_forward.7} parent=0 // pred_check_branch
    %1214 = sbr.rel (0) target = $region21
  $region20: #{mnistcnn_forward.7} parent=0 // pred_region
    _
  $region21: #{mnistcnn_forward.7} parent=0 // pred_fallthru
    _

// kernel: mnistcnn_forward.9
$region0: #{mnistcnn_forward.9}
  #allocation0 [shape = 'u32[]', space=smem, size = 0x4, offset = 0x4, fixed_abs, tag = 'smem constant byte address 0x4 - core index']
  #allocation1 [shape = 'u32[144,128]{1,0:T(1,128)}', space=vmem, size = 0x12000, scoped, tag = 'internal scratch']
  %s0 = inlined_call_operand.vmem [shape: bf16[2,2048], index: 0, kind: input, shape index: {}]
  %s1 = inlined_call_operand.vmem [shape: bf16[2048,512], index: 1, kind: input, shape index: {}]
  %s2 = inlined_call_operand.vmem [shape: f32[1,512], index: 2, kind: input, shape index: {}]
  %s3 = inlined_call_operand.vmem [shape: bf16[512,128], index: 3, kind: input, shape index: {}]
  %s4 = inlined_call_operand.vmem [shape: f32[1,128], index: 4, kind: input, shape index: {}]
  %s5 = inlined_call_operand.vmem [shape: bf16[128,128], index: 5, kind: input, shape index: {}]
  %s6 = inlined_call_operand.vmem [shape: f32[1,128], index: 6, kind: input, shape index: {}]
  %s7 = inlined_call_operand.hbm [shape: f32[2,128], index: 7, kind: output, shape index: {}]
  %s8 = sld [smem:[#allocation0]]
  $region38: #{mnistcnn_forward.9} parent=0
    _
  %s10 = ssub.s32 1, %s8
  %s11 = scalar_select 0, %s10, %s8
  $region1: #{mnistcnn_forward.9} parent=0
    #allocation2 [shape = 'u8[1024]{0}', space=vmem, size = 0x400, scoped, tag = 'output window, operand 0, single buffered']
    #allocation3 [shape = 's32[1]{0}', space=sflag, size = 0x4, scoped, tag = 'scoped memory for mnistcnn_forward.9']
    %12 = vsyncpa [#allocation3], 0
    // Predicated region
    $region2: #{mnistcnn_forward.9} parent=1 // pred_check
      _
    $region3: #{mnistcnn_forward.9} parent=1 // pred_check_branch
      %14 = sbr.rel (0) target = $region5
    $region4: #{mnistcnn_forward.9} parent=1 // pred_region
      _
    $region5: #{mnistcnn_forward.9} parent=1 // pred_fallthru
      _
    // Predicated region
    $region6: #{mnistcnn_forward.9} parent=1 // pred_check
      _
    $region7: #{mnistcnn_forward.9} parent=1 // pred_check_branch
      %16 = sbr.rel (0) target = $region9
    $region8: #{mnistcnn_forward.9} parent=1 // pred_region
      _
    $region9: #{mnistcnn_forward.9} parent=1 // pred_fallthru
      _
    // Predicated region
    $region10: #{mnistcnn_forward.9} parent=1 // pred_check
      _
    $region11: #{mnistcnn_forward.9} parent=1 // pred_check_branch
      %18 = sbr.rel (0) target = $region13
    $region12: #{mnistcnn_forward.9} parent=1 // pred_region
      _
    $region13: #{mnistcnn_forward.9} parent=1 // pred_fallthru
      _
    // Predicated region
    $region14: #{mnistcnn_forward.9} parent=1 // pred_check
      _
    $region15: #{mnistcnn_forward.9} parent=1 // pred_check_branch
      %20 = sbr.rel (0) target = $region17
    $region16: #{mnistcnn_forward.9} parent=1 // pred_region
      _
    $region17: #{mnistcnn_forward.9} parent=1 // pred_fallthru
      _
    // Predicated region
    $region18: #{mnistcnn_forward.9} parent=1 // pred_check
      _
    $region19: #{mnistcnn_forward.9} parent=1 // pred_check_branch
      %22 = sbr.rel (0) target = $region21
    $region20: #{mnistcnn_forward.9} parent=1 // pred_region
      _
    $region21: #{mnistcnn_forward.9} parent=1 // pred_fallthru
      _
    // Predicated region
    $region22: #{mnistcnn_forward.9} parent=1 // pred_check
      _
    $region23: #{mnistcnn_forward.9} parent=1 // pred_check_branch
      %24 = sbr.rel (0) target = $region25
    $region24: #{mnistcnn_forward.9} parent=1 // pred_region
      _
    $region25: #{mnistcnn_forward.9} parent=1 // pred_fallthru
      _
    // Predicated region
    $region26: #{mnistcnn_forward.9} parent=1 // pred_check
      _
    $region27: #{mnistcnn_forward.9} parent=1 // pred_check_branch
      %26 = sbr.rel (0) target = $region29
    $region28: #{mnistcnn_forward.9} parent=1 // pred_region
      _
    $region29: #{mnistcnn_forward.9} parent=1 // pred_fallthru
      _
    %v28 = vld [vmem:[%s0] sm:$0xff]
    %v29 = vld [vmem:[%s0 + $0x8] sm:$0xff]
    %v30 = vld [vmem:[%s1] sm:$0xff]
    %v31 = vld [vmem:[%s1 + $0x8] sm:$0xff]
    %v32 = vld [vmem:[%s1 + $0x10] sm:$0xff]
    %v33 = vld [vmem:[%s1 + $0x18] sm:$0xff]
    %v34 = vld [vmem:[%s1 + $0x20] sm:$0xff]
    %v35 = vld [vmem:[%s1 + $0x28] sm:$0xff]
    %v36 = vld [vmem:[%s1 + $0x30] sm:$0xff]
    %v37 = vld [vmem:[%s1 + $0x38] sm:$0xff]
    %v38 = vld [vmem:[%s1 + $0x40] sm:$0xff]
    %v39 = vld [vmem:[%s1 + $0x48] sm:$0xff]
    %v40 = vld [vmem:[%s1 + $0x50] sm:$0xff]
    %v41 = vld [vmem:[%s1 + $0x58] sm:$0xff]
    %v42 = vld [vmem:[%s1 + $0x60] sm:$0xff]
    %v43 = vld [vmem:[%s1 + $0x68] sm:$0xff]
    %v44 = vld [vmem:[%s1 + $0x70] sm:$0xff]
    %v45 = vld [vmem:[%s1 + $0x78] sm:$0xff]
    %v46 = vld [vmem:[%s1 + $0x80] sm:$0xff]
    %v47 = vld [vmem:[%s1 + $0x88] sm:$0xff]
    %v48 = vld [vmem:[%s1 + $0x90] sm:$0xff]
    %v49 = vld [vmem:[%s1 + $0x98] sm:$0xff]
    %v50 = vld [vmem:[%s1 + $0xa0] sm:$0xff]
    %v51 = vld [vmem:[%s1 + $0xa8] sm:$0xff]
    %v52 = vld [vmem:[%s1 + $0xb0] sm:$0xff]
    %v53 = vld [vmem:[%s1 + $0xb8] sm:$0xff]
    %v54 = vld [vmem:[%s1 + $0xc0] sm:$0xff]
    %v55 = vld [vmem:[%s1 + $0xc8] sm:$0xff]
    %v56 = vld [vmem:[%s1 + $0xd0] sm:$0xff]
    %v57 = vld [vmem:[%s1 + $0xd8] sm:$0xff]
    %v58 = vld [vmem:[%s1 + $0xe0] sm:$0xff]
    %v59 = vld [vmem:[%s1 + $0xe8] sm:$0xff]
    %v60 = vld [vmem:[%s1 + $0xf0] sm:$0xff]
    %v61 = vld [vmem:[%s1 + $0xf8] sm:$0xff]
    %v62 = vld [vmem:[%s1 + $0x100] sm:$0xff]
    %v63 = vld [vmem:[%s1 + $0x108] sm:$0xff]
    %v64 = vld [vmem:[%s1 + $0x110] sm:$0xff]
    %v65 = vld [vmem:[%s1 + $0x118] sm:$0xff]
    %v66 = vld [vmem:[%s1 + $0x120] sm:$0xff]
    %v67 = vld [vmem:[%s1 + $0x128] sm:$0xff]
    %v68 = vld [vmem:[%s1 + $0x130] sm:$0xff]
    %v69 = vld [vmem:[%s1 + $0x138] sm:$0xff]
    %v70 = vld [vmem:[%s1 + $0x140] sm:$0xff]
    %v71 = vld [vmem:[%s1 + $0x148] sm:$0xff]
    %v72 = vld [vmem:[%s1 + $0x150] sm:$0xff]
    %v73 = vld [vmem:[%s1 + $0x158] sm:$0xff]
    %v74 = vld [vmem:[%s1 + $0x160] sm:$0xff]
    %v75 = vld [vmem:[%s1 + $0x168] sm:$0xff]
    %v76 = vld [vmem:[%s1 + $0x170] sm:$0xff]
    %v77 = vld [vmem:[%s1 + $0x178] sm:$0xff]
    %v78 = vld [vmem:[%s1 + $0x180] sm:$0xff]
    %v79 = vld [vmem:[%s1 + $0x188] sm:$0xff]
    %v80 = vld [vmem:[%s1 + $0x190] sm:$0xff]
    %v81 = vld [vmem:[%s1 + $0x198] sm:$0xff]
    %v82 = vld [vmem:[%s1 + $0x1a0] sm:$0xff]
    %v83 = vld [vmem:[%s1 + $0x1a8] sm:$0xff]
    %v84 = vld [vmem:[%s1 + $0x1b0] sm:$0xff]
    %v85 = vld [vmem:[%s1 + $0x1b8] sm:$0xff]
    %v86 = vld [vmem:[%s1 + $0x1c0] sm:$0xff]
    %v87 = vld [vmem:[%s1 + $0x1c8] sm:$0xff]
    %v88 = vld [vmem:[%s1 + $0x1d0] sm:$0xff]
    %v89 = vld [vmem:[%s1 + $0x1d8] sm:$0xff]
    %v90 = vld [vmem:[%s1 + $0x1e0] sm:$0xff]
    %v91 = vld [vmem:[%s1 + $0x1e8] sm:$0xff]
    %v92 = vld [vmem:[%s1 + $0x1f0] sm:$0xff]
    %v93 = vld [vmem:[%s1 + $0x1f8] sm:$0xff]
    %v94 = vld [vmem:[%s1 + $0x200] sm:$0xff]
    %v95 = vld [vmem:[%s1 + $0x208] sm:$0xff]
    %v96 = vld [vmem:[%s1 + $0x210] sm:$0xff]
    %v97 = vld [vmem:[%s1 + $0x218] sm:$0xff]
    %v98 = vld [vmem:[%s1 + $0x220] sm:$0xff]
    %v99 = vld [vmem:[%s1 + $0x228] sm:$0xff]
    %v100 = vld [vmem:[%s1 + $0x230] sm:$0xff]
    %v101 = vld [vmem:[%s1 + $0x238] sm:$0xff]
    %v102 = vld [vmem:[%s1 + $0x240] sm:$0xff]
    %v103 = vld [vmem:[%s1 + $0x248] sm:$0xff]
    %v104 = vld [vmem:[%s1 + $0x250] sm:$0xff]
    %v105 = vld [vmem:[%s1 + $0x258] sm:$0xff]
    %v106 = vld [vmem:[%s1 + $0x260] sm:$0xff]
    %v107 = vld [vmem:[%s1 + $0x268] sm:$0xff]
    %v108 = vld [vmem:[%s1 + $0x270] sm:$0xff]
    %v109 = vld [vmem:[%s1 + $0x278] sm:$0xff]
    %v110 = vld [vmem:[%s1 + $0x280] sm:$0xff]
    %v111 = vld [vmem:[%s1 + $0x288] sm:$0xff]
    %v112 = vld [vmem:[%s1 + $0x290] sm:$0xff]
    %v113 = vld [vmem:[%s1 + $0x298] sm:$0xff]
    %v114 = vld [vmem:[%s1 + $0x2a0] sm:$0xff]
    %v115 = vld [vmem:[%s1 + $0x2a8] sm:$0xff]
    %v116 = vld [vmem:[%s1 + $0x2b0] sm:$0xff]
    %v117 = vld [vmem:[%s1 + $0x2b8] sm:$0xff]
    %v118 = vld [vmem:[%s1 + $0x2c0] sm:$0xff]
    %v119 = vld [vmem:[%s1 + $0x2c8] sm:$0xff]
    %v120 = vld [vmem:[%s1 + $0x2d0] sm:$0xff]
    %v121 = vld [vmem:[%s1 + $0x2d8] sm:$0xff]
    %v122 = vld [vmem:[%s1 + $0x2e0] sm:$0xff]
    %v123 = vld [vmem:[%s1 + $0x2e8] sm:$0xff]
    %v124 = vld [vmem:[%s1 + $0x2f0] sm:$0xff]
    %v125 = vld [vmem:[%s1 + $0x2f8] sm:$0xff]
    %v126 = vld [vmem:[%s1 + $0x300] sm:$0xff]
    %v127 = vld [vmem:[%s1 + $0x308] sm:$0xff]
    %v128 = vld [vmem:[%s1 + $0x310] sm:$0xff]
    %v129 = vld [vmem:[%s1 + $0x318] sm:$0xff]
    %v130 = vld [vmem:[%s1 + $0x320] sm:$0xff]
    %v131 = vld [vmem:[%s1 + $0x328] sm:$0xff]
    %v132 = vld [vmem:[%s1 + $0x330] sm:$0xff]
    %v133 = vld [vmem:[%s1 + $0x338] sm:$0xff]
    %v134 = vld [vmem:[%s1 + $0x340] sm:$0xff]
    %v135 = vld [vmem:[%s1 + $0x348] sm:$0xff]
    %v136 = vld [vmem:[%s1 + $0x350] sm:$0xff]
    %v137 = vld [vmem:[%s1 + $0x358] sm:$0xff]
    %v138 = vld [vmem:[%s1 + $0x360] sm:$0xff]
    %v139 = vld [vmem:[%s1 + $0x368] sm:$0xff]
    %v140 = vld [vmem:[%s1 + $0x370] sm:$0xff]
    %v141 = vld [vmem:[%s1 + $0x378] sm:$0xff]
    %v142 = vld [vmem:[%s1 + $0x380] sm:$0xff]
    %v143 = vld [vmem:[%s1 + $0x388] sm:$0xff]
    %v144 = vld [vmem:[%s1 + $0x390] sm:$0xff]
    %v145 = vld [vmem:[%s1 + $0x398] sm:$0xff]
    %v146 = vld [vmem:[%s1 + $0x3a0] sm:$0xff]
    %v147 = vld [vmem:[%s1 + $0x3a8] sm:$0xff]
    %v148 = vld [vmem:[%s1 + $0x3b0] sm:$0xff]
    %v149 = vld [vmem:[%s1 + $0x3b8] sm:$0xff]
    %v150 = vld [vmem:[%s1 + $0x3c0] sm:$0xff]
    %v151 = vld [vmem:[%s1 + $0x3c8] sm:$0xff]
    %v152 = vld [vmem:[%s1 + $0x3d0] sm:$0xff]
    %v153 = vld [vmem:[%s1 + $0x3d8] sm:$0xff]
    %v154 = vld [vmem:[%s1 + $0x3e0] sm:$0xff]
    %v155 = vld [vmem:[%s1 + $0x3e8] sm:$0xff]
    %v156 = vld [vmem:[%s1 + $0x3f0] sm:$0xff]
    %v157 = vld [vmem:[%s1 + $0x3f8] sm:$0xff]
    %v158 = vld [vmem:[%s1 + $0x400] sm:$0xff]
    %v159 = vld [vmem:[%s1 + $0x408] sm:$0xff]
    %v160 = vld [vmem:[%s1 + $0x410] sm:$0xff]
    %v161 = vld [vmem:[%s1 + $0x418] sm:$0xff]
    %v162 = vld [vmem:[%s1 + $0x420] sm:$0xff]
    %v163 = vld [vmem:[%s1 + $0x428] sm:$0xff]
    %v164 = vld [vmem:[%s1 + $0x430] sm:$0xff]
    %v165 = vld [vmem:[%s1 + $0x438] sm:$0xff]
    %v166 = vld [vmem:[%s1 + $0x440] sm:$0xff]
    %v167 = vld [vmem:[%s1 + $0x448] sm:$0xff]
    %v168 = vld [vmem:[%s1 + $0x450] sm:$0xff]
    %v169 = vld [vmem:[%s1 + $0x458] sm:$0xff]
    %v170 = vld [vmem:[%s1 + $0x460] sm:$0xff]
    %v171 = vld [vmem:[%s1 + $0x468] sm:$0xff]
    %v172 = vld [vmem:[%s1 + $0x470] sm:$0xff]
    %v173 = vld [vmem:[%s1 + $0x478] sm:$0xff]
    %v174 = vld [vmem:[%s1 + $0x480] sm:$0xff]
    %v175 = vld [vmem:[%s1 + $0x488] sm:$0xff]
    %v176 = vld [vmem:[%s1 + $0x490] sm:$0xff]
    %v177 = vld [vmem:[%s1 + $0x498] sm:$0xff]
    %v178 = vld [vmem:[%s1 + $0x4a0] sm:$0xff]
    %v179 = vld [vmem:[%s1 + $0x4a8] sm:$0xff]
    %v180 = vld [vmem:[%s1 + $0x4b0] sm:$0xff]
    %v181 = vld [vmem:[%s1 + $0x4b8] sm:$0xff]
    %v182 = vld [vmem:[%s1 + $0x4c0] sm:$0xff]
    %v183 = vld [vmem:[%s1 + $0x4c8] sm:$0xff]
    %v184 = vld [vmem:[%s1 + $0x4d0] sm:$0xff]
    %v185 = vld [vmem:[%s1 + $0x4d8] sm:$0xff]
    %v186 = vld [vmem:[%s1 + $0x4e0] sm:$0xff]
    %v187 = vld [vmem:[%s1 + $0x4e8] sm:$0xff]
    %v188 = vld [vmem:[%s1 + $0x4f0] sm:$0xff]
    %v189 = vld [vmem:[%s1 + $0x4f8] sm:$0xff]
    %v190 = vld [vmem:[%s1 + $0x500] sm:$0xff]
    %v191 = vld [vmem:[%s1 + $0x508] sm:$0xff]
    %v192 = vld [vmem:[%s1 + $0x510] sm:$0xff]
    %v193 = vld [vmem:[%s1 + $0x518] sm:$0xff]
    %v194 = vld [vmem:[%s1 + $0x520] sm:$0xff]
    %v195 = vld [vmem:[%s1 + $0x528] sm:$0xff]
    %v196 = vld [vmem:[%s1 + $0x530] sm:$0xff]
    %v197 = vld [vmem:[%s1 + $0x538] sm:$0xff]
    %v198 = vld [vmem:[%s1 + $0x540] sm:$0xff]
    %v199 = vld [vmem:[%s1 + $0x548] sm:$0xff]
    %v200 = vld [vmem:[%s1 + $0x550] sm:$0xff]
    %v201 = vld [vmem:[%s1 + $0x558] sm:$0xff]
    %v202 = vld [vmem:[%s1 + $0x560] sm:$0xff]
    %v203 = vld [vmem:[%s1 + $0x568] sm:$0xff]
    %v204 = vld [vmem:[%s1 + $0x570] sm:$0xff]
    %v205 = vld [vmem:[%s1 + $0x578] sm:$0xff]
    %v206 = vld [vmem:[%s1 + $0x580] sm:$0xff]
    %v207 = vld [vmem:[%s1 + $0x588] sm:$0xff]
    %v208 = vld [vmem:[%s1 + $0x590] sm:$0xff]
    %v209 = vld [vmem:[%s1 + $0x598] sm:$0xff]
    %v210 = vld [vmem:[%s1 + $0x5a0] sm:$0xff]
    %v211 = vld [vmem:[%s1 + $0x5a8] sm:$0xff]
    %v212 = vld [vmem:[%s1 + $0x5b0] sm:$0xff]
    %v213 = vld [vmem:[%s1 + $0x5b8] sm:$0xff]
    %v214 = vld [vmem:[%s1 + $0x5c0] sm:$0xff]
    %v215 = vld [vmem:[%s1 + $0x5c8] sm:$0xff]
    %v216 = vld [vmem:[%s1 + $0x5d0] sm:$0xff]
    %v217 = vld [vmem:[%s1 + $0x5d8] sm:$0xff]
    %v218 = vld [vmem:[%s1 + $0x5e0] sm:$0xff]
    %v219 = vld [vmem:[%s1 + $0x5e8] sm:$0xff]
    %v220 = vld [vmem:[%s1 + $0x5f0] sm:$0xff]
    %v221 = vld [vmem:[%s1 + $0x5f8] sm:$0xff]
    %v222 = vld [vmem:[%s1 + $0x600] sm:$0xff]
    %v223 = vld [vmem:[%s1 + $0x608] sm:$0xff]
    %v224 = vld [vmem:[%s1 + $0x610] sm:$0xff]
    %v225 = vld [vmem:[%s1 + $0x618] sm:$0xff]
    %v226 = vld [vmem:[%s1 + $0x620] sm:$0xff]
    %v227 = vld [vmem:[%s1 + $0x628] sm:$0xff]
    %v228 = vld [vmem:[%s1 + $0x630] sm:$0xff]
    %v229 = vld [vmem:[%s1 + $0x638] sm:$0xff]
    %v230 = vld [vmem:[%s1 + $0x640] sm:$0xff]
    %v231 = vld [vmem:[%s1 + $0x648] sm:$0xff]
    %v232 = vld [vmem:[%s1 + $0x650] sm:$0xff]
    %v233 = vld [vmem:[%s1 + $0x658] sm:$0xff]
    %v234 = vld [vmem:[%s1 + $0x660] sm:$0xff]
    %v235 = vld [vmem:[%s1 + $0x668] sm:$0xff]
    %v236 = vld [vmem:[%s1 + $0x670] sm:$0xff]
    %v237 = vld [vmem:[%s1 + $0x678] sm:$0xff]
    %v238 = vld [vmem:[%s1 + $0x680] sm:$0xff]
    %v239 = vld [vmem:[%s1 + $0x688] sm:$0xff]
    %v240 = vld [vmem:[%s1 + $0x690] sm:$0xff]
    %v241 = vld [vmem:[%s1 + $0x698] sm:$0xff]
    %v242 = vld [vmem:[%s1 + $0x6a0] sm:$0xff]
    %v243 = vld [vmem:[%s1 + $0x6a8] sm:$0xff]
    %v244 = vld [vmem:[%s1 + $0x6b0] sm:$0xff]
    %v245 = vld [vmem:[%s1 + $0x6b8] sm:$0xff]
    %v246 = vld [vmem:[%s1 + $0x6c0] sm:$0xff]
    %v247 = vld [vmem:[%s1 + $0x6c8] sm:$0xff]
    %v248 = vld [vmem:[%s1 + $0x6d0] sm:$0xff]
    %v249 = vld [vmem:[%s1 + $0x6d8] sm:$0xff]
    %v250 = vld [vmem:[%s1 + $0x6e0] sm:$0xff]
    %v251 = vld [vmem:[%s1 + $0x6e8] sm:$0xff]
    %v252 = vld [vmem:[%s1 + $0x6f0] sm:$0xff]
    %v253 = vld [vmem:[%s1 + $0x6f8] sm:$0xff]
    %v254 = vld [vmem:[%s1 + $0x700] sm:$0xff]
    %v255 = vld [vmem:[%s1 + $0x708] sm:$0xff]
    %v256 = vld [vmem:[%s1 + $0x710] sm:$0xff]
    %v257 = vld [vmem:[%s1 + $0x718] sm:$0xff]
    %v258 = vld [vmem:[%s1 + $0x720] sm:$0xff]
    %v259 = vld [vmem:[%s1 + $0x728] sm:$0xff]
    %v260 = vld [vmem:[%s1 + $0x730] sm:$0xff]
    %v261 = vld [vmem:[%s1 + $0x738] sm:$0xff]
    %v262 = vld [vmem:[%s1 + $0x740] sm:$0xff]
    %v263 = vld [vmem:[%s1 + $0x748] sm:$0xff]
    %v264 = vld [vmem:[%s1 + $0x750] sm:$0xff]
    %v265 = vld [vmem:[%s1 + $0x758] sm:$0xff]
    %v266 = vld [vmem:[%s1 + $0x760] sm:$0xff]
    %v267 = vld [vmem:[%s1 + $0x768] sm:$0xff]
    %v268 = vld [vmem:[%s1 + $0x770] sm:$0xff]
    %v269 = vld [vmem:[%s1 + $0x778] sm:$0xff]
    %v270 = vld [vmem:[%s1 + $0x780] sm:$0xff]
    %v271 = vld [vmem:[%s1 + $0x788] sm:$0xff]
    %v272 = vld [vmem:[%s1 + $0x790] sm:$0xff]
    %v273 = vld [vmem:[%s1 + $0x798] sm:$0xff]
    %v274 = vld [vmem:[%s1 + $0x7a0] sm:$0xff]
    %v275 = vld [vmem:[%s1 + $0x7a8] sm:$0xff]
    %v276 = vld [vmem:[%s1 + $0x7b0] sm:$0xff]
    %v277 = vld [vmem:[%s1 + $0x7b8] sm:$0xff]
    %v278 = vld [vmem:[%s1 + $0x7c0] sm:$0xff]
    %v279 = vld [vmem:[%s1 + $0x7c8] sm:$0xff]
    %v280 = vld [vmem:[%s1 + $0x7d0] sm:$0xff]
    %v281 = vld [vmem:[%s1 + $0x7d8] sm:$0xff]
    %v282 = vld [vmem:[%s1 + $0x7e0] sm:$0xff]
    %v283 = vld [vmem:[%s1 + $0x7e8] sm:$0xff]
    %v284 = vld [vmem:[%s1 + $0x7f0] sm:$0xff]
    %v285 = vld [vmem:[%s1 + $0x7f8] sm:$0xff]
    %v286 = vld [vmem:[%s1 + $0x800] sm:$0xff]
    %v287 = vld [vmem:[%s1 + $0x808] sm:$0xff]
    %v288 = vld [vmem:[%s1 + $0x810] sm:$0xff]
    %v289 = vld [vmem:[%s1 + $0x818] sm:$0xff]
    %v290 = vld [vmem:[%s1 + $0x820] sm:$0xff]
    %v291 = vld [vmem:[%s1 + $0x828] sm:$0xff]
    %v292 = vld [vmem:[%s1 + $0x830] sm:$0xff]
    %v293 = vld [vmem:[%s1 + $0x838] sm:$0xff]
    %v294 = vld [vmem:[%s1 + $0x840] sm:$0xff]
    %v295 = vld [vmem:[%s1 + $0x848] sm:$0xff]
    %v296 = vld [vmem:[%s1 + $0x850] sm:$0xff]
    %v297 = vld [vmem:[%s1 + $0x858] sm:$0xff]
    %v298 = vld [vmem:[%s1 + $0x860] sm:$0xff]
    %v299 = vld [vmem:[%s1 + $0x868] sm:$0xff]
    %v300 = vld [vmem:[%s1 + $0x870] sm:$0xff]
    %v301 = vld [vmem:[%s1 + $0x878] sm:$0xff]
    %v302 = vld [vmem:[%s1 + $0x880] sm:$0xff]
    %v303 = vld [vmem:[%s1 + $0x888] sm:$0xff]
    %v304 = vld [vmem:[%s1 + $0x890] sm:$0xff]
    %v305 = vld [vmem:[%s1 + $0x898] sm:$0xff]
    %v306 = vld [vmem:[%s1 + $0x8a0] sm:$0xff]
    %v307 = vld [vmem:[%s1 + $0x8a8] sm:$0xff]
    %v308 = vld [vmem:[%s1 + $0x8b0] sm:$0xff]
    %v309 = vld [vmem:[%s1 + $0x8b8] sm:$0xff]
    %v310 = vld [vmem:[%s1 + $0x8c0] sm:$0xff]
    %v311 = vld [vmem:[%s1 + $0x8c8] sm:$0xff]
    %v312 = vld [vmem:[%s1 + $0x8d0] sm:$0xff]
    %v313 = vld [vmem:[%s1 + $0x8d8] sm:$0xff]
    %v314 = vld [vmem:[%s1 + $0x8e0] sm:$0xff]
    %v315 = vld [vmem:[%s1 + $0x8e8] sm:$0xff]
    %v316 = vld [vmem:[%s1 + $0x8f0] sm:$0xff]
    %v317 = vld [vmem:[%s1 + $0x8f8] sm:$0xff]
    %v318 = vld [vmem:[%s1 + $0x900] sm:$0xff]
    %v319 = vld [vmem:[%s1 + $0x908] sm:$0xff]
    %v320 = vld [vmem:[%s1 + $0x910] sm:$0xff]
    %v321 = vld [vmem:[%s1 + $0x918] sm:$0xff]
    %v322 = vld [vmem:[%s1 + $0x920] sm:$0xff]
    %v323 = vld [vmem:[%s1 + $0x928] sm:$0xff]
    %v324 = vld [vmem:[%s1 + $0x930] sm:$0xff]
    %v325 = vld [vmem:[%s1 + $0x938] sm:$0xff]
    %v326 = vld [vmem:[%s1 + $0x940] sm:$0xff]
    %v327 = vld [vmem:[%s1 + $0x948] sm:$0xff]
    %v328 = vld [vmem:[%s1 + $0x950] sm:$0xff]
    %v329 = vld [vmem:[%s1 + $0x958] sm:$0xff]
    %v330 = vld [vmem:[%s1 + $0x960] sm:$0xff]
    %v331 = vld [vmem:[%s1 + $0x968] sm:$0xff]
    %v332 = vld [vmem:[%s1 + $0x970] sm:$0xff]
    %v333 = vld [vmem:[%s1 + $0x978] sm:$0xff]
    %v334 = vld [vmem:[%s1 + $0x980] sm:$0xff]
    %v335 = vld [vmem:[%s1 + $0x988] sm:$0xff]
    %v336 = vld [vmem:[%s1 + $0x990] sm:$0xff]
    %v337 = vld [vmem:[%s1 + $0x998] sm:$0xff]
    %v338 = vld [vmem:[%s1 + $0x9a0] sm:$0xff]
    %v339 = vld [vmem:[%s1 + $0x9a8] sm:$0xff]
    %v340 = vld [vmem:[%s1 + $0x9b0] sm:$0xff]
    %v341 = vld [vmem:[%s1 + $0x9b8] sm:$0xff]
    %v342 = vld [vmem:[%s1 + $0x9c0] sm:$0xff]
    %v343 = vld [vmem:[%s1 + $0x9c8] sm:$0xff]
    %v344 = vld [vmem:[%s1 + $0x9d0] sm:$0xff]
    %v345 = vld [vmem:[%s1 + $0x9d8] sm:$0xff]
    %v346 = vld [vmem:[%s1 + $0x9e0] sm:$0xff]
    %v347 = vld [vmem:[%s1 + $0x9e8] sm:$0xff]
    %v348 = vld [vmem:[%s1 + $0x9f0] sm:$0xff]
    %v349 = vld [vmem:[%s1 + $0x9f8] sm:$0xff]
    %v350 = vld [vmem:[%s1 + $0xa00] sm:$0xff]
    %v351 = vld [vmem:[%s1 + $0xa08] sm:$0xff]
    %v352 = vld [vmem:[%s1 + $0xa10] sm:$0xff]
    %v353 = vld [vmem:[%s1 + $0xa18] sm:$0xff]
    %v354 = vld [vmem:[%s1 + $0xa20] sm:$0xff]
    %v355 = vld [vmem:[%s1 + $0xa28] sm:$0xff]
    %v356 = vld [vmem:[%s1 + $0xa30] sm:$0xff]
    %v357 = vld [vmem:[%s1 + $0xa38] sm:$0xff]
    %v358 = vld [vmem:[%s1 + $0xa40] sm:$0xff]
    %v359 = vld [vmem:[%s1 + $0xa48] sm:$0xff]
    %v360 = vld [vmem:[%s1 + $0xa50] sm:$0xff]
    %v361 = vld [vmem:[%s1 + $0xa58] sm:$0xff]
    %v362 = vld [vmem:[%s1 + $0xa60] sm:$0xff]
    %v363 = vld [vmem:[%s1 + $0xa68] sm:$0xff]
    %v364 = vld [vmem:[%s1 + $0xa70] sm:$0xff]
    %v365 = vld [vmem:[%s1 + $0xa78] sm:$0xff]
    %v366 = vld [vmem:[%s1 + $0xa80] sm:$0xff]
    %v367 = vld [vmem:[%s1 + $0xa88] sm:$0xff]
    %v368 = vld [vmem:[%s1 + $0xa90] sm:$0xff]
    %v369 = vld [vmem:[%s1 + $0xa98] sm:$0xff]
    %v370 = vld [vmem:[%s1 + $0xaa0] sm:$0xff]
    %v371 = vld [vmem:[%s1 + $0xaa8] sm:$0xff]
    %v372 = vld [vmem:[%s1 + $0xab0] sm:$0xff]
    %v373 = vld [vmem:[%s1 + $0xab8] sm:$0xff]
    %v374 = vld [vmem:[%s1 + $0xac0] sm:$0xff]
    %v375 = vld [vmem:[%s1 + $0xac8] sm:$0xff]
    %v376 = vld [vmem:[%s1 + $0xad0] sm:$0xff]
    %v377 = vld [vmem:[%s1 + $0xad8] sm:$0xff]
    %v378 = vld [vmem:[%s1 + $0xae0] sm:$0xff]
    %v379 = vld [vmem:[%s1 + $0xae8] sm:$0xff]
    %v380 = vld [vmem:[%s1 + $0xaf0] sm:$0xff]
    %v381 = vld [vmem:[%s1 + $0xaf8] sm:$0xff]
    %v382 = vld [vmem:[%s1 + $0xb00] sm:$0xff]
    %v383 = vld [vmem:[%s1 + $0xb08] sm:$0xff]
    %v384 = vld [vmem:[%s1 + $0xb10] sm:$0xff]
    %v385 = vld [vmem:[%s1 + $0xb18] sm:$0xff]
    %v386 = vld [vmem:[%s1 + $0xb20] sm:$0xff]
    %v387 = vld [vmem:[%s1 + $0xb28] sm:$0xff]
    %v388 = vld [vmem:[%s1 + $0xb30] sm:$0xff]
    %v389 = vld [vmem:[%s1 + $0xb38] sm:$0xff]
    %v390 = vld [vmem:[%s1 + $0xb40] sm:$0xff]
    %v391 = vld [vmem:[%s1 + $0xb48] sm:$0xff]
    %v392 = vld [vmem:[%s1 + $0xb50] sm:$0xff]
    %v393 = vld [vmem:[%s1 + $0xb58] sm:$0xff]
    %v394 = vld [vmem:[%s1 + $0xb60] sm:$0xff]
    %v395 = vld [vmem:[%s1 + $0xb68] sm:$0xff]
    %v396 = vld [vmem:[%s1 + $0xb70] sm:$0xff]
    %v397 = vld [vmem:[%s1 + $0xb78] sm:$0xff]
    %v398 = vld [vmem:[%s1 + $0xb80] sm:$0xff]
    %v399 = vld [vmem:[%s1 + $0xb88] sm:$0xff]
    %v400 = vld [vmem:[%s1 + $0xb90] sm:$0xff]
    %v401 = vld [vmem:[%s1 + $0xb98] sm:$0xff]
    %v402 = vld [vmem:[%s1 + $0xba0] sm:$0xff]
    %v403 = vld [vmem:[%s1 + $0xba8] sm:$0xff]
    %v404 = vld [vmem:[%s1 + $0xbb0] sm:$0xff]
    %v405 = vld [vmem:[%s1 + $0xbb8] sm:$0xff]
    %v406 = vld [vmem:[%s1 + $0xbc0] sm:$0xff]
    %v407 = vld [vmem:[%s1 + $0xbc8] sm:$0xff]
    %v408 = vld [vmem:[%s1 + $0xbd0] sm:$0xff]
    %v409 = vld [vmem:[%s1 + $0xbd8] sm:$0xff]
    %v410 = vld [vmem:[%s1 + $0xbe0] sm:$0xff]
    %v411 = vld [vmem:[%s1 + $0xbe8] sm:$0xff]
    %v412 = vld [vmem:[%s1 + $0xbf0] sm:$0xff]
    %v413 = vld [vmem:[%s1 + $0xbf8] sm:$0xff]
    %v414 = vld [vmem:[%s1 + $0xc00] sm:$0xff]
    %v415 = vld [vmem:[%s1 + $0xc08] sm:$0xff]
    %v416 = vld [vmem:[%s1 + $0xc10] sm:$0xff]
    %v417 = vld [vmem:[%s1 + $0xc18] sm:$0xff]
    %v418 = vld [vmem:[%s1 + $0xc20] sm:$0xff]
    %v419 = vld [vmem:[%s1 + $0xc28] sm:$0xff]
    %v420 = vld [vmem:[%s1 + $0xc30] sm:$0xff]
    %v421 = vld [vmem:[%s1 + $0xc38] sm:$0xff]
    %v422 = vld [vmem:[%s1 + $0xc40] sm:$0xff]
    %v423 = vld [vmem:[%s1 + $0xc48] sm:$0xff]
    %v424 = vld [vmem:[%s1 + $0xc50] sm:$0xff]
    %v425 = vld [vmem:[%s1 + $0xc58] sm:$0xff]
    %v426 = vld [vmem:[%s1 + $0xc60] sm:$0xff]
    %v427 = vld [vmem:[%s1 + $0xc68] sm:$0xff]
    %v428 = vld [vmem:[%s1 + $0xc70] sm:$0xff]
    %v429 = vld [vmem:[%s1 + $0xc78] sm:$0xff]
    %v430 = vld [vmem:[%s1 + $0xc80] sm:$0xff]
    %v431 = vld [vmem:[%s1 + $0xc88] sm:$0xff]
    %v432 = vld [vmem:[%s1 + $0xc90] sm:$0xff]
    %v433 = vld [vmem:[%s1 + $0xc98] sm:$0xff]
    %v434 = vld [vmem:[%s1 + $0xca0] sm:$0xff]
    %v435 = vld [vmem:[%s1 + $0xca8] sm:$0xff]
    %v436 = vld [vmem:[%s1 + $0xcb0] sm:$0xff]
    %v437 = vld [vmem:[%s1 + $0xcb8] sm:$0xff]
    %v438 = vld [vmem:[%s1 + $0xcc0] sm:$0xff]
    %v439 = vld [vmem:[%s1 + $0xcc8] sm:$0xff]
    %v440 = vld [vmem:[%s1 + $0xcd0] sm:$0xff]
    %v441 = vld [vmem:[%s1 + $0xcd8] sm:$0xff]
    %v442 = vld [vmem:[%s1 + $0xce0] sm:$0xff]
    %v443 = vld [vmem:[%s1 + $0xce8] sm:$0xff]
    %v444 = vld [vmem:[%s1 + $0xcf0] sm:$0xff]
    %v445 = vld [vmem:[%s1 + $0xcf8] sm:$0xff]
    %v446 = vld [vmem:[%s1 + $0xd00] sm:$0xff]
    %v447 = vld [vmem:[%s1 + $0xd08] sm:$0xff]
    %v448 = vld [vmem:[%s1 + $0xd10] sm:$0xff]
    %v449 = vld [vmem:[%s1 + $0xd18] sm:$0xff]
    %v450 = vld [vmem:[%s1 + $0xd20] sm:$0xff]
    %v451 = vld [vmem:[%s1 + $0xd28] sm:$0xff]
    %v452 = vld [vmem:[%s1 + $0xd30] sm:$0xff]
    %v453 = vld [vmem:[%s1 + $0xd38] sm:$0xff]
    %v454 = vld [vmem:[%s1 + $0xd40] sm:$0xff]
    %v455 = vld [vmem:[%s1 + $0xd48] sm:$0xff]
    %v456 = vld [vmem:[%s1 + $0xd50] sm:$0xff]
    %v457 = vld [vmem:[%s1 + $0xd58] sm:$0xff]
    %v458 = vld [vmem:[%s1 + $0xd60] sm:$0xff]
    %v459 = vld [vmem:[%s1 + $0xd68] sm:$0xff]
    %v460 = vld [vmem:[%s1 + $0xd70] sm:$0xff]
    %v461 = vld [vmem:[%s1 + $0xd78] sm:$0xff]
    %v462 = vld [vmem:[%s1 + $0xd80] sm:$0xff]
    %v463 = vld [vmem:[%s1 + $0xd88] sm:$0xff]
    %v464 = vld [vmem:[%s1 + $0xd90] sm:$0xff]
    %v465 = vld [vmem:[%s1 + $0xd98] sm:$0xff]
    %v466 = vld [vmem:[%s1 + $0xda0] sm:$0xff]
    %v467 = vld [vmem:[%s1 + $0xda8] sm:$0xff]
    %v468 = vld [vmem:[%s1 + $0xdb0] sm:$0xff]
    %v469 = vld [vmem:[%s1 + $0xdb8] sm:$0xff]
    %v470 = vld [vmem:[%s1 + $0xdc0] sm:$0xff]
    %v471 = vld [vmem:[%s1 + $0xdc8] sm:$0xff]
    %v472 = vld [vmem:[%s1 + $0xdd0] sm:$0xff]
    %v473 = vld [vmem:[%s1 + $0xdd8] sm:$0xff]
    %v474 = vld [vmem:[%s1 + $0xde0] sm:$0xff]
    %v475 = vld [vmem:[%s1 + $0xde8] sm:$0xff]
    %v476 = vld [vmem:[%s1 + $0xdf0] sm:$0xff]
    %v477 = vld [vmem:[%s1 + $0xdf8] sm:$0xff]
    %v478 = vld [vmem:[%s1 + $0xe00] sm:$0xff]
    %v479 = vld [vmem:[%s1 + $0xe08] sm:$0xff]
    %v480 = vld [vmem:[%s1 + $0xe10] sm:$0xff]
    %v481 = vld [vmem:[%s1 + $0xe18] sm:$0xff]
    %v482 = vld [vmem:[%s1 + $0xe20] sm:$0xff]
    %v483 = vld [vmem:[%s1 + $0xe28] sm:$0xff]
    %v484 = vld [vmem:[%s1 + $0xe30] sm:$0xff]
    %v485 = vld [vmem:[%s1 + $0xe38] sm:$0xff]
    %v486 = vld [vmem:[%s1 + $0xe40] sm:$0xff]
    %v487 = vld [vmem:[%s1 + $0xe48] sm:$0xff]
    %v488 = vld [vmem:[%s1 + $0xe50] sm:$0xff]
    %v489 = vld [vmem:[%s1 + $0xe58] sm:$0xff]
    %v490 = vld [vmem:[%s1 + $0xe60] sm:$0xff]
    %v491 = vld [vmem:[%s1 + $0xe68] sm:$0xff]
    %v492 = vld [vmem:[%s1 + $0xe70] sm:$0xff]
    %v493 = vld [vmem:[%s1 + $0xe78] sm:$0xff]
    %v494 = vld [vmem:[%s1 + $0xe80] sm:$0xff]
    %v495 = vld [vmem:[%s1 + $0xe88] sm:$0xff]
    %v496 = vld [vmem:[%s1 + $0xe90] sm:$0xff]
    %v497 = vld [vmem:[%s1 + $0xe98] sm:$0xff]
    %v498 = vld [vmem:[%s1 + $0xea0] sm:$0xff]
    %v499 = vld [vmem:[%s1 + $0xea8] sm:$0xff]
    %v500 = vld [vmem:[%s1 + $0xeb0] sm:$0xff]
    %v501 = vld [vmem:[%s1 + $0xeb8] sm:$0xff]
    %v502 = vld [vmem:[%s1 + $0xec0] sm:$0xff]
    %v503 = vld [vmem:[%s1 + $0xec8] sm:$0xff]
    %v504 = vld [vmem:[%s1 + $0xed0] sm:$0xff]
    %v505 = vld [vmem:[%s1 + $0xed8] sm:$0xff]
    %v506 = vld [vmem:[%s1 + $0xee0] sm:$0xff]
    %v507 = vld [vmem:[%s1 + $0xee8] sm:$0xff]
    %v508 = vld [vmem:[%s1 + $0xef0] sm:$0xff]
    %v509 = vld [vmem:[%s1 + $0xef8] sm:$0xff]
    %v510 = vld [vmem:[%s1 + $0xf00] sm:$0xff]
    %v511 = vld [vmem:[%s1 + $0xf08] sm:$0xff]
    %v512 = vld [vmem:[%s1 + $0xf10] sm:$0xff]
    %v513 = vld [vmem:[%s1 + $0xf18] sm:$0xff]
    %v514 = vld [vmem:[%s1 + $0xf20] sm:$0xff]
    %v515 = vld [vmem:[%s1 + $0xf28] sm:$0xff]
    %v516 = vld [vmem:[%s1 + $0xf30] sm:$0xff]
    %v517 = vld [vmem:[%s1 + $0xf38] sm:$0xff]
    %v518 = vld [vmem:[%s1 + $0xf40] sm:$0xff]
    %v519 = vld [vmem:[%s1 + $0xf48] sm:$0xff]
    %v520 = vld [vmem:[%s1 + $0xf50] sm:$0xff]
    %v521 = vld [vmem:[%s1 + $0xf58] sm:$0xff]
    %v522 = vld [vmem:[%s1 + $0xf60] sm:$0xff]
    %v523 = vld [vmem:[%s1 + $0xf68] sm:$0xff]
    %v524 = vld [vmem:[%s1 + $0xf70] sm:$0xff]
    %v525 = vld [vmem:[%s1 + $0xf78] sm:$0xff]
    %v526 = vld [vmem:[%s1 + $0xf80] sm:$0xff]
    %v527 = vld [vmem:[%s1 + $0xf88] sm:$0xff]
    %v528 = vld [vmem:[%s1 + $0xf90] sm:$0xff]
    %v529 = vld [vmem:[%s1 + $0xf98] sm:$0xff]
    %v530 = vld [vmem:[%s1 + $0xfa0] sm:$0xff]
    %v531 = vld [vmem:[%s1 + $0xfa8] sm:$0xff]
    %v532 = vld [vmem:[%s1 + $0xfb0] sm:$0xff]
    %v533 = vld [vmem:[%s1 + $0xfb8] sm:$0xff]
    %v534 = vld [vmem:[%s1 + $0xfc0] sm:$0xff]
    %v535 = vld [vmem:[%s1 + $0xfc8] sm:$0xff]
    %v536 = vld [vmem:[%s1 + $0xfd0] sm:$0xff]
    %v537 = vld [vmem:[%s1 + $0xfd8] sm:$0xff]
    %v538 = vld [vmem:[%s1 + $0xfe0] sm:$0xff]
    %v539 = vld [vmem:[%s1 + $0xfe8] sm:$0xff]
    %v540 = vld [vmem:[%s1 + $0xff0] sm:$0xff]
    %v541 = vld [vmem:[%s1 + $0xff8] sm:$0xff]
    %v542 = vld [vmem:[%s2] sm:$0xf]
    %v544 = vlaneseq
    %v545 = vshrl.u32 %v544, 7
    %v546 = vsub.s32 0, %v545
    %v547 = vrot.slane %v542, %v546
    %v548 = vlaneseq
    %v549 = vshrl.u32 %v548, 7
    %v550 = vsub.s32 1, %v549
    %v551 = vrot.slane %v542, %v550
    %v552 = vlaneseq
    %v553 = vshrl.u32 %v552, 7
    %v554 = vsub.s32 2, %v553
    %v555 = vrot.slane %v542, %v554
    %v556 = vlaneseq
    %v557 = vshrl.u32 %v556, 7
    %v558 = vsub.s32 3, %v557
    %v559 = vrot.slane %v542, %v558
    %v566 = vcombine.high %v28, %v28
    %v568 = vunpack.c.l.s4 1966171168
    %v569 = vunpack.c.0.s8 %v568
    %v570 = vlaneseq
    %v571 = vshrl.u32 %v570, 7
    %v572 = vsub.s32 %v569, %v571
    %v573 = vrot.slane %v28, %v572
    %v575 = vunpack.c.l.s4 1966171168
    %v576 = vunpack.c.0.s8 %v575
    %v577 = vlaneseq
    %v578 = vshrl.u32 %v577, 7
    %v579 = vsub.s32 %v576, %v578
    %v580 = vrot.slane %v566, %v579
    %v581 = vcombine.high %v573, %v573
    %v582 = vcombine.high %v580, %v580
    %v584 = vunpack.c.l.s4 1966171168
    %v585 = vunpack.c.0.s8 %v584
    %v586 = vlaneseq
    %v587 = vshrl.u32 %v586, 7
    %v588 = vsub.s32 %v585, %v587
    %v589 = vrot.slane %v573, %v588
    %v591 = vunpack.c.l.s4 1966171168
    %v592 = vunpack.c.0.s8 %v591
    %v593 = vlaneseq
    %v594 = vshrl.u32 %v593, 7
    %v595 = vsub.s32 %v592, %v594
    %v596 = vrot.slane %v580, %v595
    %v598 = vunpack.c.l.s4 1966171168
    %v599 = vunpack.c.0.s8 %v598
    %v600 = vlaneseq
    %v601 = vshrl.u32 %v600, 7
    %v602 = vsub.s32 %v599, %v601
    %v603 = vrot.slane %v581, %v602
    %v605 = vunpack.c.l.s4 1966171168
    %v606 = vunpack.c.0.s8 %v605
    %v607 = vlaneseq
    %v608 = vshrl.u32 %v607, 7
    %v609 = vsub.s32 %v606, %v608
    %v610 = vrot.slane %v582, %v609
    %v611 = vcombine.high %v589, %v589
    %v612 = vcombine.high %v596, %v596
    %v613 = vcombine.high %v603, %v603
    %v614 = vcombine.high %v610, %v610
    %v615 = vcombine.high %v29, %v29
    %v617 = vunpack.c.l.s4 1966171168
    %v618 = vunpack.c.0.s8 %v617
    %v619 = vlaneseq
    %v620 = vshrl.u32 %v619, 7
    %v621 = vsub.s32 %v618, %v620
    %v622 = vrot.slane %v29, %v621
    %v624 = vunpack.c.l.s4 1966171168
    %v625 = vunpack.c.0.s8 %v624
    %v626 = vlaneseq
    %v627 = vshrl.u32 %v626, 7
    %v628 = vsub.s32 %v625, %v627
    %v629 = vrot.slane %v615, %v628
    %v630 = vcombine.high %v622, %v622
    %v631 = vcombine.high %v629, %v629
    %v633 = vunpack.c.l.s4 1966171168
    %v634 = vunpack.c.0.s8 %v633
    %v635 = vlaneseq
    %v636 = vshrl.u32 %v635, 7
    %v637 = vsub.s32 %v634, %v636
    %v638 = vrot.slane %v622, %v637
    %v640 = vunpack.c.l.s4 1966171168
    %v641 = vunpack.c.0.s8 %v640
    %v642 = vlaneseq
    %v643 = vshrl.u32 %v642, 7
    %v644 = vsub.s32 %v641, %v643
    %v645 = vrot.slane %v629, %v644
    %v647 = vunpack.c.l.s4 1966171168
    %v648 = vunpack.c.0.s8 %v647
    %v649 = vlaneseq
    %v650 = vshrl.u32 %v649, 7
    %v651 = vsub.s32 %v648, %v650
    %v652 = vrot.slane %v630, %v651
    %v654 = vunpack.c.l.s4 1966171168
    %v655 = vunpack.c.0.s8 %v654
    %v656 = vlaneseq
    %v657 = vshrl.u32 %v656, 7
    %v658 = vsub.s32 %v655, %v657
    %v659 = vrot.slane %v631, %v658
    %v660 = vcombine.high %v638, %v638
    %v661 = vcombine.high %v645, %v645
    %v662 = vcombine.high %v652, %v652
    %v663 = vcombine.high %v659, %v659
    %v1192 = vunpack.c.l.b16 %v30
    %v1193 = vunpack.c.h.b16 %v30
    %v1194 = vunpack.c.l.b16 %v31
    %v1195 = vunpack.c.h.b16 %v31
    %v1196 = vunpack.c.l.b16 %v32
    %v1197 = vunpack.c.h.b16 %v32
    %v1198 = vunpack.c.l.b16 %v33
    %v1199 = vunpack.c.h.b16 %v33
    %v1200 = vunpack.c.l.b16 %v34
    %v1201 = vunpack.c.h.b16 %v34
    %v1202 = vunpack.c.l.b16 %v35
    %v1203 = vunpack.c.h.b16 %v35
    %v1204 = vunpack.c.l.b16 %v36
    %v1205 = vunpack.c.h.b16 %v36
    %v1206 = vunpack.c.l.b16 %v37
    %v1207 = vunpack.c.h.b16 %v37
    %v1208 = vunpack.c.l.b16 %v38
    %v1209 = vunpack.c.h.b16 %v38
    %v1210 = vunpack.c.l.b16 %v39
    %v1211 = vunpack.c.h.b16 %v39
    %v1212 = vunpack.c.l.b16 %v40
    %v1213 = vunpack.c.h.b16 %v40
    %v1214 = vunpack.c.l.b16 %v41
    %v1215 = vunpack.c.h.b16 %v41
    %v1216 = vunpack.c.l.b16 %v42
    %v1217 = vunpack.c.h.b16 %v42
    %v1218 = vunpack.c.l.b16 %v43
    %v1219 = vunpack.c.h.b16 %v43
    %v1220 = vunpack.c.l.b16 %v44
    %v1221 = vunpack.c.h.b16 %v44
    %v1222 = vunpack.c.l.b16 %v45
    %v1223 = vunpack.c.h.b16 %v45
    %v1224 = vunpack.c.l.b16 %v46
    %v1225 = vunpack.c.h.b16 %v46
    %v1226 = vunpack.c.l.b16 %v47
    %v1227 = vunpack.c.h.b16 %v47
    %v1228 = vunpack.c.l.b16 %v48
    %v1229 = vunpack.c.h.b16 %v48
    %v1230 = vunpack.c.l.b16 %v49
    %v1231 = vunpack.c.h.b16 %v49
    %v1232 = vunpack.c.l.b16 %v50
    %v1233 = vunpack.c.h.b16 %v50
    %v1234 = vunpack.c.l.b16 %v51
    %v1235 = vunpack.c.h.b16 %v51
    %v1236 = vunpack.c.l.b16 %v52
    %v1237 = vunpack.c.h.b16 %v52
    %v1238 = vunpack.c.l.b16 %v53
    %v1239 = vunpack.c.h.b16 %v53
    %v1240 = vunpack.c.l.b16 %v54
    %v1241 = vunpack.c.h.b16 %v54
    %v1242 = vunpack.c.l.b16 %v55
    %v1243 = vunpack.c.h.b16 %v55
    %v1244 = vunpack.c.l.b16 %v56
    %v1245 = vunpack.c.h.b16 %v56
    %v1246 = vunpack.c.l.b16 %v57
    %v1247 = vunpack.c.h.b16 %v57
    %v1248 = vunpack.c.l.b16 %v58
    %v1249 = vunpack.c.h.b16 %v58
    %v1250 = vunpack.c.l.b16 %v59
    %v1251 = vunpack.c.h.b16 %v59
    %v1252 = vunpack.c.l.b16 %v60
    %v1253 = vunpack.c.h.b16 %v60
    %v1254 = vunpack.c.l.b16 %v61
    %v1255 = vunpack.c.h.b16 %v61
    %v1256 = vunpack.c.l.b16 %v62
    %v1257 = vunpack.c.h.b16 %v62
    %v1258 = vunpack.c.l.b16 %v63
    %v1259 = vunpack.c.h.b16 %v63
    %v1260 = vunpack.c.l.b16 %v64
    %v1261 = vunpack.c.h.b16 %v64
    %v1262 = vunpack.c.l.b16 %v65
    %v1263 = vunpack.c.h.b16 %v65
    %v1264 = vunpack.c.l.b16 %v66
    %v1265 = vunpack.c.h.b16 %v66
    %v1266 = vunpack.c.l.b16 %v67
    %v1267 = vunpack.c.h.b16 %v67
    %v1268 = vunpack.c.l.b16 %v68
    %v1269 = vunpack.c.h.b16 %v68
    %v1270 = vunpack.c.l.b16 %v69
    %v1271 = vunpack.c.h.b16 %v69
    %v1272 = vunpack.c.l.b16 %v70
    %v1273 = vunpack.c.h.b16 %v70
    %v1274 = vunpack.c.l.b16 %v71
    %v1275 = vunpack.c.h.b16 %v71
    %v1276 = vunpack.c.l.b16 %v72
    %v1277 = vunpack.c.h.b16 %v72
    %v1278 = vunpack.c.l.b16 %v73
    %v1279 = vunpack.c.h.b16 %v73
    %v1280 = vunpack.c.l.b16 %v74
    %v1281 = vunpack.c.h.b16 %v74
    %v1282 = vunpack.c.l.b16 %v75
    %v1283 = vunpack.c.h.b16 %v75
    %v1284 = vunpack.c.l.b16 %v76
    %v1285 = vunpack.c.h.b16 %v76
    %v1286 = vunpack.c.l.b16 %v77
    %v1287 = vunpack.c.h.b16 %v77
    %v1288 = vunpack.c.l.b16 %v78
    %v1289 = vunpack.c.h.b16 %v78
    %v1290 = vunpack.c.l.b16 %v79
    %v1291 = vunpack.c.h.b16 %v79
    %v1292 = vunpack.c.l.b16 %v80
    %v1293 = vunpack.c.h.b16 %v80
    %v1294 = vunpack.c.l.b16 %v81
    %v1295 = vunpack.c.h.b16 %v81
    %v1296 = vunpack.c.l.b16 %v82
    %v1297 = vunpack.c.h.b16 %v82
    %v1298 = vunpack.c.l.b16 %v83
    %v1299 = vunpack.c.h.b16 %v83
    %v1300 = vunpack.c.l.b16 %v84
    %v1301 = vunpack.c.h.b16 %v84
    %v1302 = vunpack.c.l.b16 %v85
    %v1303 = vunpack.c.h.b16 %v85
    %v1304 = vunpack.c.l.b16 %v86
    %v1305 = vunpack.c.h.b16 %v86
    %v1306 = vunpack.c.l.b16 %v87
    %v1307 = vunpack.c.h.b16 %v87
    %v1308 = vunpack.c.l.b16 %v88
    %v1309 = vunpack.c.h.b16 %v88
    %v1310 = vunpack.c.l.b16 %v89
    %v1311 = vunpack.c.h.b16 %v89
    %v1312 = vunpack.c.l.b16 %v90
    %v1313 = vunpack.c.h.b16 %v90
    %v1314 = vunpack.c.l.b16 %v91
    %v1315 = vunpack.c.h.b16 %v91
    %v1316 = vunpack.c.l.b16 %v92
    %v1317 = vunpack.c.h.b16 %v92
    %v1318 = vunpack.c.l.b16 %v93
    %v1319 = vunpack.c.h.b16 %v93
    %v1320 = vunpack.c.l.b16 %v94
    %v1321 = vunpack.c.h.b16 %v94
    %v1322 = vunpack.c.l.b16 %v95
    %v1323 = vunpack.c.h.b16 %v95
    %v1324 = vunpack.c.l.b16 %v96
    %v1325 = vunpack.c.h.b16 %v96
    %v1326 = vunpack.c.l.b16 %v97
    %v1327 = vunpack.c.h.b16 %v97
    %v1328 = vunpack.c.l.b16 %v98
    %v1329 = vunpack.c.h.b16 %v98
    %v1330 = vunpack.c.l.b16 %v99
    %v1331 = vunpack.c.h.b16 %v99
    %v1332 = vunpack.c.l.b16 %v100
    %v1333 = vunpack.c.h.b16 %v100
    %v1334 = vunpack.c.l.b16 %v101
    %v1335 = vunpack.c.h.b16 %v101
    %v1336 = vunpack.c.l.b16 %v102
    %v1337 = vunpack.c.h.b16 %v102
    %v1338 = vunpack.c.l.b16 %v103
    %v1339 = vunpack.c.h.b16 %v103
    %v1340 = vunpack.c.l.b16 %v104
    %v1341 = vunpack.c.h.b16 %v104
    %v1342 = vunpack.c.l.b16 %v105
    %v1343 = vunpack.c.h.b16 %v105
    %v1344 = vunpack.c.l.b16 %v106
    %v1345 = vunpack.c.h.b16 %v106
    %v1346 = vunpack.c.l.b16 %v107
    %v1347 = vunpack.c.h.b16 %v107
    %v1348 = vunpack.c.l.b16 %v108
    %v1349 = vunpack.c.h.b16 %v108
    %v1350 = vunpack.c.l.b16 %v109
    %v1351 = vunpack.c.h.b16 %v109
    %v1352 = vunpack.c.l.b16 %v110
    %v1353 = vunpack.c.h.b16 %v110
    %v1354 = vunpack.c.l.b16 %v111
    %v1355 = vunpack.c.h.b16 %v111
    %v1356 = vunpack.c.l.b16 %v112
    %v1357 = vunpack.c.h.b16 %v112
    %v1358 = vunpack.c.l.b16 %v113
    %v1359 = vunpack.c.h.b16 %v113
    %v1360 = vunpack.c.l.b16 %v114
    %v1361 = vunpack.c.h.b16 %v114
    %v1362 = vunpack.c.l.b16 %v115
    %v1363 = vunpack.c.h.b16 %v115
    %v1364 = vunpack.c.l.b16 %v116
    %v1365 = vunpack.c.h.b16 %v116
    %v1366 = vunpack.c.l.b16 %v117
    %v1367 = vunpack.c.h.b16 %v117
    %v1368 = vunpack.c.l.b16 %v118
    %v1369 = vunpack.c.h.b16 %v118
    %v1370 = vunpack.c.l.b16 %v119
    %v1371 = vunpack.c.h.b16 %v119
    %v1372 = vunpack.c.l.b16 %v120
    %v1373 = vunpack.c.h.b16 %v120
    %v1374 = vunpack.c.l.b16 %v121
    %v1375 = vunpack.c.h.b16 %v121
    %v1376 = vunpack.c.l.b16 %v122
    %v1377 = vunpack.c.h.b16 %v122
    %v1378 = vunpack.c.l.b16 %v123
    %v1379 = vunpack.c.h.b16 %v123
    %v1380 = vunpack.c.l.b16 %v124
    %v1381 = vunpack.c.h.b16 %v124
    %v1382 = vunpack.c.l.b16 %v125
    %v1383 = vunpack.c.h.b16 %v125
    %v1384 = vunpack.c.l.b16 %v126
    %v1385 = vunpack.c.h.b16 %v126
    %v1386 = vunpack.c.l.b16 %v127
    %v1387 = vunpack.c.h.b16 %v127
    %v1388 = vunpack.c.l.b16 %v128
    %v1389 = vunpack.c.h.b16 %v128
    %v1390 = vunpack.c.l.b16 %v129
    %v1391 = vunpack.c.h.b16 %v129
    %v1392 = vunpack.c.l.b16 %v130
    %v1393 = vunpack.c.h.b16 %v130
    %v1394 = vunpack.c.l.b16 %v131
    %v1395 = vunpack.c.h.b16 %v131
    %v1396 = vunpack.c.l.b16 %v132
    %v1397 = vunpack.c.h.b16 %v132
    %v1398 = vunpack.c.l.b16 %v133
    %v1399 = vunpack.c.h.b16 %v133
    %v1400 = vunpack.c.l.b16 %v134
    %v1401 = vunpack.c.h.b16 %v134
    %v1402 = vunpack.c.l.b16 %v135
    %v1403 = vunpack.c.h.b16 %v135
    %v1404 = vunpack.c.l.b16 %v136
    %v1405 = vunpack.c.h.b16 %v136
    %v1406 = vunpack.c.l.b16 %v137
    %v1407 = vunpack.c.h.b16 %v137
    %v1408 = vunpack.c.l.b16 %v138
    %v1409 = vunpack.c.h.b16 %v138
    %v1410 = vunpack.c.l.b16 %v139
    %v1411 = vunpack.c.h.b16 %v139
    %v1412 = vunpack.c.l.b16 %v140
    %v1413 = vunpack.c.h.b16 %v140
    %v1414 = vunpack.c.l.b16 %v141
    %v1415 = vunpack.c.h.b16 %v141
    %v1416 = vunpack.c.l.b16 %v142
    %v1417 = vunpack.c.h.b16 %v142
    %v1418 = vunpack.c.l.b16 %v143
    %v1419 = vunpack.c.h.b16 %v143
    %v1420 = vunpack.c.l.b16 %v144
    %v1421 = vunpack.c.h.b16 %v144
    %v1422 = vunpack.c.l.b16 %v145
    %v1423 = vunpack.c.h.b16 %v145
    %v1424 = vunpack.c.l.b16 %v146
    %v1425 = vunpack.c.h.b16 %v146
    %v1426 = vunpack.c.l.b16 %v147
    %v1427 = vunpack.c.h.b16 %v147
    %v1428 = vunpack.c.l.b16 %v148
    %v1429 = vunpack.c.h.b16 %v148
    %v1430 = vunpack.c.l.b16 %v149
    %v1431 = vunpack.c.h.b16 %v149
    %v1432 = vunpack.c.l.b16 %v150
    %v1433 = vunpack.c.h.b16 %v150
    %v1434 = vunpack.c.l.b16 %v151
    %v1435 = vunpack.c.h.b16 %v151
    %v1436 = vunpack.c.l.b16 %v152
    %v1437 = vunpack.c.h.b16 %v152
    %v1438 = vunpack.c.l.b16 %v153
    %v1439 = vunpack.c.h.b16 %v153
    %v1440 = vunpack.c.l.b16 %v154
    %v1441 = vunpack.c.h.b16 %v154
    %v1442 = vunpack.c.l.b16 %v155
    %v1443 = vunpack.c.h.b16 %v155
    %v1444 = vunpack.c.l.b16 %v156
    %v1445 = vunpack.c.h.b16 %v156
    %v1446 = vunpack.c.l.b16 %v157
    %v1447 = vunpack.c.h.b16 %v157
    %v1448 = vunpack.c.l.b16 %v158
    %v1449 = vunpack.c.h.b16 %v158
    %v1450 = vunpack.c.l.b16 %v159
    %v1451 = vunpack.c.h.b16 %v159
    %v1452 = vunpack.c.l.b16 %v160
    %v1453 = vunpack.c.h.b16 %v160
    %v1454 = vunpack.c.l.b16 %v161
    %v1455 = vunpack.c.h.b16 %v161
    %v1456 = vunpack.c.l.b16 %v162
    %v1457 = vunpack.c.h.b16 %v162
    %v1458 = vunpack.c.l.b16 %v163
    %v1459 = vunpack.c.h.b16 %v163
    %v1460 = vunpack.c.l.b16 %v164
    %v1461 = vunpack.c.h.b16 %v164
    %v1462 = vunpack.c.l.b16 %v165
    %v1463 = vunpack.c.h.b16 %v165
    %v1464 = vunpack.c.l.b16 %v166
    %v1465 = vunpack.c.h.b16 %v166
    %v1466 = vunpack.c.l.b16 %v167
    %v1467 = vunpack.c.h.b16 %v167
    %v1468 = vunpack.c.l.b16 %v168
    %v1469 = vunpack.c.h.b16 %v168
    %v1470 = vunpack.c.l.b16 %v169
    %v1471 = vunpack.c.h.b16 %v169
    %v1472 = vunpack.c.l.b16 %v170
    %v1473 = vunpack.c.h.b16 %v170
    %v1474 = vunpack.c.l.b16 %v171
    %v1475 = vunpack.c.h.b16 %v171
    %v1476 = vunpack.c.l.b16 %v172
    %v1477 = vunpack.c.h.b16 %v172
    %v1478 = vunpack.c.l.b16 %v173
    %v1479 = vunpack.c.h.b16 %v173
    %v1480 = vunpack.c.l.b16 %v174
    %v1481 = vunpack.c.h.b16 %v174
    %v1482 = vunpack.c.l.b16 %v175
    %v1483 = vunpack.c.h.b16 %v175
    %v1484 = vunpack.c.l.b16 %v176
    %v1485 = vunpack.c.h.b16 %v176
    %v1486 = vunpack.c.l.b16 %v177
    %v1487 = vunpack.c.h.b16 %v177
    %v1488 = vunpack.c.l.b16 %v178
    %v1489 = vunpack.c.h.b16 %v178
    %v1490 = vunpack.c.l.b16 %v179
    %v1491 = vunpack.c.h.b16 %v179
    %v1492 = vunpack.c.l.b16 %v180
    %v1493 = vunpack.c.h.b16 %v180
    %v1494 = vunpack.c.l.b16 %v181
    %v1495 = vunpack.c.h.b16 %v181
    %v1496 = vunpack.c.l.b16 %v182
    %v1497 = vunpack.c.h.b16 %v182
    %v1498 = vunpack.c.l.b16 %v183
    %v1499 = vunpack.c.h.b16 %v183
    %v1500 = vunpack.c.l.b16 %v184
    %v1501 = vunpack.c.h.b16 %v184
    %v1502 = vunpack.c.l.b16 %v185
    %v1503 = vunpack.c.h.b16 %v185
    %v1504 = vunpack.c.l.b16 %v186
    %v1505 = vunpack.c.h.b16 %v186
    %v1506 = vunpack.c.l.b16 %v187
    %v1507 = vunpack.c.h.b16 %v187
    %v1508 = vunpack.c.l.b16 %v188
    %v1509 = vunpack.c.h.b16 %v188
    %v1510 = vunpack.c.l.b16 %v189
    %v1511 = vunpack.c.h.b16 %v189
    %v1512 = vunpack.c.l.b16 %v190
    %v1513 = vunpack.c.h.b16 %v190
    %v1514 = vunpack.c.l.b16 %v191
    %v1515 = vunpack.c.h.b16 %v191
    %v1516 = vunpack.c.l.b16 %v192
    %v1517 = vunpack.c.h.b16 %v192
    %v1518 = vunpack.c.l.b16 %v193
    %v1519 = vunpack.c.h.b16 %v193
    %v1520 = vunpack.c.l.b16 %v194
    %v1521 = vunpack.c.h.b16 %v194
    %v1522 = vunpack.c.l.b16 %v195
    %v1523 = vunpack.c.h.b16 %v195
    %v1524 = vunpack.c.l.b16 %v196
    %v1525 = vunpack.c.h.b16 %v196
    %v1526 = vunpack.c.l.b16 %v197
    %v1527 = vunpack.c.h.b16 %v197
    %v1528 = vunpack.c.l.b16 %v198
    %v1529 = vunpack.c.h.b16 %v198
    %v1530 = vunpack.c.l.b16 %v199
    %v1531 = vunpack.c.h.b16 %v199
    %v1532 = vunpack.c.l.b16 %v200
    %v1533 = vunpack.c.h.b16 %v200
    %v1534 = vunpack.c.l.b16 %v201
    %v1535 = vunpack.c.h.b16 %v201
    %v1536 = vunpack.c.l.b16 %v202
    %v1537 = vunpack.c.h.b16 %v202
    %v1538 = vunpack.c.l.b16 %v203
    %v1539 = vunpack.c.h.b16 %v203
    %v1540 = vunpack.c.l.b16 %v204
    %v1541 = vunpack.c.h.b16 %v204
    %v1542 = vunpack.c.l.b16 %v205
    %v1543 = vunpack.c.h.b16 %v205
    %v1544 = vunpack.c.l.b16 %v206
    %v1545 = vunpack.c.h.b16 %v206
    %v1546 = vunpack.c.l.b16 %v207
    %v1547 = vunpack.c.h.b16 %v207
    %v1548 = vunpack.c.l.b16 %v208
    %v1549 = vunpack.c.h.b16 %v208
    %v1550 = vunpack.c.l.b16 %v209
    %v1551 = vunpack.c.h.b16 %v209
    %v1552 = vunpack.c.l.b16 %v210
    %v1553 = vunpack.c.h.b16 %v210
    %v1554 = vunpack.c.l.b16 %v211
    %v1555 = vunpack.c.h.b16 %v211
    %v1556 = vunpack.c.l.b16 %v212
    %v1557 = vunpack.c.h.b16 %v212
    %v1558 = vunpack.c.l.b16 %v213
    %v1559 = vunpack.c.h.b16 %v213
    %v1560 = vunpack.c.l.b16 %v214
    %v1561 = vunpack.c.h.b16 %v214
    %v1562 = vunpack.c.l.b16 %v215
    %v1563 = vunpack.c.h.b16 %v215
    %v1564 = vunpack.c.l.b16 %v216
    %v1565 = vunpack.c.h.b16 %v216
    %v1566 = vunpack.c.l.b16 %v217
    %v1567 = vunpack.c.h.b16 %v217
    %v1568 = vunpack.c.l.b16 %v218
    %v1569 = vunpack.c.h.b16 %v218
    %v1570 = vunpack.c.l.b16 %v219
    %v1571 = vunpack.c.h.b16 %v219
    %v1572 = vunpack.c.l.b16 %v220
    %v1573 = vunpack.c.h.b16 %v220
    %v1574 = vunpack.c.l.b16 %v221
    %v1575 = vunpack.c.h.b16 %v221
    %v1576 = vunpack.c.l.b16 %v222
    %v1577 = vunpack.c.h.b16 %v222
    %v1578 = vunpack.c.l.b16 %v223
    %v1579 = vunpack.c.h.b16 %v223
    %v1580 = vunpack.c.l.b16 %v224
    %v1581 = vunpack.c.h.b16 %v224
    %v1582 = vunpack.c.l.b16 %v225
    %v1583 = vunpack.c.h.b16 %v225
    %v1584 = vunpack.c.l.b16 %v226
    %v1585 = vunpack.c.h.b16 %v226
    %v1586 = vunpack.c.l.b16 %v227
    %v1587 = vunpack.c.h.b16 %v227
    %v1588 = vunpack.c.l.b16 %v228
    %v1589 = vunpack.c.h.b16 %v228
    %v1590 = vunpack.c.l.b16 %v229
    %v1591 = vunpack.c.h.b16 %v229
    %v1592 = vunpack.c.l.b16 %v230
    %v1593 = vunpack.c.h.b16 %v230
    %v1594 = vunpack.c.l.b16 %v231
    %v1595 = vunpack.c.h.b16 %v231
    %v1596 = vunpack.c.l.b16 %v232
    %v1597 = vunpack.c.h.b16 %v232
    %v1598 = vunpack.c.l.b16 %v233
    %v1599 = vunpack.c.h.b16 %v233
    %v1600 = vunpack.c.l.b16 %v234
    %v1601 = vunpack.c.h.b16 %v234
    %v1602 = vunpack.c.l.b16 %v235
    %v1603 = vunpack.c.h.b16 %v235
    %v1604 = vunpack.c.l.b16 %v236
    %v1605 = vunpack.c.h.b16 %v236
    %v1606 = vunpack.c.l.b16 %v237
    %v1607 = vunpack.c.h.b16 %v237
    %v1608 = vunpack.c.l.b16 %v238
    %v1609 = vunpack.c.h.b16 %v238
    %v1610 = vunpack.c.l.b16 %v239
    %v1611 = vunpack.c.h.b16 %v239
    %v1612 = vunpack.c.l.b16 %v240
    %v1613 = vunpack.c.h.b16 %v240
    %v1614 = vunpack.c.l.b16 %v241
    %v1615 = vunpack.c.h.b16 %v241
    %v1616 = vunpack.c.l.b16 %v242
    %v1617 = vunpack.c.h.b16 %v242
    %v1618 = vunpack.c.l.b16 %v243
    %v1619 = vunpack.c.h.b16 %v243
    %v1620 = vunpack.c.l.b16 %v244
    %v1621 = vunpack.c.h.b16 %v244
    %v1622 = vunpack.c.l.b16 %v245
    %v1623 = vunpack.c.h.b16 %v245
    %v1624 = vunpack.c.l.b16 %v246
    %v1625 = vunpack.c.h.b16 %v246
    %v1626 = vunpack.c.l.b16 %v247
    %v1627 = vunpack.c.h.b16 %v247
    %v1628 = vunpack.c.l.b16 %v248
    %v1629 = vunpack.c.h.b16 %v248
    %v1630 = vunpack.c.l.b16 %v249
    %v1631 = vunpack.c.h.b16 %v249
    %v1632 = vunpack.c.l.b16 %v250
    %v1633 = vunpack.c.h.b16 %v250
    %v1634 = vunpack.c.l.b16 %v251
    %v1635 = vunpack.c.h.b16 %v251
    %v1636 = vunpack.c.l.b16 %v252
    %v1637 = vunpack.c.h.b16 %v252
    %v1638 = vunpack.c.l.b16 %v253
    %v1639 = vunpack.c.h.b16 %v253
    %v1640 = vunpack.c.l.b16 %v254
    %v1641 = vunpack.c.h.b16 %v254
    %v1642 = vunpack.c.l.b16 %v255
    %v1643 = vunpack.c.h.b16 %v255
    %v1644 = vunpack.c.l.b16 %v256
    %v1645 = vunpack.c.h.b16 %v256
    %v1646 = vunpack.c.l.b16 %v257
    %v1647 = vunpack.c.h.b16 %v257
    %v1648 = vunpack.c.l.b16 %v258
    %v1649 = vunpack.c.h.b16 %v258
    %v1650 = vunpack.c.l.b16 %v259
    %v1651 = vunpack.c.h.b16 %v259
    %v1652 = vunpack.c.l.b16 %v260
    %v1653 = vunpack.c.h.b16 %v260
    %v1654 = vunpack.c.l.b16 %v261
    %v1655 = vunpack.c.h.b16 %v261
    %v1656 = vunpack.c.l.b16 %v262
    %v1657 = vunpack.c.h.b16 %v262
    %v1658 = vunpack.c.l.b16 %v263
    %v1659 = vunpack.c.h.b16 %v263
    %v1660 = vunpack.c.l.b16 %v264
    %v1661 = vunpack.c.h.b16 %v264
    %v1662 = vunpack.c.l.b16 %v265
    %v1663 = vunpack.c.h.b16 %v265
    %v1664 = vunpack.c.l.b16 %v266
    %v1665 = vunpack.c.h.b16 %v266
    %v1666 = vunpack.c.l.b16 %v267
    %v1667 = vunpack.c.h.b16 %v267
    %v1668 = vunpack.c.l.b16 %v268
    %v1669 = vunpack.c.h.b16 %v268
    %v1670 = vunpack.c.l.b16 %v269
    %v1671 = vunpack.c.h.b16 %v269
    %v1672 = vunpack.c.l.b16 %v270
    %v1673 = vunpack.c.h.b16 %v270
    %v1674 = vunpack.c.l.b16 %v271
    %v1675 = vunpack.c.h.b16 %v271
    %v1676 = vunpack.c.l.b16 %v272
    %v1677 = vunpack.c.h.b16 %v272
    %v1678 = vunpack.c.l.b16 %v273
    %v1679 = vunpack.c.h.b16 %v273
    %v1680 = vunpack.c.l.b16 %v274
    %v1681 = vunpack.c.h.b16 %v274
    %v1682 = vunpack.c.l.b16 %v275
    %v1683 = vunpack.c.h.b16 %v275
    %v1684 = vunpack.c.l.b16 %v276
    %v1685 = vunpack.c.h.b16 %v276
    %v1686 = vunpack.c.l.b16 %v277
    %v1687 = vunpack.c.h.b16 %v277
    %v1688 = vunpack.c.l.b16 %v278
    %v1689 = vunpack.c.h.b16 %v278
    %v1690 = vunpack.c.l.b16 %v279
    %v1691 = vunpack.c.h.b16 %v279
    %v1692 = vunpack.c.l.b16 %v280
    %v1693 = vunpack.c.h.b16 %v280
    %v1694 = vunpack.c.l.b16 %v281
    %v1695 = vunpack.c.h.b16 %v281
    %v1696 = vunpack.c.l.b16 %v282
    %v1697 = vunpack.c.h.b16 %v282
    %v1698 = vunpack.c.l.b16 %v283
    %v1699 = vunpack.c.h.b16 %v283
    %v1700 = vunpack.c.l.b16 %v284
    %v1701 = vunpack.c.h.b16 %v284
    %v1702 = vunpack.c.l.b16 %v285
    %v1703 = vunpack.c.h.b16 %v285
    %v1704 = vunpack.c.l.b16 %v286
    %v1705 = vunpack.c.h.b16 %v286
    %v1706 = vunpack.c.l.b16 %v287
    %v1707 = vunpack.c.h.b16 %v287
    %v1708 = vunpack.c.l.b16 %v288
    %v1709 = vunpack.c.h.b16 %v288
    %v1710 = vunpack.c.l.b16 %v289
    %v1711 = vunpack.c.h.b16 %v289
    %v1712 = vunpack.c.l.b16 %v290
    %v1713 = vunpack.c.h.b16 %v290
    %v1714 = vunpack.c.l.b16 %v291
    %v1715 = vunpack.c.h.b16 %v291
    %v1716 = vunpack.c.l.b16 %v292
    %v1717 = vunpack.c.h.b16 %v292
    %v1718 = vunpack.c.l.b16 %v293
    %v1719 = vunpack.c.h.b16 %v293
    %v1720 = vunpack.c.l.b16 %v294
    %v1721 = vunpack.c.h.b16 %v294
    %v1722 = vunpack.c.l.b16 %v295
    %v1723 = vunpack.c.h.b16 %v295
    %v1724 = vunpack.c.l.b16 %v296
    %v1725 = vunpack.c.h.b16 %v296
    %v1726 = vunpack.c.l.b16 %v297
    %v1727 = vunpack.c.h.b16 %v297
    %v1728 = vunpack.c.l.b16 %v298
    %v1729 = vunpack.c.h.b16 %v298
    %v1730 = vunpack.c.l.b16 %v299
    %v1731 = vunpack.c.h.b16 %v299
    %v1732 = vunpack.c.l.b16 %v300
    %v1733 = vunpack.c.h.b16 %v300
    %v1734 = vunpack.c.l.b16 %v301
    %v1735 = vunpack.c.h.b16 %v301
    %v1736 = vunpack.c.l.b16 %v302
    %v1737 = vunpack.c.h.b16 %v302
    %v1738 = vunpack.c.l.b16 %v303
    %v1739 = vunpack.c.h.b16 %v303
    %v1740 = vunpack.c.l.b16 %v304
    %v1741 = vunpack.c.h.b16 %v304
    %v1742 = vunpack.c.l.b16 %v305
    %v1743 = vunpack.c.h.b16 %v305
    %v1744 = vunpack.c.l.b16 %v306
    %v1745 = vunpack.c.h.b16 %v306
    %v1746 = vunpack.c.l.b16 %v307
    %v1747 = vunpack.c.h.b16 %v307
    %v1748 = vunpack.c.l.b16 %v308
    %v1749 = vunpack.c.h.b16 %v308
    %v1750 = vunpack.c.l.b16 %v309
    %v1751 = vunpack.c.h.b16 %v309
    %v1752 = vunpack.c.l.b16 %v310
    %v1753 = vunpack.c.h.b16 %v310
    %v1754 = vunpack.c.l.b16 %v311
    %v1755 = vunpack.c.h.b16 %v311
    %v1756 = vunpack.c.l.b16 %v312
    %v1757 = vunpack.c.h.b16 %v312
    %v1758 = vunpack.c.l.b16 %v313
    %v1759 = vunpack.c.h.b16 %v313
    %v1760 = vunpack.c.l.b16 %v314
    %v1761 = vunpack.c.h.b16 %v314
    %v1762 = vunpack.c.l.b16 %v315
    %v1763 = vunpack.c.h.b16 %v315
    %v1764 = vunpack.c.l.b16 %v316
    %v1765 = vunpack.c.h.b16 %v316
    %v1766 = vunpack.c.l.b16 %v317
    %v1767 = vunpack.c.h.b16 %v317
    %v1768 = vunpack.c.l.b16 %v318
    %v1769 = vunpack.c.h.b16 %v318
    %v1770 = vunpack.c.l.b16 %v319
    %v1771 = vunpack.c.h.b16 %v319
    %v1772 = vunpack.c.l.b16 %v320
    %v1773 = vunpack.c.h.b16 %v320
    %v1774 = vunpack.c.l.b16 %v321
    %v1775 = vunpack.c.h.b16 %v321
    %v1776 = vunpack.c.l.b16 %v322
    %v1777 = vunpack.c.h.b16 %v322
    %v1778 = vunpack.c.l.b16 %v323
    %v1779 = vunpack.c.h.b16 %v323
    %v1780 = vunpack.c.l.b16 %v324
    %v1781 = vunpack.c.h.b16 %v324
    %v1782 = vunpack.c.l.b16 %v325
    %v1783 = vunpack.c.h.b16 %v325
    %v1784 = vunpack.c.l.b16 %v326
    %v1785 = vunpack.c.h.b16 %v326
    %v1786 = vunpack.c.l.b16 %v327
    %v1787 = vunpack.c.h.b16 %v327
    %v1788 = vunpack.c.l.b16 %v328
    %v1789 = vunpack.c.h.b16 %v328
    %v1790 = vunpack.c.l.b16 %v329
    %v1791 = vunpack.c.h.b16 %v329
    %v1792 = vunpack.c.l.b16 %v330
    %v1793 = vunpack.c.h.b16 %v330
    %v1794 = vunpack.c.l.b16 %v331
    %v1795 = vunpack.c.h.b16 %v331
    %v1796 = vunpack.c.l.b16 %v332
    %v1797 = vunpack.c.h.b16 %v332
    %v1798 = vunpack.c.l.b16 %v333
    %v1799 = vunpack.c.h.b16 %v333
    %v1800 = vunpack.c.l.b16 %v334
    %v1801 = vunpack.c.h.b16 %v334
    %v1802 = vunpack.c.l.b16 %v335
    %v1803 = vunpack.c.h.b16 %v335
    %v1804 = vunpack.c.l.b16 %v336
    %v1805 = vunpack.c.h.b16 %v336
    %v1806 = vunpack.c.l.b16 %v337
    %v1807 = vunpack.c.h.b16 %v337
    %v1808 = vunpack.c.l.b16 %v338
    %v1809 = vunpack.c.h.b16 %v338
    %v1810 = vunpack.c.l.b16 %v339
    %v1811 = vunpack.c.h.b16 %v339
    %v1812 = vunpack.c.l.b16 %v340
    %v1813 = vunpack.c.h.b16 %v340
    %v1814 = vunpack.c.l.b16 %v341
    %v1815 = vunpack.c.h.b16 %v341
    %v1816 = vunpack.c.l.b16 %v342
    %v1817 = vunpack.c.h.b16 %v342
    %v1818 = vunpack.c.l.b16 %v343
    %v1819 = vunpack.c.h.b16 %v343
    %v1820 = vunpack.c.l.b16 %v344
    %v1821 = vunpack.c.h.b16 %v344
    %v1822 = vunpack.c.l.b16 %v345
    %v1823 = vunpack.c.h.b16 %v345
    %v1824 = vunpack.c.l.b16 %v346
    %v1825 = vunpack.c.h.b16 %v346
    %v1826 = vunpack.c.l.b16 %v347
    %v1827 = vunpack.c.h.b16 %v347
    %v1828 = vunpack.c.l.b16 %v348
    %v1829 = vunpack.c.h.b16 %v348
    %v1830 = vunpack.c.l.b16 %v349
    %v1831 = vunpack.c.h.b16 %v349
    %v1832 = vunpack.c.l.b16 %v350
    %v1833 = vunpack.c.h.b16 %v350
    %v1834 = vunpack.c.l.b16 %v351
    %v1835 = vunpack.c.h.b16 %v351
    %v1836 = vunpack.c.l.b16 %v352
    %v1837 = vunpack.c.h.b16 %v352
    %v1838 = vunpack.c.l.b16 %v353
    %v1839 = vunpack.c.h.b16 %v353
    %v1840 = vunpack.c.l.b16 %v354
    %v1841 = vunpack.c.h.b16 %v354
    %v1842 = vunpack.c.l.b16 %v355
    %v1843 = vunpack.c.h.b16 %v355
    %v1844 = vunpack.c.l.b16 %v356
    %v1845 = vunpack.c.h.b16 %v356
    %v1846 = vunpack.c.l.b16 %v357
    %v1847 = vunpack.c.h.b16 %v357
    %v1848 = vunpack.c.l.b16 %v358
    %v1849 = vunpack.c.h.b16 %v358
    %v1850 = vunpack.c.l.b16 %v359
    %v1851 = vunpack.c.h.b16 %v359
    %v1852 = vunpack.c.l.b16 %v360
    %v1853 = vunpack.c.h.b16 %v360
    %v1854 = vunpack.c.l.b16 %v361
    %v1855 = vunpack.c.h.b16 %v361
    %v1856 = vunpack.c.l.b16 %v362
    %v1857 = vunpack.c.h.b16 %v362
    %v1858 = vunpack.c.l.b16 %v363
    %v1859 = vunpack.c.h.b16 %v363
    %v1860 = vunpack.c.l.b16 %v364
    %v1861 = vunpack.c.h.b16 %v364
    %v1862 = vunpack.c.l.b16 %v365
    %v1863 = vunpack.c.h.b16 %v365
    %v1864 = vunpack.c.l.b16 %v366
    %v1865 = vunpack.c.h.b16 %v366
    %v1866 = vunpack.c.l.b16 %v367
    %v1867 = vunpack.c.h.b16 %v367
    %v1868 = vunpack.c.l.b16 %v368
    %v1869 = vunpack.c.h.b16 %v368
    %v1870 = vunpack.c.l.b16 %v369
    %v1871 = vunpack.c.h.b16 %v369
    %v1872 = vunpack.c.l.b16 %v370
    %v1873 = vunpack.c.h.b16 %v370
    %v1874 = vunpack.c.l.b16 %v371
    %v1875 = vunpack.c.h.b16 %v371
    %v1876 = vunpack.c.l.b16 %v372
    %v1877 = vunpack.c.h.b16 %v372
    %v1878 = vunpack.c.l.b16 %v373
    %v1879 = vunpack.c.h.b16 %v373
    %v1880 = vunpack.c.l.b16 %v374
    %v1881 = vunpack.c.h.b16 %v374
    %v1882 = vunpack.c.l.b16 %v375
    %v1883 = vunpack.c.h.b16 %v375
    %v1884 = vunpack.c.l.b16 %v376
    %v1885 = vunpack.c.h.b16 %v376
    %v1886 = vunpack.c.l.b16 %v377
    %v1887 = vunpack.c.h.b16 %v377
    %v1888 = vunpack.c.l.b16 %v378
    %v1889 = vunpack.c.h.b16 %v378
    %v1890 = vunpack.c.l.b16 %v379
    %v1891 = vunpack.c.h.b16 %v379
    %v1892 = vunpack.c.l.b16 %v380
    %v1893 = vunpack.c.h.b16 %v380
    %v1894 = vunpack.c.l.b16 %v381
    %v1895 = vunpack.c.h.b16 %v381
    %v1896 = vunpack.c.l.b16 %v382
    %v1897 = vunpack.c.h.b16 %v382
    %v1898 = vunpack.c.l.b16 %v383
    %v1899 = vunpack.c.h.b16 %v383
    %v1900 = vunpack.c.l.b16 %v384
    %v1901 = vunpack.c.h.b16 %v384
    %v1902 = vunpack.c.l.b16 %v385
    %v1903 = vunpack.c.h.b16 %v385
    %v1904 = vunpack.c.l.b16 %v386
    %v1905 = vunpack.c.h.b16 %v386
    %v1906 = vunpack.c.l.b16 %v387
    %v1907 = vunpack.c.h.b16 %v387
    %v1908 = vunpack.c.l.b16 %v388
    %v1909 = vunpack.c.h.b16 %v388
    %v1910 = vunpack.c.l.b16 %v389
    %v1911 = vunpack.c.h.b16 %v389
    %v1912 = vunpack.c.l.b16 %v390
    %v1913 = vunpack.c.h.b16 %v390
    %v1914 = vunpack.c.l.b16 %v391
    %v1915 = vunpack.c.h.b16 %v391
    %v1916 = vunpack.c.l.b16 %v392
    %v1917 = vunpack.c.h.b16 %v392
    %v1918 = vunpack.c.l.b16 %v393
    %v1919 = vunpack.c.h.b16 %v393
    %v1920 = vunpack.c.l.b16 %v394
    %v1921 = vunpack.c.h.b16 %v394
    %v1922 = vunpack.c.l.b16 %v395
    %v1923 = vunpack.c.h.b16 %v395
    %v1924 = vunpack.c.l.b16 %v396
    %v1925 = vunpack.c.h.b16 %v396
    %v1926 = vunpack.c.l.b16 %v397
    %v1927 = vunpack.c.h.b16 %v397
    %v1928 = vunpack.c.l.b16 %v398
    %v1929 = vunpack.c.h.b16 %v398
    %v1930 = vunpack.c.l.b16 %v399
    %v1931 = vunpack.c.h.b16 %v399
    %v1932 = vunpack.c.l.b16 %v400
    %v1933 = vunpack.c.h.b16 %v400
    %v1934 = vunpack.c.l.b16 %v401
    %v1935 = vunpack.c.h.b16 %v401
    %v1936 = vunpack.c.l.b16 %v402
    %v1937 = vunpack.c.h.b16 %v402
    %v1938 = vunpack.c.l.b16 %v403
    %v1939 = vunpack.c.h.b16 %v403
    %v1940 = vunpack.c.l.b16 %v404
    %v1941 = vunpack.c.h.b16 %v404
    %v1942 = vunpack.c.l.b16 %v405
    %v1943 = vunpack.c.h.b16 %v405
    %v1944 = vunpack.c.l.b16 %v406
    %v1945 = vunpack.c.h.b16 %v406
    %v1946 = vunpack.c.l.b16 %v407
    %v1947 = vunpack.c.h.b16 %v407
    %v1948 = vunpack.c.l.b16 %v408
    %v1949 = vunpack.c.h.b16 %v408
    %v1950 = vunpack.c.l.b16 %v409
    %v1951 = vunpack.c.h.b16 %v409
    %v1952 = vunpack.c.l.b16 %v410
    %v1953 = vunpack.c.h.b16 %v410
    %v1954 = vunpack.c.l.b16 %v411
    %v1955 = vunpack.c.h.b16 %v411
    %v1956 = vunpack.c.l.b16 %v412
    %v1957 = vunpack.c.h.b16 %v412
    %v1958 = vunpack.c.l.b16 %v413
    %v1959 = vunpack.c.h.b16 %v413
    %v1960 = vunpack.c.l.b16 %v414
    %v1961 = vunpack.c.h.b16 %v414
    %v1962 = vunpack.c.l.b16 %v415
    %v1963 = vunpack.c.h.b16 %v415
    %v1964 = vunpack.c.l.b16 %v416
    %v1965 = vunpack.c.h.b16 %v416
    %v1966 = vunpack.c.l.b16 %v417
    %v1967 = vunpack.c.h.b16 %v417
    %v1968 = vunpack.c.l.b16 %v418
    %v1969 = vunpack.c.h.b16 %v418
    %v1970 = vunpack.c.l.b16 %v419
    %v1971 = vunpack.c.h.b16 %v419
    %v1972 = vunpack.c.l.b16 %v420
    %v1973 = vunpack.c.h.b16 %v420
    %v1974 = vunpack.c.l.b16 %v421
    %v1975 = vunpack.c.h.b16 %v421
    %v1976 = vunpack.c.l.b16 %v422
    %v1977 = vunpack.c.h.b16 %v422
    %v1978 = vunpack.c.l.b16 %v423
    %v1979 = vunpack.c.h.b16 %v423
    %v1980 = vunpack.c.l.b16 %v424
    %v1981 = vunpack.c.h.b16 %v424
    %v1982 = vunpack.c.l.b16 %v425
    %v1983 = vunpack.c.h.b16 %v425
    %v1984 = vunpack.c.l.b16 %v426
    %v1985 = vunpack.c.h.b16 %v426
    %v1986 = vunpack.c.l.b16 %v427
    %v1987 = vunpack.c.h.b16 %v427
    %v1988 = vunpack.c.l.b16 %v428
    %v1989 = vunpack.c.h.b16 %v428
    %v1990 = vunpack.c.l.b16 %v429
    %v1991 = vunpack.c.h.b16 %v429
    %v1992 = vunpack.c.l.b16 %v430
    %v1993 = vunpack.c.h.b16 %v430
    %v1994 = vunpack.c.l.b16 %v431
    %v1995 = vunpack.c.h.b16 %v431
    %v1996 = vunpack.c.l.b16 %v432
    %v1997 = vunpack.c.h.b16 %v432
    %v1998 = vunpack.c.l.b16 %v433
    %v1999 = vunpack.c.h.b16 %v433
    %v2000 = vunpack.c.l.b16 %v434
    %v2001 = vunpack.c.h.b16 %v434
    %v2002 = vunpack.c.l.b16 %v435
    %v2003 = vunpack.c.h.b16 %v435
    %v2004 = vunpack.c.l.b16 %v436
    %v2005 = vunpack.c.h.b16 %v436
    %v2006 = vunpack.c.l.b16 %v437
    %v2007 = vunpack.c.h.b16 %v437
    %v2008 = vunpack.c.l.b16 %v438
    %v2009 = vunpack.c.h.b16 %v438
    %v2010 = vunpack.c.l.b16 %v439
    %v2011 = vunpack.c.h.b16 %v439
    %v2012 = vunpack.c.l.b16 %v440
    %v2013 = vunpack.c.h.b16 %v440
    %v2014 = vunpack.c.l.b16 %v441
    %v2015 = vunpack.c.h.b16 %v441
    %v2016 = vunpack.c.l.b16 %v442
    %v2017 = vunpack.c.h.b16 %v442
    %v2018 = vunpack.c.l.b16 %v443
    %v2019 = vunpack.c.h.b16 %v443
    %v2020 = vunpack.c.l.b16 %v444
    %v2021 = vunpack.c.h.b16 %v444
    %v2022 = vunpack.c.l.b16 %v445
    %v2023 = vunpack.c.h.b16 %v445
    %v2024 = vunpack.c.l.b16 %v446
    %v2025 = vunpack.c.h.b16 %v446
    %v2026 = vunpack.c.l.b16 %v447
    %v2027 = vunpack.c.h.b16 %v447
    %v2028 = vunpack.c.l.b16 %v448
    %v2029 = vunpack.c.h.b16 %v448
    %v2030 = vunpack.c.l.b16 %v449
    %v2031 = vunpack.c.h.b16 %v449
    %v2032 = vunpack.c.l.b16 %v450
    %v2033 = vunpack.c.h.b16 %v450
    %v2034 = vunpack.c.l.b16 %v451
    %v2035 = vunpack.c.h.b16 %v451
    %v2036 = vunpack.c.l.b16 %v452
    %v2037 = vunpack.c.h.b16 %v452
    %v2038 = vunpack.c.l.b16 %v453
    %v2039 = vunpack.c.h.b16 %v453
    %v2040 = vunpack.c.l.b16 %v454
    %v2041 = vunpack.c.h.b16 %v454
    %v2042 = vunpack.c.l.b16 %v455
    %v2043 = vunpack.c.h.b16 %v455
    %v2044 = vunpack.c.l.b16 %v456
    %v2045 = vunpack.c.h.b16 %v456
    %v2046 = vunpack.c.l.b16 %v457
    %v2047 = vunpack.c.h.b16 %v457
    %v2048 = vunpack.c.l.b16 %v458
    %v2049 = vunpack.c.h.b16 %v458
    %v2050 = vunpack.c.l.b16 %v459
    %v2051 = vunpack.c.h.b16 %v459
    %v2052 = vunpack.c.l.b16 %v460
    %v2053 = vunpack.c.h.b16 %v460
    %v2054 = vunpack.c.l.b16 %v461
    %v2055 = vunpack.c.h.b16 %v461
    %v2056 = vunpack.c.l.b16 %v462
    %v2057 = vunpack.c.h.b16 %v462
    %v2058 = vunpack.c.l.b16 %v463
    %v2059 = vunpack.c.h.b16 %v463
    %v2060 = vunpack.c.l.b16 %v464
    %v2061 = vunpack.c.h.b16 %v464
    %v2062 = vunpack.c.l.b16 %v465
    %v2063 = vunpack.c.h.b16 %v465
    %v2064 = vunpack.c.l.b16 %v466
    %v2065 = vunpack.c.h.b16 %v466
    %v2066 = vunpack.c.l.b16 %v467
    %v2067 = vunpack.c.h.b16 %v467
    %v2068 = vunpack.c.l.b16 %v468
    %v2069 = vunpack.c.h.b16 %v468
    %v2070 = vunpack.c.l.b16 %v469
    %v2071 = vunpack.c.h.b16 %v469
    %v2072 = vunpack.c.l.b16 %v470
    %v2073 = vunpack.c.h.b16 %v470
    %v2074 = vunpack.c.l.b16 %v471
    %v2075 = vunpack.c.h.b16 %v471
    %v2076 = vunpack.c.l.b16 %v472
    %v2077 = vunpack.c.h.b16 %v472
    %v2078 = vunpack.c.l.b16 %v473
    %v2079 = vunpack.c.h.b16 %v473
    %v2080 = vunpack.c.l.b16 %v474
    %v2081 = vunpack.c.h.b16 %v474
    %v2082 = vunpack.c.l.b16 %v475
    %v2083 = vunpack.c.h.b16 %v475
    %v2084 = vunpack.c.l.b16 %v476
    %v2085 = vunpack.c.h.b16 %v476
    %v2086 = vunpack.c.l.b16 %v477
    %v2087 = vunpack.c.h.b16 %v477
    %v2088 = vunpack.c.l.b16 %v478
    %v2089 = vunpack.c.h.b16 %v478
    %v2090 = vunpack.c.l.b16 %v479
    %v2091 = vunpack.c.h.b16 %v479
    %v2092 = vunpack.c.l.b16 %v480
    %v2093 = vunpack.c.h.b16 %v480
    %v2094 = vunpack.c.l.b16 %v481
    %v2095 = vunpack.c.h.b16 %v481
    %v2096 = vunpack.c.l.b16 %v482
    %v2097 = vunpack.c.h.b16 %v482
    %v2098 = vunpack.c.l.b16 %v483
    %v2099 = vunpack.c.h.b16 %v483
    %v2100 = vunpack.c.l.b16 %v484
    %v2101 = vunpack.c.h.b16 %v484
    %v2102 = vunpack.c.l.b16 %v485
    %v2103 = vunpack.c.h.b16 %v485
    %v2104 = vunpack.c.l.b16 %v486
    %v2105 = vunpack.c.h.b16 %v486
    %v2106 = vunpack.c.l.b16 %v487
    %v2107 = vunpack.c.h.b16 %v487
    %v2108 = vunpack.c.l.b16 %v488
    %v2109 = vunpack.c.h.b16 %v488
    %v2110 = vunpack.c.l.b16 %v489
    %v2111 = vunpack.c.h.b16 %v489
    %v2112 = vunpack.c.l.b16 %v490
    %v2113 = vunpack.c.h.b16 %v490
    %v2114 = vunpack.c.l.b16 %v491
    %v2115 = vunpack.c.h.b16 %v491
    %v2116 = vunpack.c.l.b16 %v492
    %v2117 = vunpack.c.h.b16 %v492
    %v2118 = vunpack.c.l.b16 %v493
    %v2119 = vunpack.c.h.b16 %v493
    %v2120 = vunpack.c.l.b16 %v494
    %v2121 = vunpack.c.h.b16 %v494
    %v2122 = vunpack.c.l.b16 %v495
    %v2123 = vunpack.c.h.b16 %v495
    %v2124 = vunpack.c.l.b16 %v496
    %v2125 = vunpack.c.h.b16 %v496
    %v2126 = vunpack.c.l.b16 %v497
    %v2127 = vunpack.c.h.b16 %v497
    %v2128 = vunpack.c.l.b16 %v498
    %v2129 = vunpack.c.h.b16 %v498
    %v2130 = vunpack.c.l.b16 %v499
    %v2131 = vunpack.c.h.b16 %v499
    %v2132 = vunpack.c.l.b16 %v500
    %v2133 = vunpack.c.h.b16 %v500
    %v2134 = vunpack.c.l.b16 %v501
    %v2135 = vunpack.c.h.b16 %v501
    %v2136 = vunpack.c.l.b16 %v502
    %v2137 = vunpack.c.h.b16 %v502
    %v2138 = vunpack.c.l.b16 %v503
    %v2139 = vunpack.c.h.b16 %v503
    %v2140 = vunpack.c.l.b16 %v504
    %v2141 = vunpack.c.h.b16 %v504
    %v2142 = vunpack.c.l.b16 %v505
    %v2143 = vunpack.c.h.b16 %v505
    %v2144 = vunpack.c.l.b16 %v506
    %v2145 = vunpack.c.h.b16 %v506
    %v2146 = vunpack.c.l.b16 %v507
    %v2147 = vunpack.c.h.b16 %v507
    %v2148 = vunpack.c.l.b16 %v508
    %v2149 = vunpack.c.h.b16 %v508
    %v2150 = vunpack.c.l.b16 %v509
    %v2151 = vunpack.c.h.b16 %v509
    %v2152 = vunpack.c.l.b16 %v510
    %v2153 = vunpack.c.h.b16 %v510
    %v2154 = vunpack.c.l.b16 %v511
    %v2155 = vunpack.c.h.b16 %v511
    %v2156 = vunpack.c.l.b16 %v512
    %v2157 = vunpack.c.h.b16 %v512
    %v2158 = vunpack.c.l.b16 %v513
    %v2159 = vunpack.c.h.b16 %v513
    %v2160 = vunpack.c.l.b16 %v514
    %v2161 = vunpack.c.h.b16 %v514
    %v2162 = vunpack.c.l.b16 %v515
    %v2163 = vunpack.c.h.b16 %v515
    %v2164 = vunpack.c.l.b16 %v516
    %v2165 = vunpack.c.h.b16 %v516
    %v2166 = vunpack.c.l.b16 %v517
    %v2167 = vunpack.c.h.b16 %v517
    %v2168 = vunpack.c.l.b16 %v518
    %v2169 = vunpack.c.h.b16 %v518
    %v2170 = vunpack.c.l.b16 %v519
    %v2171 = vunpack.c.h.b16 %v519
    %v2172 = vunpack.c.l.b16 %v520
    %v2173 = vunpack.c.h.b16 %v520
    %v2174 = vunpack.c.l.b16 %v521
    %v2175 = vunpack.c.h.b16 %v521
    %v2176 = vunpack.c.l.b16 %v522
    %v2177 = vunpack.c.h.b16 %v522
    %v2178 = vunpack.c.l.b16 %v523
    %v2179 = vunpack.c.h.b16 %v523
    %v2180 = vunpack.c.l.b16 %v524
    %v2181 = vunpack.c.h.b16 %v524
    %v2182 = vunpack.c.l.b16 %v525
    %v2183 = vunpack.c.h.b16 %v525
    %v2184 = vunpack.c.l.b16 %v526
    %v2185 = vunpack.c.h.b16 %v526
    %v2186 = vunpack.c.l.b16 %v527
    %v2187 = vunpack.c.h.b16 %v527
    %v2188 = vunpack.c.l.b16 %v528
    %v2189 = vunpack.c.h.b16 %v528
    %v2190 = vunpack.c.l.b16 %v529
    %v2191 = vunpack.c.h.b16 %v529
    %v2192 = vunpack.c.l.b16 %v530
    %v2193 = vunpack.c.h.b16 %v530
    %v2194 = vunpack.c.l.b16 %v531
    %v2195 = vunpack.c.h.b16 %v531
    %v2196 = vunpack.c.l.b16 %v532
    %v2197 = vunpack.c.h.b16 %v532
    %v2198 = vunpack.c.l.b16 %v533
    %v2199 = vunpack.c.h.b16 %v533
    %v2200 = vunpack.c.l.b16 %v534
    %v2201 = vunpack.c.h.b16 %v534
    %v2202 = vunpack.c.l.b16 %v535
    %v2203 = vunpack.c.h.b16 %v535
    %v2204 = vunpack.c.l.b16 %v536
    %v2205 = vunpack.c.h.b16 %v536
    %v2206 = vunpack.c.l.b16 %v537
    %v2207 = vunpack.c.h.b16 %v537
    %v2208 = vunpack.c.l.b16 %v538
    %v2209 = vunpack.c.h.b16 %v538
    %v2210 = vunpack.c.l.b16 %v539
    %v2211 = vunpack.c.h.b16 %v539
    %v2212 = vunpack.c.l.b16 %v540
    %v2213 = vunpack.c.h.b16 %v540
    %v2214 = vunpack.c.l.b16 %v541
    %v2215 = vunpack.c.h.b16 %v541
    %v2216 = vpack.c.b16 %v1196, %v1192
    %v2217 = vpack.c.b16 %v1197, %v1193
    %v2218 = vpack.c.b16 %v1198, %v1194
    %v2219 = vpack.c.b16 %v1199, %v1195
    %v2220 = vpack.c.b16 %v1204, %v1200
    %v2221 = vpack.c.b16 %v1205, %v1201
    %v2222 = vpack.c.b16 %v1206, %v1202
    %v2223 = vpack.c.b16 %v1207, %v1203
    %v2224 = vpack.c.b16 %v1212, %v1208
    %v2225 = vpack.c.b16 %v1213, %v1209
    %v2226 = vpack.c.b16 %v1214, %v1210
    %v2227 = vpack.c.b16 %v1215, %v1211
    %v2228 = vpack.c.b16 %v1220, %v1216
    %v2229 = vpack.c.b16 %v1221, %v1217
    %v2230 = vpack.c.b16 %v1222, %v1218
    %v2231 = vpack.c.b16 %v1223, %v1219
    %v2232 = vpack.c.b16 %v1228, %v1224
    %v2233 = vpack.c.b16 %v1229, %v1225
    %v2234 = vpack.c.b16 %v1230, %v1226
    %v2235 = vpack.c.b16 %v1231, %v1227
    %v2236 = vpack.c.b16 %v1236, %v1232
    %v2237 = vpack.c.b16 %v1237, %v1233
    %v2238 = vpack.c.b16 %v1238, %v1234
    %v2239 = vpack.c.b16 %v1239, %v1235
    %v2240 = vpack.c.b16 %v1244, %v1240
    %v2241 = vpack.c.b16 %v1245, %v1241
    %v2242 = vpack.c.b16 %v1246, %v1242
    %v2243 = vpack.c.b16 %v1247, %v1243
    %v2244 = vpack.c.b16 %v1252, %v1248
    %v2245 = vpack.c.b16 %v1253, %v1249
    %v2246 = vpack.c.b16 %v1254, %v1250
    %v2247 = vpack.c.b16 %v1255, %v1251
    %v2248 = vpack.c.b16 %v1260, %v1256
    %v2249 = vpack.c.b16 %v1261, %v1257
    %v2250 = vpack.c.b16 %v1262, %v1258
    %v2251 = vpack.c.b16 %v1263, %v1259
    %v2252 = vpack.c.b16 %v1268, %v1264
    %v2253 = vpack.c.b16 %v1269, %v1265
    %v2254 = vpack.c.b16 %v1270, %v1266
    %v2255 = vpack.c.b16 %v1271, %v1267
    %v2256 = vpack.c.b16 %v1276, %v1272
    %v2257 = vpack.c.b16 %v1277, %v1273
    %v2258 = vpack.c.b16 %v1278, %v1274
    %v2259 = vpack.c.b16 %v1279, %v1275
    %v2260 = vpack.c.b16 %v1284, %v1280
    %v2261 = vpack.c.b16 %v1285, %v1281
    %v2262 = vpack.c.b16 %v1286, %v1282
    %v2263 = vpack.c.b16 %v1287, %v1283
    %v2264 = vpack.c.b16 %v1292, %v1288
    %v2265 = vpack.c.b16 %v1293, %v1289
    %v2266 = vpack.c.b16 %v1294, %v1290
    %v2267 = vpack.c.b16 %v1295, %v1291
    %v2268 = vpack.c.b16 %v1300, %v1296
    %v2269 = vpack.c.b16 %v1301, %v1297
    %v2270 = vpack.c.b16 %v1302, %v1298
    %v2271 = vpack.c.b16 %v1303, %v1299
    %v2272 = vpack.c.b16 %v1308, %v1304
    %v2273 = vpack.c.b16 %v1309, %v1305
    %v2274 = vpack.c.b16 %v1310, %v1306
    %v2275 = vpack.c.b16 %v1311, %v1307
    %v2276 = vpack.c.b16 %v1316, %v1312
    %v2277 = vpack.c.b16 %v1317, %v1313
    %v2278 = vpack.c.b16 %v1318, %v1314
    %v2279 = vpack.c.b16 %v1319, %v1315
    %v2280 = vpack.c.b16 %v1324, %v1320
    %v2281 = vpack.c.b16 %v1325, %v1321
    %v2282 = vpack.c.b16 %v1326, %v1322
    %v2283 = vpack.c.b16 %v1327, %v1323
    %v2284 = vpack.c.b16 %v1332, %v1328
    %v2285 = vpack.c.b16 %v1333, %v1329
    %v2286 = vpack.c.b16 %v1334, %v1330
    %v2287 = vpack.c.b16 %v1335, %v1331
    %v2288 = vpack.c.b16 %v1340, %v1336
    %v2289 = vpack.c.b16 %v1341, %v1337
    %v2290 = vpack.c.b16 %v1342, %v1338
    %v2291 = vpack.c.b16 %v1343, %v1339
    %v2292 = vpack.c.b16 %v1348, %v1344
    %v2293 = vpack.c.b16 %v1349, %v1345
    %v2294 = vpack.c.b16 %v1350, %v1346
    %v2295 = vpack.c.b16 %v1351, %v1347
    %v2296 = vpack.c.b16 %v1356, %v1352
    %v2297 = vpack.c.b16 %v1357, %v1353
    %v2298 = vpack.c.b16 %v1358, %v1354
    %v2299 = vpack.c.b16 %v1359, %v1355
    %v2300 = vpack.c.b16 %v1364, %v1360
    %v2301 = vpack.c.b16 %v1365, %v1361
    %v2302 = vpack.c.b16 %v1366, %v1362
    %v2303 = vpack.c.b16 %v1367, %v1363
    %v2304 = vpack.c.b16 %v1372, %v1368
    %v2305 = vpack.c.b16 %v1373, %v1369
    %v2306 = vpack.c.b16 %v1374, %v1370
    %v2307 = vpack.c.b16 %v1375, %v1371
    %v2308 = vpack.c.b16 %v1380, %v1376
    %v2309 = vpack.c.b16 %v1381, %v1377
    %v2310 = vpack.c.b16 %v1382, %v1378
    %v2311 = vpack.c.b16 %v1383, %v1379
    %v2312 = vpack.c.b16 %v1388, %v1384
    %v2313 = vpack.c.b16 %v1389, %v1385
    %v2314 = vpack.c.b16 %v1390, %v1386
    %v2315 = vpack.c.b16 %v1391, %v1387
    %v2316 = vpack.c.b16 %v1396, %v1392
    %v2317 = vpack.c.b16 %v1397, %v1393
    %v2318 = vpack.c.b16 %v1398, %v1394
    %v2319 = vpack.c.b16 %v1399, %v1395
    %v2320 = vpack.c.b16 %v1404, %v1400
    %v2321 = vpack.c.b16 %v1405, %v1401
    %v2322 = vpack.c.b16 %v1406, %v1402
    %v2323 = vpack.c.b16 %v1407, %v1403
    %v2324 = vpack.c.b16 %v1412, %v1408
    %v2325 = vpack.c.b16 %v1413, %v1409
    %v2326 = vpack.c.b16 %v1414, %v1410
    %v2327 = vpack.c.b16 %v1415, %v1411
    %v2328 = vpack.c.b16 %v1420, %v1416
    %v2329 = vpack.c.b16 %v1421, %v1417
    %v2330 = vpack.c.b16 %v1422, %v1418
    %v2331 = vpack.c.b16 %v1423, %v1419
    %v2332 = vpack.c.b16 %v1428, %v1424
    %v2333 = vpack.c.b16 %v1429, %v1425
    %v2334 = vpack.c.b16 %v1430, %v1426
    %v2335 = vpack.c.b16 %v1431, %v1427
    %v2336 = vpack.c.b16 %v1436, %v1432
    %v2337 = vpack.c.b16 %v1437, %v1433
    %v2338 = vpack.c.b16 %v1438, %v1434
    %v2339 = vpack.c.b16 %v1439, %v1435
    %v2340 = vpack.c.b16 %v1444, %v1440
    %v2341 = vpack.c.b16 %v1445, %v1441
    %v2342 = vpack.c.b16 %v1446, %v1442
    %v2343 = vpack.c.b16 %v1447, %v1443
    %v2344 = vpack.c.b16 %v1452, %v1448
    %v2345 = vpack.c.b16 %v1453, %v1449
    %v2346 = vpack.c.b16 %v1454, %v1450
    %v2347 = vpack.c.b16 %v1455, %v1451
    %v2348 = vpack.c.b16 %v1460, %v1456
    %v2349 = vpack.c.b16 %v1461, %v1457
    %v2350 = vpack.c.b16 %v1462, %v1458
    %v2351 = vpack.c.b16 %v1463, %v1459
    %v2352 = vpack.c.b16 %v1468, %v1464
    %v2353 = vpack.c.b16 %v1469, %v1465
    %v2354 = vpack.c.b16 %v1470, %v1466
    %v2355 = vpack.c.b16 %v1471, %v1467
    %v2356 = vpack.c.b16 %v1476, %v1472
    %v2357 = vpack.c.b16 %v1477, %v1473
    %v2358 = vpack.c.b16 %v1478, %v1474
    %v2359 = vpack.c.b16 %v1479, %v1475
    %v2360 = vpack.c.b16 %v1484, %v1480
    %v2361 = vpack.c.b16 %v1485, %v1481
    %v2362 = vpack.c.b16 %v1486, %v1482
    %v2363 = vpack.c.b16 %v1487, %v1483
    %v2364 = vpack.c.b16 %v1492, %v1488
    %v2365 = vpack.c.b16 %v1493, %v1489
    %v2366 = vpack.c.b16 %v1494, %v1490
    %v2367 = vpack.c.b16 %v1495, %v1491
    %v2368 = vpack.c.b16 %v1500, %v1496
    %v2369 = vpack.c.b16 %v1501, %v1497
    %v2370 = vpack.c.b16 %v1502, %v1498
    %v2371 = vpack.c.b16 %v1503, %v1499
    %v2372 = vpack.c.b16 %v1508, %v1504
    %v2373 = vpack.c.b16 %v1509, %v1505
    %v2374 = vpack.c.b16 %v1510, %v1506
    %v2375 = vpack.c.b16 %v1511, %v1507
    %v2376 = vpack.c.b16 %v1516, %v1512
    %v2377 = vpack.c.b16 %v1517, %v1513
    %v2378 = vpack.c.b16 %v1518, %v1514
    %v2379 = vpack.c.b16 %v1519, %v1515
    %v2380 = vpack.c.b16 %v1524, %v1520
    %v2381 = vpack.c.b16 %v1525, %v1521
    %v2382 = vpack.c.b16 %v1526, %v1522
    %v2383 = vpack.c.b16 %v1527, %v1523
    %v2384 = vpack.c.b16 %v1532, %v1528
    %v2385 = vpack.c.b16 %v1533, %v1529
    %v2386 = vpack.c.b16 %v1534, %v1530
    %v2387 = vpack.c.b16 %v1535, %v1531
    %v2388 = vpack.c.b16 %v1540, %v1536
    %v2389 = vpack.c.b16 %v1541, %v1537
    %v2390 = vpack.c.b16 %v1542, %v1538
    %v2391 = vpack.c.b16 %v1543, %v1539
    %v2392 = vpack.c.b16 %v1548, %v1544
    %v2393 = vpack.c.b16 %v1549, %v1545
    %v2394 = vpack.c.b16 %v1550, %v1546
    %v2395 = vpack.c.b16 %v1551, %v1547
    %v2396 = vpack.c.b16 %v1556, %v1552
    %v2397 = vpack.c.b16 %v1557, %v1553
    %v2398 = vpack.c.b16 %v1558, %v1554
    %v2399 = vpack.c.b16 %v1559, %v1555
    %v2400 = vpack.c.b16 %v1564, %v1560
    %v2401 = vpack.c.b16 %v1565, %v1561
    %v2402 = vpack.c.b16 %v1566, %v1562
    %v2403 = vpack.c.b16 %v1567, %v1563
    %v2404 = vpack.c.b16 %v1572, %v1568
    %v2405 = vpack.c.b16 %v1573, %v1569
    %v2406 = vpack.c.b16 %v1574, %v1570
    %v2407 = vpack.c.b16 %v1575, %v1571
    %v2408 = vpack.c.b16 %v1580, %v1576
    %v2409 = vpack.c.b16 %v1581, %v1577
    %v2410 = vpack.c.b16 %v1582, %v1578
    %v2411 = vpack.c.b16 %v1583, %v1579
    %v2412 = vpack.c.b16 %v1588, %v1584
    %v2413 = vpack.c.b16 %v1589, %v1585
    %v2414 = vpack.c.b16 %v1590, %v1586
    %v2415 = vpack.c.b16 %v1591, %v1587
    %v2416 = vpack.c.b16 %v1596, %v1592
    %v2417 = vpack.c.b16 %v1597, %v1593
    %v2418 = vpack.c.b16 %v1598, %v1594
    %v2419 = vpack.c.b16 %v1599, %v1595
    %v2420 = vpack.c.b16 %v1604, %v1600
    %v2421 = vpack.c.b16 %v1605, %v1601
    %v2422 = vpack.c.b16 %v1606, %v1602
    %v2423 = vpack.c.b16 %v1607, %v1603
    %v2424 = vpack.c.b16 %v1612, %v1608
    %v2425 = vpack.c.b16 %v1613, %v1609
    %v2426 = vpack.c.b16 %v1614, %v1610
    %v2427 = vpack.c.b16 %v1615, %v1611
    %v2428 = vpack.c.b16 %v1620, %v1616
    %v2429 = vpack.c.b16 %v1621, %v1617
    %v2430 = vpack.c.b16 %v1622, %v1618
    %v2431 = vpack.c.b16 %v1623, %v1619
    %v2432 = vpack.c.b16 %v1628, %v1624
    %v2433 = vpack.c.b16 %v1629, %v1625
    %v2434 = vpack.c.b16 %v1630, %v1626
    %v2435 = vpack.c.b16 %v1631, %v1627
    %v2436 = vpack.c.b16 %v1636, %v1632
    %v2437 = vpack.c.b16 %v1637, %v1633
    %v2438 = vpack.c.b16 %v1638, %v1634
    %v2439 = vpack.c.b16 %v1639, %v1635
    %v2440 = vpack.c.b16 %v1644, %v1640
    %v2441 = vpack.c.b16 %v1645, %v1641
    %v2442 = vpack.c.b16 %v1646, %v1642
    %v2443 = vpack.c.b16 %v1647, %v1643
    %v2444 = vpack.c.b16 %v1652, %v1648
    %v2445 = vpack.c.b16 %v1653, %v1649
    %v2446 = vpack.c.b16 %v1654, %v1650
    %v2447 = vpack.c.b16 %v1655, %v1651
    %v2448 = vpack.c.b16 %v1660, %v1656
    %v2449 = vpack.c.b16 %v1661, %v1657
    %v2450 = vpack.c.b16 %v1662, %v1658
    %v2451 = vpack.c.b16 %v1663, %v1659
    %v2452 = vpack.c.b16 %v1668, %v1664
    %v2453 = vpack.c.b16 %v1669, %v1665
    %v2454 = vpack.c.b16 %v1670, %v1666
    %v2455 = vpack.c.b16 %v1671, %v1667
    %v2456 = vpack.c.b16 %v1676, %v1672
    %v2457 = vpack.c.b16 %v1677, %v1673
    %v2458 = vpack.c.b16 %v1678, %v1674
    %v2459 = vpack.c.b16 %v1679, %v1675
    %v2460 = vpack.c.b16 %v1684, %v1680
    %v2461 = vpack.c.b16 %v1685, %v1681
    %v2462 = vpack.c.b16 %v1686, %v1682
    %v2463 = vpack.c.b16 %v1687, %v1683
    %v2464 = vpack.c.b16 %v1692, %v1688
    %v2465 = vpack.c.b16 %v1693, %v1689
    %v2466 = vpack.c.b16 %v1694, %v1690
    %v2467 = vpack.c.b16 %v1695, %v1691
    %v2468 = vpack.c.b16 %v1700, %v1696
    %v2469 = vpack.c.b16 %v1701, %v1697
    %v2470 = vpack.c.b16 %v1702, %v1698
    %v2471 = vpack.c.b16 %v1703, %v1699
    %v2472 = vpack.c.b16 %v1708, %v1704
    %v2473 = vpack.c.b16 %v1709, %v1705
    %v2474 = vpack.c.b16 %v1710, %v1706
    %v2475 = vpack.c.b16 %v1711, %v1707
    %v2476 = vpack.c.b16 %v1716, %v1712
    %v2477 = vpack.c.b16 %v1717, %v1713
    %v2478 = vpack.c.b16 %v1718, %v1714
    %v2479 = vpack.c.b16 %v1719, %v1715
    %v2480 = vpack.c.b16 %v1724, %v1720
    %v2481 = vpack.c.b16 %v1725, %v1721
    %v2482 = vpack.c.b16 %v1726, %v1722
    %v2483 = vpack.c.b16 %v1727, %v1723
    %v2484 = vpack.c.b16 %v1732, %v1728
    %v2485 = vpack.c.b16 %v1733, %v1729
    %v2486 = vpack.c.b16 %v1734, %v1730
    %v2487 = vpack.c.b16 %v1735, %v1731
    %v2488 = vpack.c.b16 %v1740, %v1736
    %v2489 = vpack.c.b16 %v1741, %v1737
    %v2490 = vpack.c.b16 %v1742, %v1738
    %v2491 = vpack.c.b16 %v1743, %v1739
    %v2492 = vpack.c.b16 %v1748, %v1744
    %v2493 = vpack.c.b16 %v1749, %v1745
    %v2494 = vpack.c.b16 %v1750, %v1746
    %v2495 = vpack.c.b16 %v1751, %v1747
    %v2496 = vpack.c.b16 %v1756, %v1752
    %v2497 = vpack.c.b16 %v1757, %v1753
    %v2498 = vpack.c.b16 %v1758, %v1754
    %v2499 = vpack.c.b16 %v1759, %v1755
    %v2500 = vpack.c.b16 %v1764, %v1760
    %v2501 = vpack.c.b16 %v1765, %v1761
    %v2502 = vpack.c.b16 %v1766, %v1762
    %v2503 = vpack.c.b16 %v1767, %v1763
    %v2504 = vpack.c.b16 %v1772, %v1768
    %v2505 = vpack.c.b16 %v1773, %v1769
    %v2506 = vpack.c.b16 %v1774, %v1770
    %v2507 = vpack.c.b16 %v1775, %v1771
    %v2508 = vpack.c.b16 %v1780, %v1776
    %v2509 = vpack.c.b16 %v1781, %v1777
    %v2510 = vpack.c.b16 %v1782, %v1778
    %v2511 = vpack.c.b16 %v1783, %v1779
    %v2512 = vpack.c.b16 %v1788, %v1784
    %v2513 = vpack.c.b16 %v1789, %v1785
    %v2514 = vpack.c.b16 %v1790, %v1786
    %v2515 = vpack.c.b16 %v1791, %v1787
    %v2516 = vpack.c.b16 %v1796, %v1792
    %v2517 = vpack.c.b16 %v1797, %v1793
    %v2518 = vpack.c.b16 %v1798, %v1794
    %v2519 = vpack.c.b16 %v1799, %v1795
    %v2520 = vpack.c.b16 %v1804, %v1800
    %v2521 = vpack.c.b16 %v1805, %v1801
    %v2522 = vpack.c.b16 %v1806, %v1802
    %v2523 = vpack.c.b16 %v1807, %v1803
    %v2524 = vpack.c.b16 %v1812, %v1808
    %v2525 = vpack.c.b16 %v1813, %v1809
    %v2526 = vpack.c.b16 %v1814, %v1810
    %v2527 = vpack.c.b16 %v1815, %v1811
    %v2528 = vpack.c.b16 %v1820, %v1816
    %v2529 = vpack.c.b16 %v1821, %v1817
    %v2530 = vpack.c.b16 %v1822, %v1818
    %v2531 = vpack.c.b16 %v1823, %v1819
    %v2532 = vpack.c.b16 %v1828, %v1824
    %v2533 = vpack.c.b16 %v1829, %v1825
    %v2534 = vpack.c.b16 %v1830, %v1826
    %v2535 = vpack.c.b16 %v1831, %v1827
    %v2536 = vpack.c.b16 %v1836, %v1832
    %v2537 = vpack.c.b16 %v1837, %v1833
    %v2538 = vpack.c.b16 %v1838, %v1834
    %v2539 = vpack.c.b16 %v1839, %v1835
    %v2540 = vpack.c.b16 %v1844, %v1840
    %v2541 = vpack.c.b16 %v1845, %v1841
    %v2542 = vpack.c.b16 %v1846, %v1842
    %v2543 = vpack.c.b16 %v1847, %v1843
    %v2544 = vpack.c.b16 %v1852, %v1848
    %v2545 = vpack.c.b16 %v1853, %v1849
    %v2546 = vpack.c.b16 %v1854, %v1850
    %v2547 = vpack.c.b16 %v1855, %v1851
    %v2548 = vpack.c.b16 %v1860, %v1856
    %v2549 = vpack.c.b16 %v1861, %v1857
    %v2550 = vpack.c.b16 %v1862, %v1858
    %v2551 = vpack.c.b16 %v1863, %v1859
    %v2552 = vpack.c.b16 %v1868, %v1864
    %v2553 = vpack.c.b16 %v1869, %v1865
    %v2554 = vpack.c.b16 %v1870, %v1866
    %v2555 = vpack.c.b16 %v1871, %v1867
    %v2556 = vpack.c.b16 %v1876, %v1872
    %v2557 = vpack.c.b16 %v1877, %v1873
    %v2558 = vpack.c.b16 %v1878, %v1874
    %v2559 = vpack.c.b16 %v1879, %v1875
    %v2560 = vpack.c.b16 %v1884, %v1880
    %v2561 = vpack.c.b16 %v1885, %v1881
    %v2562 = vpack.c.b16 %v1886, %v1882
    %v2563 = vpack.c.b16 %v1887, %v1883
    %v2564 = vpack.c.b16 %v1892, %v1888
    %v2565 = vpack.c.b16 %v1893, %v1889
    %v2566 = vpack.c.b16 %v1894, %v1890
    %v2567 = vpack.c.b16 %v1895, %v1891
    %v2568 = vpack.c.b16 %v1900, %v1896
    %v2569 = vpack.c.b16 %v1901, %v1897
    %v2570 = vpack.c.b16 %v1902, %v1898
    %v2571 = vpack.c.b16 %v1903, %v1899
    %v2572 = vpack.c.b16 %v1908, %v1904
    %v2573 = vpack.c.b16 %v1909, %v1905
    %v2574 = vpack.c.b16 %v1910, %v1906
    %v2575 = vpack.c.b16 %v1911, %v1907
    %v2576 = vpack.c.b16 %v1916, %v1912
    %v2577 = vpack.c.b16 %v1917, %v1913
    %v2578 = vpack.c.b16 %v1918, %v1914
    %v2579 = vpack.c.b16 %v1919, %v1915
    %v2580 = vpack.c.b16 %v1924, %v1920
    %v2581 = vpack.c.b16 %v1925, %v1921
    %v2582 = vpack.c.b16 %v1926, %v1922
    %v2583 = vpack.c.b16 %v1927, %v1923
    %v2584 = vpack.c.b16 %v1932, %v1928
    %v2585 = vpack.c.b16 %v1933, %v1929
    %v2586 = vpack.c.b16 %v1934, %v1930
    %v2587 = vpack.c.b16 %v1935, %v1931
    %v2588 = vpack.c.b16 %v1940, %v1936
    %v2589 = vpack.c.b16 %v1941, %v1937
    %v2590 = vpack.c.b16 %v1942, %v1938
    %v2591 = vpack.c.b16 %v1943, %v1939
    %v2592 = vpack.c.b16 %v1948, %v1944
    %v2593 = vpack.c.b16 %v1949, %v1945
    %v2594 = vpack.c.b16 %v1950, %v1946
    %v2595 = vpack.c.b16 %v1951, %v1947
    %v2596 = vpack.c.b16 %v1956, %v1952
    %v2597 = vpack.c.b16 %v1957, %v1953
    %v2598 = vpack.c.b16 %v1958, %v1954
    %v2599 = vpack.c.b16 %v1959, %v1955
    %v2600 = vpack.c.b16 %v1964, %v1960
    %v2601 = vpack.c.b16 %v1965, %v1961
    %v2602 = vpack.c.b16 %v1966, %v1962
    %v2603 = vpack.c.b16 %v1967, %v1963
    %v2604 = vpack.c.b16 %v1972, %v1968
    %v2605 = vpack.c.b16 %v1973, %v1969
    %v2606 = vpack.c.b16 %v1974, %v1970
    %v2607 = vpack.c.b16 %v1975, %v1971
    %v2608 = vpack.c.b16 %v1980, %v1976
    %v2609 = vpack.c.b16 %v1981, %v1977
    %v2610 = vpack.c.b16 %v1982, %v1978
    %v2611 = vpack.c.b16 %v1983, %v1979
    %v2612 = vpack.c.b16 %v1988, %v1984
    %v2613 = vpack.c.b16 %v1989, %v1985
    %v2614 = vpack.c.b16 %v1990, %v1986
    %v2615 = vpack.c.b16 %v1991, %v1987
    %v2616 = vpack.c.b16 %v1996, %v1992
    %v2617 = vpack.c.b16 %v1997, %v1993
    %v2618 = vpack.c.b16 %v1998, %v1994
    %v2619 = vpack.c.b16 %v1999, %v1995
    %v2620 = vpack.c.b16 %v2004, %v2000
    %v2621 = vpack.c.b16 %v2005, %v2001
    %v2622 = vpack.c.b16 %v2006, %v2002
    %v2623 = vpack.c.b16 %v2007, %v2003
    %v2624 = vpack.c.b16 %v2012, %v2008
    %v2625 = vpack.c.b16 %v2013, %v2009
    %v2626 = vpack.c.b16 %v2014, %v2010
    %v2627 = vpack.c.b16 %v2015, %v2011
    %v2628 = vpack.c.b16 %v2020, %v2016
    %v2629 = vpack.c.b16 %v2021, %v2017
    %v2630 = vpack.c.b16 %v2022, %v2018
    %v2631 = vpack.c.b16 %v2023, %v2019
    %v2632 = vpack.c.b16 %v2028, %v2024
    %v2633 = vpack.c.b16 %v2029, %v2025
    %v2634 = vpack.c.b16 %v2030, %v2026
    %v2635 = vpack.c.b16 %v2031, %v2027
    %v2636 = vpack.c.b16 %v2036, %v2032
    %v2637 = vpack.c.b16 %v2037, %v2033
    %v2638 = vpack.c.b16 %v2038, %v2034
    %v2639 = vpack.c.b16 %v2039, %v2035
    %v2640 = vpack.c.b16 %v2044, %v2040
    %v2641 = vpack.c.b16 %v2045, %v2041
    %v2642 = vpack.c.b16 %v2046, %v2042
    %v2643 = vpack.c.b16 %v2047, %v2043
    %v2644 = vpack.c.b16 %v2052, %v2048
    %v2645 = vpack.c.b16 %v2053, %v2049
    %v2646 = vpack.c.b16 %v2054, %v2050
    %v2647 = vpack.c.b16 %v2055, %v2051
    %v2648 = vpack.c.b16 %v2060, %v2056
    %v2649 = vpack.c.b16 %v2061, %v2057
    %v2650 = vpack.c.b16 %v2062, %v2058
    %v2651 = vpack.c.b16 %v2063, %v2059
    %v2652 = vpack.c.b16 %v2068, %v2064
    %v2653 = vpack.c.b16 %v2069, %v2065
    %v2654 = vpack.c.b16 %v2070, %v2066
    %v2655 = vpack.c.b16 %v2071, %v2067
    %v2656 = vpack.c.b16 %v2076, %v2072
    %v2657 = vpack.c.b16 %v2077, %v2073
    %v2658 = vpack.c.b16 %v2078, %v2074
    %v2659 = vpack.c.b16 %v2079, %v2075
    %v2660 = vpack.c.b16 %v2084, %v2080
    %v2661 = vpack.c.b16 %v2085, %v2081
    %v2662 = vpack.c.b16 %v2086, %v2082
    %v2663 = vpack.c.b16 %v2087, %v2083
    %v2664 = vpack.c.b16 %v2092, %v2088
    %v2665 = vpack.c.b16 %v2093, %v2089
    %v2666 = vpack.c.b16 %v2094, %v2090
    %v2667 = vpack.c.b16 %v2095, %v2091
    %v2668 = vpack.c.b16 %v2100, %v2096
    %v2669 = vpack.c.b16 %v2101, %v2097
    %v2670 = vpack.c.b16 %v2102, %v2098
    %v2671 = vpack.c.b16 %v2103, %v2099
    %v2672 = vpack.c.b16 %v2108, %v2104
    %v2673 = vpack.c.b16 %v2109, %v2105
    %v2674 = vpack.c.b16 %v2110, %v2106
    %v2675 = vpack.c.b16 %v2111, %v2107
    %v2676 = vpack.c.b16 %v2116, %v2112
    %v2677 = vpack.c.b16 %v2117, %v2113
    %v2678 = vpack.c.b16 %v2118, %v2114
    %v2679 = vpack.c.b16 %v2119, %v2115
    %v2680 = vpack.c.b16 %v2124, %v2120
    %v2681 = vpack.c.b16 %v2125, %v2121
    %v2682 = vpack.c.b16 %v2126, %v2122
    %v2683 = vpack.c.b16 %v2127, %v2123
    %v2684 = vpack.c.b16 %v2132, %v2128
    %v2685 = vpack.c.b16 %v2133, %v2129
    %v2686 = vpack.c.b16 %v2134, %v2130
    %v2687 = vpack.c.b16 %v2135, %v2131
    %v2688 = vpack.c.b16 %v2140, %v2136
    %v2689 = vpack.c.b16 %v2141, %v2137
    %v2690 = vpack.c.b16 %v2142, %v2138
    %v2691 = vpack.c.b16 %v2143, %v2139
    %v2692 = vpack.c.b16 %v2148, %v2144
    %v2693 = vpack.c.b16 %v2149, %v2145
    %v2694 = vpack.c.b16 %v2150, %v2146
    %v2695 = vpack.c.b16 %v2151, %v2147
    %v2696 = vpack.c.b16 %v2156, %v2152
    %v2697 = vpack.c.b16 %v2157, %v2153
    %v2698 = vpack.c.b16 %v2158, %v2154
    %v2699 = vpack.c.b16 %v2159, %v2155
    %v2700 = vpack.c.b16 %v2164, %v2160
    %v2701 = vpack.c.b16 %v2165, %v2161
    %v2702 = vpack.c.b16 %v2166, %v2162
    %v2703 = vpack.c.b16 %v2167, %v2163
    %v2704 = vpack.c.b16 %v2172, %v2168
    %v2705 = vpack.c.b16 %v2173, %v2169
    %v2706 = vpack.c.b16 %v2174, %v2170
    %v2707 = vpack.c.b16 %v2175, %v2171
    %v2708 = vpack.c.b16 %v2180, %v2176
    %v2709 = vpack.c.b16 %v2181, %v2177
    %v2710 = vpack.c.b16 %v2182, %v2178
    %v2711 = vpack.c.b16 %v2183, %v2179
    %v2712 = vpack.c.b16 %v2188, %v2184
    %v2713 = vpack.c.b16 %v2189, %v2185
    %v2714 = vpack.c.b16 %v2190, %v2186
    %v2715 = vpack.c.b16 %v2191, %v2187
    %v2716 = vpack.c.b16 %v2196, %v2192
    %v2717 = vpack.c.b16 %v2197, %v2193
    %v2718 = vpack.c.b16 %v2198, %v2194
    %v2719 = vpack.c.b16 %v2199, %v2195
    %v2720 = vpack.c.b16 %v2204, %v2200
    %v2721 = vpack.c.b16 %v2205, %v2201
    %v2722 = vpack.c.b16 %v2206, %v2202
    %v2723 = vpack.c.b16 %v2207, %v2203
    %v2724 = vpack.c.b16 %v2212, %v2208
    %v2725 = vpack.c.b16 %v2213, %v2209
    %v2726 = vpack.c.b16 %v2214, %v2210
    %v2727 = vpack.c.b16 %v2215, %v2211
    %3240 = vmatprep.subr.bf16.mxu0 %v2217
    %3241 = vmatpush1.bf16.msra.mxu0 %v2216
    %3242 = vmatprep.subr.bf16.mxu0 %v2221
    %3243 = vmatpush1.bf16.msra.mxu0 %v2220
    %3244 = vmatprep.subr.bf16.mxu0 %v2225
    %3245 = vmatpush1.bf16.msra.mxu0 %v2224
    %3246 = vmatprep.subr.bf16.mxu0 %v2229
    %3247 = vmatpush1.bf16.msra.mxu0 %v2228
    %3248 = vmatprep.subr.bf16.mxu0 %v2233
    %3249 = vmatpush1.bf16.msra.mxu0 %v2232
    %3250 = vmatprep.subr.bf16.mxu0 %v2237
    %3251 = vmatpush1.bf16.msra.mxu0 %v2236
    %3252 = vmatprep.subr.bf16.mxu0 %v2241
    %3253 = vmatpush1.bf16.msra.mxu0 %v2240
    %3254 = vmatprep.subr.bf16.mxu0 %v2245
    %3255 = vmatpush1.bf16.msra.mxu0 %v2244
    %3256 = vmatprep.subr.bf16.mxu0 %v2249
    %3257 = vmatpush1.bf16.msra.mxu0 %v2248
    %3258 = vmatprep.subr.bf16.mxu0 %v2253
    %3259 = vmatpush1.bf16.msra.mxu0 %v2252
    %3260 = vmatprep.subr.bf16.mxu0 %v2257
    %3261 = vmatpush1.bf16.msra.mxu0 %v2256
    %3262 = vmatprep.subr.bf16.mxu0 %v2261
    %3263 = vmatpush1.bf16.msra.mxu0 %v2260
    %3264 = vmatprep.subr.bf16.mxu0 %v2265
    %3265 = vmatpush1.bf16.msra.mxu0 %v2264
    %3266 = vmatprep.subr.bf16.mxu0 %v2269
    %3267 = vmatpush1.bf16.msra.mxu0 %v2268
    %3268 = vmatprep.subr.bf16.mxu0 %v2273
    %3269 = vmatpush1.bf16.msra.mxu0 %v2272
    %3270 = vmatprep.subr.bf16.mxu0 %v2277
    %3271 = vmatpush1.bf16.msra.mxu0 %v2276
    %3272 = vmatprep.mubr.bf16.mxu0 %v603
    %3273 = vmatmul.mubr.bf16.gmra.mrb[0].mxu0 %v589
    %v3274 = vpop.f32.mrb[0].mxu0
    %v3275 = vadd.f32 %v547, %v3274
    %v3276 = vpop.f32.mrb[0].mxu0
    %v3277 = vadd.f32 %v551, %v3276
    %v3278 = vpop.f32.mrb[0].mxu0
    %v3279 = vpop.f32.mrb[0].mxu0
    %3280 = vdwg.mxu0
    %3281 = vmatprep.subr.bf16.mxu0 %v2281
    %3282 = vmatpush1.bf16.msra.mxu0 %v2280
    %3283 = vmatprep.subr.bf16.mxu0 %v2285
    %3284 = vmatpush1.bf16.msra.mxu0 %v2284
    %3285 = vmatprep.subr.bf16.mxu0 %v2289
    %3286 = vmatpush1.bf16.msra.mxu0 %v2288
    %3287 = vmatprep.subr.bf16.mxu0 %v2293
    %3288 = vmatpush1.bf16.msra.mxu0 %v2292
    %3289 = vmatprep.subr.bf16.mxu0 %v2297
    %3290 = vmatpush1.bf16.msra.mxu0 %v2296
    %3291 = vmatprep.subr.bf16.mxu0 %v2301
    %3292 = vmatpush1.bf16.msra.mxu0 %v2300
    %3293 = vmatprep.subr.bf16.mxu0 %v2305
    %3294 = vmatpush1.bf16.msra.mxu0 %v2304
    %3295 = vmatprep.subr.bf16.mxu0 %v2309
    %3296 = vmatpush1.bf16.msra.mxu0 %v2308
    %3297 = vmatprep.subr.bf16.mxu0 %v2313
    %3298 = vmatpush1.bf16.msra.mxu0 %v2312
    %3299 = vmatprep.subr.bf16.mxu0 %v2317
    %3300 = vmatpush1.bf16.msra.mxu0 %v2316
    %3301 = vmatprep.subr.bf16.mxu0 %v2321
    %3302 = vmatpush1.bf16.msra.mxu0 %v2320
    %3303 = vmatprep.subr.bf16.mxu0 %v2325
    %3304 = vmatpush1.bf16.msra.mxu0 %v2324
    %3305 = vmatprep.subr.bf16.mxu0 %v2329
    %3306 = vmatpush1.bf16.msra.mxu0 %v2328
    %3307 = vmatprep.subr.bf16.mxu0 %v2333
    %3308 = vmatpush1.bf16.msra.mxu0 %v2332
    %3309 = vmatprep.subr.bf16.mxu0 %v2337
    %3310 = vmatpush1.bf16.msra.mxu0 %v2336
    %3311 = vmatprep.subr.bf16.mxu0 %v2341
    %3312 = vmatpush1.bf16.msra.mxu0 %v2340
    %3313 = vmatprep.mubr.bf16.mxu0 %v613
    %3314 = vmatmul.mubr.bf16.gmra.mrb[0].mxu0 %v611
    %v3315 = vpop.f32.mrb[0].mxu0
    %v3316 = vadd.f32 %v3275, %v3315
    %v3317 = vpop.f32.mrb[0].mxu0
    %v3318 = vadd.f32 %v3277, %v3317
    %v3319 = vpop.f32.mrb[0].mxu0
    %v3320 = vpop.f32.mrb[0].mxu0
    %3321 = vdwg.mxu0
    %3322 = vmatprep.subr.bf16.mxu0 %v2345
    %3323 = vmatpush1.bf16.msra.mxu0 %v2344
    %3324 = vmatprep.subr.bf16.mxu0 %v2349
    %3325 = vmatpush1.bf16.msra.mxu0 %v2348
    %3326 = vmatprep.subr.bf16.mxu0 %v2353
    %3327 = vmatpush1.bf16.msra.mxu0 %v2352
    %3328 = vmatprep.subr.bf16.mxu0 %v2357
    %3329 = vmatpush1.bf16.msra.mxu0 %v2356
    %3330 = vmatprep.subr.bf16.mxu0 %v2361
    %3331 = vmatpush1.bf16.msra.mxu0 %v2360
    %3332 = vmatprep.subr.bf16.mxu0 %v2365
    %3333 = vmatpush1.bf16.msra.mxu0 %v2364
    %3334 = vmatprep.subr.bf16.mxu0 %v2369
    %3335 = vmatpush1.bf16.msra.mxu0 %v2368
    %3336 = vmatprep.subr.bf16.mxu0 %v2373
    %3337 = vmatpush1.bf16.msra.mxu0 %v2372
    %3338 = vmatprep.subr.bf16.mxu0 %v2377
    %3339 = vmatpush1.bf16.msra.mxu0 %v2376
    %3340 = vmatprep.subr.bf16.mxu0 %v2381
    %3341 = vmatpush1.bf16.msra.mxu0 %v2380
    %3342 = vmatprep.subr.bf16.mxu0 %v2385
    %3343 = vmatpush1.bf16.msra.mxu0 %v2384
    %3344 = vmatprep.subr.bf16.mxu0 %v2389
    %3345 = vmatpush1.bf16.msra.mxu0 %v2388
    %3346 = vmatprep.subr.bf16.mxu0 %v2393
    %3347 = vmatpush1.bf16.msra.mxu0 %v2392
    %3348 = vmatprep.subr.bf16.mxu0 %v2397
    %3349 = vmatpush1.bf16.msra.mxu0 %v2396
    %3350 = vmatprep.subr.bf16.mxu0 %v2401
    %3351 = vmatpush1.bf16.msra.mxu0 %v2400
    %3352 = vmatprep.subr.bf16.mxu0 %v2405
    %3353 = vmatpush1.bf16.msra.mxu0 %v2404
    %3354 = vmatprep.mubr.bf16.mxu0 %v610
    %3355 = vmatmul.mubr.bf16.gmra.mrb[0].mxu0 %v596
    %v3356 = vpop.f32.mrb[0].mxu0
    %v3357 = vadd.f32 %v3316, %v3356
    %v3358 = vpop.f32.mrb[0].mxu0
    %v3359 = vadd.f32 %v3318, %v3358
    %v3360 = vpop.f32.mrb[0].mxu0
    %v3361 = vpop.f32.mrb[0].mxu0
    %3362 = vdwg.mxu0
    %3363 = vmatprep.subr.bf16.mxu0 %v2409
    %3364 = vmatpush1.bf16.msra.mxu0 %v2408
    %3365 = vmatprep.subr.bf16.mxu0 %v2413
    %3366 = vmatpush1.bf16.msra.mxu0 %v2412
    %3367 = vmatprep.subr.bf16.mxu0 %v2417
    %3368 = vmatpush1.bf16.msra.mxu0 %v2416
    %3369 = vmatprep.subr.bf16.mxu0 %v2421
    %3370 = vmatpush1.bf16.msra.mxu0 %v2420
    %3371 = vmatprep.subr.bf16.mxu0 %v2425
    %3372 = vmatpush1.bf16.msra.mxu0 %v2424
    %3373 = vmatprep.subr.bf16.mxu0 %v2429
    %3374 = vmatpush1.bf16.msra.mxu0 %v2428
    %3375 = vmatprep.subr.bf16.mxu0 %v2433
    %3376 = vmatpush1.bf16.msra.mxu0 %v2432
    %3377 = vmatprep.subr.bf16.mxu0 %v2437
    %3378 = vmatpush1.bf16.msra.mxu0 %v2436
    %3379 = vmatprep.subr.bf16.mxu0 %v2441
    %3380 = vmatpush1.bf16.msra.mxu0 %v2440
    %3381 = vmatprep.subr.bf16.mxu0 %v2445
    %3382 = vmatpush1.bf16.msra.mxu0 %v2444
    %3383 = vmatprep.subr.bf16.mxu0 %v2449
    %3384 = vmatpush1.bf16.msra.mxu0 %v2448
    %3385 = vmatprep.subr.bf16.mxu0 %v2453
    %3386 = vmatpush1.bf16.msra.mxu0 %v2452
    %3387 = vmatprep.subr.bf16.mxu0 %v2457
    %3388 = vmatpush1.bf16.msra.mxu0 %v2456
    %3389 = vmatprep.subr.bf16.mxu0 %v2461
    %3390 = vmatpush1.bf16.msra.mxu0 %v2460
    %3391 = vmatprep.subr.bf16.mxu0 %v2465
    %3392 = vmatpush1.bf16.msra.mxu0 %v2464
    %3393 = vmatprep.subr.bf16.mxu0 %v2469
    %3394 = vmatpush1.bf16.msra.mxu0 %v2468
    %3395 = vmatprep.mubr.bf16.mxu0 %v614
    %3396 = vmatmul.mubr.bf16.gmra.mrb[0].mxu0 %v612
    %v3397 = vpop.f32.mrb[0].mxu0
    %v3398 = vadd.f32 %v3357, %v3397
    %v3399 = vpop.f32.mrb[0].mxu0
    %v3400 = vadd.f32 %v3359, %v3399
    %v3401 = vpop.f32.mrb[0].mxu0
    %v3402 = vpop.f32.mrb[0].mxu0
    %3403 = vdwg.mxu0
    %3404 = vmatprep.subr.bf16.mxu0 %v2473
    %3405 = vmatpush1.bf16.msra.mxu0 %v2472
    %3406 = vmatprep.subr.bf16.mxu0 %v2477
    %3407 = vmatpush1.bf16.msra.mxu0 %v2476
    %3408 = vmatprep.subr.bf16.mxu0 %v2481
    %3409 = vmatpush1.bf16.msra.mxu0 %v2480
    %3410 = vmatprep.subr.bf16.mxu0 %v2485
    %3411 = vmatpush1.bf16.msra.mxu0 %v2484
    %3412 = vmatprep.subr.bf16.mxu0 %v2489
    %3413 = vmatpush1.bf16.msra.mxu0 %v2488
    %3414 = vmatprep.subr.bf16.mxu0 %v2493
    %3415 = vmatpush1.bf16.msra.mxu0 %v2492
    %3416 = vmatprep.subr.bf16.mxu0 %v2497
    %3417 = vmatpush1.bf16.msra.mxu0 %v2496
    %3418 = vmatprep.subr.bf16.mxu0 %v2501
    %3419 = vmatpush1.bf16.msra.mxu0 %v2500
    %3420 = vmatprep.subr.bf16.mxu0 %v2505
    %3421 = vmatpush1.bf16.msra.mxu0 %v2504
    %3422 = vmatprep.subr.bf16.mxu0 %v2509
    %3423 = vmatpush1.bf16.msra.mxu0 %v2508
    %3424 = vmatprep.subr.bf16.mxu0 %v2513
    %3425 = vmatpush1.bf16.msra.mxu0 %v2512
    %3426 = vmatprep.subr.bf16.mxu0 %v2517
    %3427 = vmatpush1.bf16.msra.mxu0 %v2516
    %3428 = vmatprep.subr.bf16.mxu0 %v2521
    %3429 = vmatpush1.bf16.msra.mxu0 %v2520
    %3430 = vmatprep.subr.bf16.mxu0 %v2525
    %3431 = vmatpush1.bf16.msra.mxu0 %v2524
    %3432 = vmatprep.subr.bf16.mxu0 %v2529
    %3433 = vmatpush1.bf16.msra.mxu0 %v2528
    %3434 = vmatprep.subr.bf16.mxu0 %v2533
    %3435 = vmatpush1.bf16.msra.mxu0 %v2532
    %3436 = vmatprep.mubr.bf16.mxu0 %v652
    %3437 = vmatmul.mubr.bf16.gmra.mrb[0].mxu0 %v638
    %v3438 = vpop.f32.mrb[0].mxu0
    %v3439 = vadd.f32 %v3398, %v3438
    %v3440 = vpop.f32.mrb[0].mxu0
    %v3441 = vadd.f32 %v3400, %v3440
    %v3442 = vpop.f32.mrb[0].mxu0
    %v3443 = vpop.f32.mrb[0].mxu0
    %3444 = vdwg.mxu0
    %3445 = vmatprep.subr.bf16.mxu0 %v2537
    %3446 = vmatpush1.bf16.msra.mxu0 %v2536
    %3447 = vmatprep.subr.bf16.mxu0 %v2541
    %3448 = vmatpush1.bf16.msra.mxu0 %v2540
    %3449 = vmatprep.subr.bf16.mxu0 %v2545
    %3450 = vmatpush1.bf16.msra.mxu0 %v2544
    %3451 = vmatprep.subr.bf16.mxu0 %v2549
    %3452 = vmatpush1.bf16.msra.mxu0 %v2548
    %3453 = vmatprep.subr.bf16.mxu0 %v2553
    %3454 = vmatpush1.bf16.msra.mxu0 %v2552
    %3455 = vmatprep.subr.bf16.mxu0 %v2557
    %3456 = vmatpush1.bf16.msra.mxu0 %v2556
    %3457 = vmatprep.subr.bf16.mxu0 %v2561
    %3458 = vmatpush1.bf16.msra.mxu0 %v2560
    %3459 = vmatprep.subr.bf16.mxu0 %v2565
    %3460 = vmatpush1.bf16.msra.mxu0 %v2564
    %3461 = vmatprep.subr.bf16.mxu0 %v2569
    %3462 = vmatpush1.bf16.msra.mxu0 %v2568
    %3463 = vmatprep.subr.bf16.mxu0 %v2573
    %3464 = vmatpush1.bf16.msra.mxu0 %v2572
    %3465 = vmatprep.subr.bf16.mxu0 %v2577
    %3466 = vmatpush1.bf16.msra.mxu0 %v2576
    %3467 = vmatprep.subr.bf16.mxu0 %v2581
    %3468 = vmatpush1.bf16.msra.mxu0 %v2580
    %3469 = vmatprep.subr.bf16.mxu0 %v2585
    %3470 = vmatpush1.bf16.msra.mxu0 %v2584
    %3471 = vmatprep.subr.bf16.mxu0 %v2589
    %3472 = vmatpush1.bf16.msra.mxu0 %v2588
    %3473 = vmatprep.subr.bf16.mxu0 %v2593
    %3474 = vmatpush1.bf16.msra.mxu0 %v2592
    %3475 = vmatprep.subr.bf16.mxu0 %v2597
    %3476 = vmatpush1.bf16.msra.mxu0 %v2596
    %3477 = vmatprep.mubr.bf16.mxu0 %v662
    %3478 = vmatmul.mubr.bf16.gmra.mrb[0].mxu0 %v660
    %v3479 = vpop.f32.mrb[0].mxu0
    %v3480 = vadd.f32 %v3439, %v3479
    %v3481 = vpop.f32.mrb[0].mxu0
    %v3482 = vadd.f32 %v3441, %v3481
    %v3483 = vpop.f32.mrb[0].mxu0
    %v3484 = vpop.f32.mrb[0].mxu0
    %3485 = vdwg.mxu0
    %3486 = vmatprep.subr.bf16.mxu0 %v2601
    %3487 = vmatpush1.bf16.msra.mxu0 %v2600
    %3488 = vmatprep.subr.bf16.mxu0 %v2605
    %3489 = vmatpush1.bf16.msra.mxu0 %v2604
    %3490 = vmatprep.subr.bf16.mxu0 %v2609
    %3491 = vmatpush1.bf16.msra.mxu0 %v2608
    %3492 = vmatprep.subr.bf16.mxu0 %v2613
    %3493 = vmatpush1.bf16.msra.mxu0 %v2612
    %3494 = vmatprep.subr.bf16.mxu0 %v2617
    %3495 = vmatpush1.bf16.msra.mxu0 %v2616
    %3496 = vmatprep.subr.bf16.mxu0 %v2621
    %3497 = vmatpush1.bf16.msra.mxu0 %v2620
    %3498 = vmatprep.subr.bf16.mxu0 %v2625
    %3499 = vmatpush1.bf16.msra.mxu0 %v2624
    %3500 = vmatprep.subr.bf16.mxu0 %v2629
    %3501 = vmatpush1.bf16.msra.mxu0 %v2628
    %3502 = vmatprep.subr.bf16.mxu0 %v2633
    %3503 = vmatpush1.bf16.msra.mxu0 %v2632
    %3504 = vmatprep.subr.bf16.mxu0 %v2637
    %3505 = vmatpush1.bf16.msra.mxu0 %v2636
    %3506 = vmatprep.subr.bf16.mxu0 %v2641
    %3507 = vmatpush1.bf16.msra.mxu0 %v2640
    %3508 = vmatprep.subr.bf16.mxu0 %v2645
    %3509 = vmatpush1.bf16.msra.mxu0 %v2644
    %3510 = vmatprep.subr.bf16.mxu0 %v2649
    %3511 = vmatpush1.bf16.msra.mxu0 %v2648
    %3512 = vmatprep.subr.bf16.mxu0 %v2653
    %3513 = vmatpush1.bf16.msra.mxu0 %v2652
    %3514 = vmatprep.subr.bf16.mxu0 %v2657
    %3515 = vmatpush1.bf16.msra.mxu0 %v2656
    %3516 = vmatprep.subr.bf16.mxu0 %v2661
    %3517 = vmatpush1.bf16.msra.mxu0 %v2660
    %3518 = vmatprep.mubr.bf16.mxu0 %v659
    %3519 = vmatmul.mubr.bf16.gmra.mrb[0].mxu0 %v645
    %v3520 = vpop.f32.mrb[0].mxu0
    %v3521 = vadd.f32 %v3480, %v3520
    %v3522 = vpop.f32.mrb[0].mxu0
    %v3523 = vadd.f32 %v3482, %v3522
    %v3524 = vpop.f32.mrb[0].mxu0
    %v3525 = vpop.f32.mrb[0].mxu0
    %3526 = vdwg.mxu0
    %3527 = vmatprep.subr.bf16.mxu0 %v2665
    %3528 = vmatpush1.bf16.msra.mxu0 %v2664
    %3529 = vmatprep.subr.bf16.mxu0 %v2669
    %3530 = vmatpush1.bf16.msra.mxu0 %v2668
    %3531 = vmatprep.subr.bf16.mxu0 %v2673
    %3532 = vmatpush1.bf16.msra.mxu0 %v2672
    %3533 = vmatprep.subr.bf16.mxu0 %v2677
    %3534 = vmatpush1.bf16.msra.mxu0 %v2676
    %3535 = vmatprep.subr.bf16.mxu0 %v2681
    %3536 = vmatpush1.bf16.msra.mxu0 %v2680
    %3537 = vmatprep.subr.bf16.mxu0 %v2685
    %3538 = vmatpush1.bf16.msra.mxu0 %v2684
    %3539 = vmatprep.subr.bf16.mxu0 %v2689
    %3540 = vmatpush1.bf16.msra.mxu0 %v2688
    %3541 = vmatprep.subr.bf16.mxu0 %v2693
    %3542 = vmatpush1.bf16.msra.mxu0 %v2692
    %3543 = vmatprep.subr.bf16.mxu0 %v2697
    %3544 = vmatpush1.bf16.msra.mxu0 %v2696
    %3545 = vmatprep.subr.bf16.mxu0 %v2701
    %3546 = vmatpush1.bf16.msra.mxu0 %v2700
    %3547 = vmatprep.subr.bf16.mxu0 %v2705
    %3548 = vmatpush1.bf16.msra.mxu0 %v2704
    %3549 = vmatprep.subr.bf16.mxu0 %v2709
    %3550 = vmatpush1.bf16.msra.mxu0 %v2708
    %3551 = vmatprep.subr.bf16.mxu0 %v2713
    %3552 = vmatpush1.bf16.msra.mxu0 %v2712
    %3553 = vmatprep.subr.bf16.mxu0 %v2717
    %3554 = vmatpush1.bf16.msra.mxu0 %v2716
    %3555 = vmatprep.subr.bf16.mxu0 %v2721
    %3556 = vmatpush1.bf16.msra.mxu0 %v2720
    %3557 = vmatprep.subr.bf16.mxu0 %v2725
    %3558 = vmatpush1.bf16.msra.mxu0 %v2724
    %3559 = vmatprep.mubr.bf16.mxu0 %v663
    %3560 = vmatmul.mubr.bf16.gmra.mrb[0].mxu0 %v661
    %v3561 = vpop.f32.mrb[0].mxu0
    %v3562 = vadd.f32 %v3521, %v3561
    %v3563 = vpop.f32.mrb[0].mxu0
    %v3564 = vadd.f32 %v3523, %v3563
    %v3565 = vpop.f32.mrb[0].mxu0
    %v3566 = vpop.f32.mrb[0].mxu0
    %3567 = vdwg.mxu0
    %3568 = vmatprep.subr.bf16.mxu0 %v2219
    %3569 = vmatpush1.bf16.msra.mxu0 %v2218
    %3570 = vmatprep.subr.bf16.mxu0 %v2223
    %3571 = vmatpush1.bf16.msra.mxu0 %v2222
    %3572 = vmatprep.subr.bf16.mxu0 %v2227
    %3573 = vmatpush1.bf16.msra.mxu0 %v2226
    %3574 = vmatprep.subr.bf16.mxu0 %v2231
    %3575 = vmatpush1.bf16.msra.mxu0 %v2230
    %3576 = vmatprep.subr.bf16.mxu0 %v2235
    %3577 = vmatpush1.bf16.msra.mxu0 %v2234
    %3578 = vmatprep.subr.bf16.mxu0 %v2239
    %3579 = vmatpush1.bf16.msra.mxu0 %v2238
    %3580 = vmatprep.subr.bf16.mxu0 %v2243
    %3581 = vmatpush1.bf16.msra.mxu0 %v2242
    %3582 = vmatprep.subr.bf16.mxu0 %v2247
    %3583 = vmatpush1.bf16.msra.mxu0 %v2246
    %3584 = vmatprep.subr.bf16.mxu0 %v2251
    %3585 = vmatpush1.bf16.msra.mxu0 %v2250
    %3586 = vmatprep.subr.bf16.mxu0 %v2255
    %3587 = vmatpush1.bf16.msra.mxu0 %v2254
    %3588 = vmatprep.subr.bf16.mxu0 %v2259
    %3589 = vmatpush1.bf16.msra.mxu0 %v2258
    %3590 = vmatprep.subr.bf16.mxu0 %v2263
    %3591 = vmatpush1.bf16.msra.mxu0 %v2262
    %3592 = vmatprep.subr.bf16.mxu0 %v2267
    %3593 = vmatpush1.bf16.msra.mxu0 %v2266
    %3594 = vmatprep.subr.bf16.mxu0 %v2271
    %3595 = vmatpush1.bf16.msra.mxu0 %v2270
    %3596 = vmatprep.subr.bf16.mxu0 %v2275
    %3597 = vmatpush1.bf16.msra.mxu0 %v2274
    %3598 = vmatprep.subr.bf16.mxu0 %v2279
    %3599 = vmatpush1.bf16.msra.mxu0 %v2278
    %3600 = vmatprep.mubr.bf16.mxu0 %v603
    %3601 = vmatmul.mubr.bf16.gmra.mrb[0].mxu0 %v589
    %v3602 = vpop.f32.mrb[0].mxu0
    %v3603 = vadd.f32 %v555, %v3602
    %v3604 = vpop.f32.mrb[0].mxu0
    %v3605 = vadd.f32 %v559, %v3604
    %v3606 = vpop.f32.mrb[0].mxu0
    %v3607 = vpop.f32.mrb[0].mxu0
    %3608 = vdwg.mxu0
    %3609 = vmatprep.subr.bf16.mxu0 %v2283
    %3610 = vmatpush1.bf16.msra.mxu0 %v2282
    %3611 = vmatprep.subr.bf16.mxu0 %v2287
    %3612 = vmatpush1.bf16.msra.mxu0 %v2286
    %3613 = vmatprep.subr.bf16.mxu0 %v2291
    %3614 = vmatpush1.bf16.msra.mxu0 %v2290
    %3615 = vmatprep.subr.bf16.mxu0 %v2295
    %3616 = vmatpush1.bf16.msra.mxu0 %v2294
    %3617 = vmatprep.subr.bf16.mxu0 %v2299
    %3618 = vmatpush1.bf16.msra.mxu0 %v2298
    %3619 = vmatprep.subr.bf16.mxu0 %v2303
    %3620 = vmatpush1.bf16.msra.mxu0 %v2302
    %3621 = vmatprep.subr.bf16.mxu0 %v2307
    %3622 = vmatpush1.bf16.msra.mxu0 %v2306
    %3623 = vmatprep.subr.bf16.mxu0 %v2311
    %3624 = vmatpush1.bf16.msra.mxu0 %v2310
    %3625 = vmatprep.subr.bf16.mxu0 %v2315
    %3626 = vmatpush1.bf16.msra.mxu0 %v2314
    %3627 = vmatprep.subr.bf16.mxu0 %v2319
    %3628 = vmatpush1.bf16.msra.mxu0 %v2318
    %3629 = vmatprep.subr.bf16.mxu0 %v2323
    %3630 = vmatpush1.bf16.msra.mxu0 %v2322
    %3631 = vmatprep.subr.bf16.mxu0 %v2327
    %3632 = vmatpush1.bf16.msra.mxu0 %v2326
    %3633 = vmatprep.subr.bf16.mxu0 %v2331
    %3634 = vmatpush1.bf16.msra.mxu0 %v2330
    %3635 = vmatprep.subr.bf16.mxu0 %v2335
    %3636 = vmatpush1.bf16.msra.mxu0 %v2334
    %3637 = vmatprep.subr.bf16.mxu0 %v2339
    %3638 = vmatpush1.bf16.msra.mxu0 %v2338
    %3639 = vmatprep.subr.bf16.mxu0 %v2343
    %3640 = vmatpush1.bf16.msra.mxu0 %v2342
    %3641 = vmatprep.mubr.bf16.mxu0 %v613
    %3642 = vmatmul.mubr.bf16.gmra.mrb[0].mxu0 %v611
    %v3643 = vpop.f32.mrb[0].mxu0
    %v3644 = vadd.f32 %v3603, %v3643
    %v3645 = vpop.f32.mrb[0].mxu0
    %v3646 = vadd.f32 %v3605, %v3645
    %v3647 = vpop.f32.mrb[0].mxu0
    %v3648 = vpop.f32.mrb[0].mxu0
    %3649 = vdwg.mxu0
    %3650 = vmatprep.subr.bf16.mxu0 %v2347
    %3651 = vmatpush1.bf16.msra.mxu0 %v2346
    %3652 = vmatprep.subr.bf16.mxu0 %v2351
    %3653 = vmatpush1.bf16.msra.mxu0 %v2350
    %3654 = vmatprep.subr.bf16.mxu0 %v2355
    %3655 = vmatpush1.bf16.msra.mxu0 %v2354
    %3656 = vmatprep.subr.bf16.mxu0 %v2359
    %3657 = vmatpush1.bf16.msra.mxu0 %v2358
    %3658 = vmatprep.subr.bf16.mxu0 %v2363
    %3659 = vmatpush1.bf16.msra.mxu0 %v2362
    %3660 = vmatprep.subr.bf16.mxu0 %v2367
    %3661 = vmatpush1.bf16.msra.mxu0 %v2366
    %3662 = vmatprep.subr.bf16.mxu0 %v2371
    %3663 = vmatpush1.bf16.msra.mxu0 %v2370
    %3664 = vmatprep.subr.bf16.mxu0 %v2375
    %3665 = vmatpush1.bf16.msra.mxu0 %v2374
    %3666 = vmatprep.subr.bf16.mxu0 %v2379
    %3667 = vmatpush1.bf16.msra.mxu0 %v2378
    %3668 = vmatprep.subr.bf16.mxu0 %v2383
    %3669 = vmatpush1.bf16.msra.mxu0 %v2382
    %3670 = vmatprep.subr.bf16.mxu0 %v2387
    %3671 = vmatpush1.bf16.msra.mxu0 %v2386
    %3672 = vmatprep.subr.bf16.mxu0 %v2391
    %3673 = vmatpush1.bf16.msra.mxu0 %v2390
    %3674 = vmatprep.subr.bf16.mxu0 %v2395
    %3675 = vmatpush1.bf16.msra.mxu0 %v2394
    %3676 = vmatprep.subr.bf16.mxu0 %v2399
    %3677 = vmatpush1.bf16.msra.mxu0 %v2398
    %3678 = vmatprep.subr.bf16.mxu0 %v2403
    %3679 = vmatpush1.bf16.msra.mxu0 %v2402
    %3680 = vmatprep.subr.bf16.mxu0 %v2407
    %3681 = vmatpush1.bf16.msra.mxu0 %v2406
    %3682 = vmatprep.mubr.bf16.mxu0 %v610
    %3683 = vmatmul.mubr.bf16.gmra.mrb[0].mxu0 %v596
    %v3684 = vpop.f32.mrb[0].mxu0
    %v3685 = vadd.f32 %v3644, %v3684
    %v3686 = vpop.f32.mrb[0].mxu0
    %v3687 = vadd.f32 %v3646, %v3686
    %v3688 = vpop.f32.mrb[0].mxu0
    %v3689 = vpop.f32.mrb[0].mxu0
    %3690 = vdwg.mxu0
    %3691 = vmatprep.subr.bf16.mxu0 %v2411
    %3692 = vmatpush1.bf16.msra.mxu0 %v2410
    %3693 = vmatprep.subr.bf16.mxu0 %v2415
    %3694 = vmatpush1.bf16.msra.mxu0 %v2414
    %3695 = vmatprep.subr.bf16.mxu0 %v2419
    %3696 = vmatpush1.bf16.msra.mxu0 %v2418
    %3697 = vmatprep.subr.bf16.mxu0 %v2423
    %3698 = vmatpush1.bf16.msra.mxu0 %v2422
    %3699 = vmatprep.subr.bf16.mxu0 %v2427
    %3700 = vmatpush1.bf16.msra.mxu0 %v2426
    %3701 = vmatprep.subr.bf16.mxu0 %v2431
    %3702 = vmatpush1.bf16.msra.mxu0 %v2430
    %3703 = vmatprep.subr.bf16.mxu0 %v2435
    %3704 = vmatpush1.bf16.msra.mxu0 %v2434
    %3705 = vmatprep.subr.bf16.mxu0 %v2439
    %3706 = vmatpush1.bf16.msra.mxu0 %v2438
    %3707 = vmatprep.subr.bf16.mxu0 %v2443
    %3708 = vmatpush1.bf16.msra.mxu0 %v2442
    %3709 = vmatprep.subr.bf16.mxu0 %v2447
    %3710 = vmatpush1.bf16.msra.mxu0 %v2446
    %3711 = vmatprep.subr.bf16.mxu0 %v2451
    %3712 = vmatpush1.bf16.msra.mxu0 %v2450
    %3713 = vmatprep.subr.bf16.mxu0 %v2455
    %3714 = vmatpush1.bf16.msra.mxu0 %v2454
    %3715 = vmatprep.subr.bf16.mxu0 %v2459
    %3716 = vmatpush1.bf16.msra.mxu0 %v2458
    %3717 = vmatprep.subr.bf16.mxu0 %v2463
    %3718 = vmatpush1.bf16.msra.mxu0 %v2462
    %3719 = vmatprep.subr.bf16.mxu0 %v2467
    %3720 = vmatpush1.bf16.msra.mxu0 %v2466
    %3721 = vmatprep.subr.bf16.mxu0 %v2471
    %3722 = vmatpush1.bf16.msra.mxu0 %v2470
    %3723 = vmatprep.mubr.bf16.mxu0 %v614
    %3724 = vmatmul.mubr.bf16.gmra.mrb[0].mxu0 %v612
    %v3725 = vpop.f32.mrb[0].mxu0
    %v3726 = vadd.f32 %v3685, %v3725
    %v3727 = vpop.f32.mrb[0].mxu0
    %v3728 = vadd.f32 %v3687, %v3727
    %v3729 = vpop.f32.mrb[0].mxu0
    %v3730 = vpop.f32.mrb[0].mxu0
    %3731 = vdwg.mxu0
    %3732 = vmatprep.subr.bf16.mxu0 %v2475
    %3733 = vmatpush1.bf16.msra.mxu0 %v2474
    %3734 = vmatprep.subr.bf16.mxu0 %v2479
    %3735 = vmatpush1.bf16.msra.mxu0 %v2478
    %3736 = vmatprep.subr.bf16.mxu0 %v2483
    %3737 = vmatpush1.bf16.msra.mxu0 %v2482
    %3738 = vmatprep.subr.bf16.mxu0 %v2487
    %3739 = vmatpush1.bf16.msra.mxu0 %v2486
    %3740 = vmatprep.subr.bf16.mxu0 %v2491
    %3741 = vmatpush1.bf16.msra.mxu0 %v2490
    %3742 = vmatprep.subr.bf16.mxu0 %v2495
    %3743 = vmatpush1.bf16.msra.mxu0 %v2494
    %3744 = vmatprep.subr.bf16.mxu0 %v2499
    %3745 = vmatpush1.bf16.msra.mxu0 %v2498
    %3746 = vmatprep.subr.bf16.mxu0 %v2503
    %3747 = vmatpush1.bf16.msra.mxu0 %v2502
    %3748 = vmatprep.subr.bf16.mxu0 %v2507
    %3749 = vmatpush1.bf16.msra.mxu0 %v2506
    %3750 = vmatprep.subr.bf16.mxu0 %v2511
    %3751 = vmatpush1.bf16.msra.mxu0 %v2510
    %3752 = vmatprep.subr.bf16.mxu0 %v2515
    %3753 = vmatpush1.bf16.msra.mxu0 %v2514
    %3754 = vmatprep.subr.bf16.mxu0 %v2519
    %3755 = vmatpush1.bf16.msra.mxu0 %v2518
    %3756 = vmatprep.subr.bf16.mxu0 %v2523
    %3757 = vmatpush1.bf16.msra.mxu0 %v2522
    %3758 = vmatprep.subr.bf16.mxu0 %v2527
    %3759 = vmatpush1.bf16.msra.mxu0 %v2526
    %3760 = vmatprep.subr.bf16.mxu0 %v2531
    %3761 = vmatpush1.bf16.msra.mxu0 %v2530
    %3762 = vmatprep.subr.bf16.mxu0 %v2535
    %3763 = vmatpush1.bf16.msra.mxu0 %v2534
    %3764 = vmatprep.mubr.bf16.mxu0 %v652
    %3765 = vmatmul.mubr.bf16.gmra.mrb[0].mxu0 %v638
    %v3766 = vpop.f32.mrb[0].mxu0
    %v3767 = vadd.f32 %v3726, %v3766
    %v3768 = vpop.f32.mrb[0].mxu0
    %v3769 = vadd.f32 %v3728, %v3768
    %v3770 = vpop.f32.mrb[0].mxu0
    %v3771 = vpop.f32.mrb[0].mxu0
    %3772 = vdwg.mxu0
    %3773 = vmatprep.subr.bf16.mxu0 %v2539
    %3774 = vmatpush1.bf16.msra.mxu0 %v2538
    %3775 = vmatprep.subr.bf16.mxu0 %v2543
    %3776 = vmatpush1.bf16.msra.mxu0 %v2542
    %3777 = vmatprep.subr.bf16.mxu0 %v2547
    %3778 = vmatpush1.bf16.msra.mxu0 %v2546
    %3779 = vmatprep.subr.bf16.mxu0 %v2551
    %3780 = vmatpush1.bf16.msra.mxu0 %v2550
    %3781 = vmatprep.subr.bf16.mxu0 %v2555
    %3782 = vmatpush1.bf16.msra.mxu0 %v2554
    %3783 = vmatprep.subr.bf16.mxu0 %v2559
    %3784 = vmatpush1.bf16.msra.mxu0 %v2558
    %3785 = vmatprep.subr.bf16.mxu0 %v2563
    %3786 = vmatpush1.bf16.msra.mxu0 %v2562
    %3787 = vmatprep.subr.bf16.mxu0 %v2567
    %3788 = vmatpush1.bf16.msra.mxu0 %v2566
    %3789 = vmatprep.subr.bf16.mxu0 %v2571
    %3790 = vmatpush1.bf16.msra.mxu0 %v2570
    %3791 = vmatprep.subr.bf16.mxu0 %v2575
    %3792 = vmatpush1.bf16.msra.mxu0 %v2574
    %3793 = vmatprep.subr.bf16.mxu0 %v2579
    %3794 = vmatpush1.bf16.msra.mxu0 %v2578
    %3795 = vmatprep.subr.bf16.mxu0 %v2583
    %3796 = vmatpush1.bf16.msra.mxu0 %v2582
    %3797 = vmatprep.subr.bf16.mxu0 %v2587
    %3798 = vmatpush1.bf16.msra.mxu0 %v2586
    %3799 = vmatprep.subr.bf16.mxu0 %v2591
    %3800 = vmatpush1.bf16.msra.mxu0 %v2590
    %3801 = vmatprep.subr.bf16.mxu0 %v2595
    %3802 = vmatpush1.bf16.msra.mxu0 %v2594
    %3803 = vmatprep.subr.bf16.mxu0 %v2599
    %3804 = vmatpush1.bf16.msra.mxu0 %v2598
    %3805 = vmatprep.mubr.bf16.mxu0 %v662
    %3806 = vmatmul.mubr.bf16.gmra.mrb[0].mxu0 %v660
    %v3807 = vpop.f32.mrb[0].mxu0
    %v3808 = vadd.f32 %v3767, %v3807
    %v3809 = vpop.f32.mrb[0].mxu0
    %v3810 = vadd.f32 %v3769, %v3809
    %v3811 = vpop.f32.mrb[0].mxu0
    %v3812 = vpop.f32.mrb[0].mxu0
    %3813 = vdwg.mxu0
    %3814 = vmatprep.subr.bf16.mxu0 %v2603
    %3815 = vmatpush1.bf16.msra.mxu0 %v2602
    %3816 = vmatprep.subr.bf16.mxu0 %v2607
    %3817 = vmatpush1.bf16.msra.mxu0 %v2606
    %3818 = vmatprep.subr.bf16.mxu0 %v2611
    %3819 = vmatpush1.bf16.msra.mxu0 %v2610
    %3820 = vmatprep.subr.bf16.mxu0 %v2615
    %3821 = vmatpush1.bf16.msra.mxu0 %v2614
    %3822 = vmatprep.subr.bf16.mxu0 %v2619
    %3823 = vmatpush1.bf16.msra.mxu0 %v2618
    %3824 = vmatprep.subr.bf16.mxu0 %v2623
    %3825 = vmatpush1.bf16.msra.mxu0 %v2622
    %3826 = vmatprep.subr.bf16.mxu0 %v2627
    %3827 = vmatpush1.bf16.msra.mxu0 %v2626
    %3828 = vmatprep.subr.bf16.mxu0 %v2631
    %3829 = vmatpush1.bf16.msra.mxu0 %v2630
    %3830 = vmatprep.subr.bf16.mxu0 %v2635
    %3831 = vmatpush1.bf16.msra.mxu0 %v2634
    %3832 = vmatprep.subr.bf16.mxu0 %v2639
    %3833 = vmatpush1.bf16.msra.mxu0 %v2638
    %3834 = vmatprep.subr.bf16.mxu0 %v2643
    %3835 = vmatpush1.bf16.msra.mxu0 %v2642
    %3836 = vmatprep.subr.bf16.mxu0 %v2647
    %3837 = vmatpush1.bf16.msra.mxu0 %v2646
    %3838 = vmatprep.subr.bf16.mxu0 %v2651
    %3839 = vmatpush1.bf16.msra.mxu0 %v2650
    %3840 = vmatprep.subr.bf16.mxu0 %v2655
    %3841 = vmatpush1.bf16.msra.mxu0 %v2654
    %3842 = vmatprep.subr.bf16.mxu0 %v2659
    %3843 = vmatpush1.bf16.msra.mxu0 %v2658
    %3844 = vmatprep.subr.bf16.mxu0 %v2663
    %3845 = vmatpush1.bf16.msra.mxu0 %v2662
    %3846 = vmatprep.mubr.bf16.mxu0 %v659
    %3847 = vmatmul.mubr.bf16.gmra.mrb[0].mxu0 %v645
    %v3848 = vpop.f32.mrb[0].mxu0
    %v3849 = vadd.f32 %v3808, %v3848
    %v3850 = vpop.f32.mrb[0].mxu0
    %v3851 = vadd.f32 %v3810, %v3850
    %v3852 = vpop.f32.mrb[0].mxu0
    %v3853 = vpop.f32.mrb[0].mxu0
    %3854 = vdwg.mxu0
    %3855 = vmatprep.subr.bf16.mxu0 %v2667
    %3856 = vmatpush1.bf16.msra.mxu0 %v2666
    %3857 = vmatprep.subr.bf16.mxu0 %v2671
    %3858 = vmatpush1.bf16.msra.mxu0 %v2670
    %3859 = vmatprep.subr.bf16.mxu0 %v2675
    %3860 = vmatpush1.bf16.msra.mxu0 %v2674
    %3861 = vmatprep.subr.bf16.mxu0 %v2679
    %3862 = vmatpush1.bf16.msra.mxu0 %v2678
    %3863 = vmatprep.subr.bf16.mxu0 %v2683
    %3864 = vmatpush1.bf16.msra.mxu0 %v2682
    %3865 = vmatprep.subr.bf16.mxu0 %v2687
    %3866 = vmatpush1.bf16.msra.mxu0 %v2686
    %3867 = vmatprep.subr.bf16.mxu0 %v2691
    %3868 = vmatpush1.bf16.msra.mxu0 %v2690
    %3869 = vmatprep.subr.bf16.mxu0 %v2695
    %3870 = vmatpush1.bf16.msra.mxu0 %v2694
    %3871 = vmatprep.subr.bf16.mxu0 %v2699
    %3872 = vmatpush1.bf16.msra.mxu0 %v2698
    %3873 = vmatprep.subr.bf16.mxu0 %v2703
    %3874 = vmatpush1.bf16.msra.mxu0 %v2702
    %3875 = vmatprep.subr.bf16.mxu0 %v2707
    %3876 = vmatpush1.bf16.msra.mxu0 %v2706
    %3877 = vmatprep.subr.bf16.mxu0 %v2711
    %3878 = vmatpush1.bf16.msra.mxu0 %v2710
    %3879 = vmatprep.subr.bf16.mxu0 %v2715
    %3880 = vmatpush1.bf16.msra.mxu0 %v2714
    %3881 = vmatprep.subr.bf16.mxu0 %v2719
    %3882 = vmatpush1.bf16.msra.mxu0 %v2718
    %3883 = vmatprep.subr.bf16.mxu0 %v2723
    %3884 = vmatpush1.bf16.msra.mxu0 %v2722
    %3885 = vmatprep.subr.bf16.mxu0 %v2727
    %3886 = vmatpush1.bf16.msra.mxu0 %v2726
    %3887 = vmatprep.mubr.bf16.mxu0 %v663
    %3888 = vmatmul.mubr.bf16.gmra.mrb[0].mxu0 %v661
    %v3889 = vpop.f32.mrb[0].mxu0
    %v3890 = vadd.f32 %v3849, %v3889
    %v3891 = vpop.f32.mrb[0].mxu0
    %v3892 = vadd.f32 %v3851, %v3891
    %v3893 = vpop.f32.mrb[0].mxu0
    %v3894 = vpop.f32.mrb[0].mxu0
    %3895 = vdwg.mxu0
    %v3896 = vmax.f32 %v3562, 0.0
    %v3897 = vmax.f32 %v3564, 0.0
    %v3898 = vmax.f32 %v3890, 0.0
    %v3899 = vmax.f32 %v3892, 0.0
    %v3900 = vpack.c.bf16 %v3896, %v3896
    %v3901 = vpack.c.bf16 %v3897, %v3897
    %v3902 = vpack.c.bf16 %v3898, %v3898
    %v3903 = vpack.c.bf16 %v3899, %v3899
    %v3904 = vld [vmem:[%s3] sm:$0xf]
    %v3905 = vld [vmem:[%s3 + $0x4] sm:$0xf]
    %v3906 = vld [vmem:[%s3 + $0x8] sm:$0xf]
    %v3907 = vld [vmem:[%s3 + $0xc] sm:$0xf]
    %v3908 = vld [vmem:[%s3 + $0x10] sm:$0xf]
    %v3909 = vld [vmem:[%s3 + $0x14] sm:$0xf]
    %v3910 = vld [vmem:[%s3 + $0x18] sm:$0xf]
    %v3911 = vld [vmem:[%s3 + $0x1c] sm:$0xf]
    %v3912 = vld [vmem:[%s3 + $0x20] sm:$0xf]
    %v3913 = vld [vmem:[%s3 + $0x24] sm:$0xf]
    %v3914 = vld [vmem:[%s3 + $0x28] sm:$0xf]
    %v3915 = vld [vmem:[%s3 + $0x2c] sm:$0xf]
    %v3916 = vld [vmem:[%s3 + $0x30] sm:$0xf]
    %v3917 = vld [vmem:[%s3 + $0x34] sm:$0xf]
    %v3918 = vld [vmem:[%s3 + $0x38] sm:$0xf]
    %v3919 = vld [vmem:[%s3 + $0x3c] sm:$0xf]
    %v3920 = vld [vmem:[%s3 + $0x40] sm:$0xf]
    %v3921 = vld [vmem:[%s3 + $0x44] sm:$0xf]
    %v3922 = vld [vmem:[%s3 + $0x48] sm:$0xf]
    %v3923 = vld [vmem:[%s3 + $0x4c] sm:$0xf]
    %v3924 = vld [vmem:[%s3 + $0x50] sm:$0xf]
    %v3925 = vld [vmem:[%s3 + $0x54] sm:$0xf]
    %v3926 = vld [vmem:[%s3 + $0x58] sm:$0xf]
    %v3927 = vld [vmem:[%s3 + $0x5c] sm:$0xf]
    %v3928 = vld [vmem:[%s3 + $0x60] sm:$0xf]
    %v3929 = vld [vmem:[%s3 + $0x64] sm:$0xf]
    %v3930 = vld [vmem:[%s3 + $0x68] sm:$0xf]
    %v3931 = vld [vmem:[%s3 + $0x6c] sm:$0xf]
    %v3932 = vld [vmem:[%s3 + $0x70] sm:$0xf]
    %v3933 = vld [vmem:[%s3 + $0x74] sm:$0xf]
    %v3934 = vld [vmem:[%s3 + $0x78] sm:$0xf]
    %v3935 = vld [vmem:[%s3 + $0x7c] sm:$0xf]
    %v3936 = vld [vmem:[%s3 + $0x80] sm:$0xf]
    %v3937 = vld [vmem:[%s3 + $0x84] sm:$0xf]
    %v3938 = vld [vmem:[%s3 + $0x88] sm:$0xf]
    %v3939 = vld [vmem:[%s3 + $0x8c] sm:$0xf]
    %v3940 = vld [vmem:[%s3 + $0x90] sm:$0xf]
    %v3941 = vld [vmem:[%s3 + $0x94] sm:$0xf]
    %v3942 = vld [vmem:[%s3 + $0x98] sm:$0xf]
    %v3943 = vld [vmem:[%s3 + $0x9c] sm:$0xf]
    %v3944 = vld [vmem:[%s3 + $0xa0] sm:$0xf]
    %v3945 = vld [vmem:[%s3 + $0xa4] sm:$0xf]
    %v3946 = vld [vmem:[%s3 + $0xa8] sm:$0xf]
    %v3947 = vld [vmem:[%s3 + $0xac] sm:$0xf]
    %v3948 = vld [vmem:[%s3 + $0xb0] sm:$0xf]
    %v3949 = vld [vmem:[%s3 + $0xb4] sm:$0xf]
    %v3950 = vld [vmem:[%s3 + $0xb8] sm:$0xf]
    %v3951 = vld [vmem:[%s3 + $0xbc] sm:$0xf]
    %v3952 = vld [vmem:[%s3 + $0xc0] sm:$0xf]
    %v3953 = vld [vmem:[%s3 + $0xc4] sm:$0xf]
    %v3954 = vld [vmem:[%s3 + $0xc8] sm:$0xf]
    %v3955 = vld [vmem:[%s3 + $0xcc] sm:$0xf]
    %v3956 = vld [vmem:[%s3 + $0xd0] sm:$0xf]
    %v3957 = vld [vmem:[%s3 + $0xd4] sm:$0xf]
    %v3958 = vld [vmem:[%s3 + $0xd8] sm:$0xf]
    %v3959 = vld [vmem:[%s3 + $0xdc] sm:$0xf]
    %v3960 = vld [vmem:[%s3 + $0xe0] sm:$0xf]
    %v3961 = vld [vmem:[%s3 + $0xe4] sm:$0xf]
    %v3962 = vld [vmem:[%s3 + $0xe8] sm:$0xf]
    %v3963 = vld [vmem:[%s3 + $0xec] sm:$0xf]
    %v3964 = vld [vmem:[%s3 + $0xf0] sm:$0xf]
    %v3965 = vld [vmem:[%s3 + $0xf4] sm:$0xf]
    %v3966 = vld [vmem:[%s3 + $0xf8] sm:$0xf]
    %v3967 = vld [vmem:[%s3 + $0xfc] sm:$0xf]
    %v3968 = vld [vmem:[%s4] sm:$0x1]
    %v3970 = vlaneseq
    %v3971 = vshrl.u32 %v3970, 7
    %v3972 = vsub.s32 0, %v3971
    %v3973 = vrot.slane %v3968, %v3972
    %v4039 = vunpack.c.l.b16 %v3904
    %v4040 = vunpack.c.l.b16 %v3905
    %v4041 = vunpack.c.l.b16 %v3906
    %v4042 = vunpack.c.l.b16 %v3907
    %v4043 = vunpack.c.l.b16 %v3908
    %v4044 = vunpack.c.l.b16 %v3909
    %v4045 = vunpack.c.l.b16 %v3910
    %v4046 = vunpack.c.l.b16 %v3911
    %v4047 = vunpack.c.l.b16 %v3912
    %v4048 = vunpack.c.l.b16 %v3913
    %v4049 = vunpack.c.l.b16 %v3914
    %v4050 = vunpack.c.l.b16 %v3915
    %v4051 = vunpack.c.l.b16 %v3916
    %v4052 = vunpack.c.l.b16 %v3917
    %v4053 = vunpack.c.l.b16 %v3918
    %v4054 = vunpack.c.l.b16 %v3919
    %v4055 = vunpack.c.l.b16 %v3920
    %v4056 = vunpack.c.l.b16 %v3921
    %v4057 = vunpack.c.l.b16 %v3922
    %v4058 = vunpack.c.l.b16 %v3923
    %v4059 = vunpack.c.l.b16 %v3924
    %v4060 = vunpack.c.l.b16 %v3925
    %v4061 = vunpack.c.l.b16 %v3926
    %v4062 = vunpack.c.l.b16 %v3927
    %v4063 = vunpack.c.l.b16 %v3928
    %v4064 = vunpack.c.l.b16 %v3929
    %v4065 = vunpack.c.l.b16 %v3930
    %v4066 = vunpack.c.l.b16 %v3931
    %v4067 = vunpack.c.l.b16 %v3932
    %v4068 = vunpack.c.l.b16 %v3933
    %v4069 = vunpack.c.l.b16 %v3934
    %v4070 = vunpack.c.l.b16 %v3935
    %v4071 = vunpack.c.l.b16 %v3936
    %v4072 = vunpack.c.l.b16 %v3937
    %v4073 = vunpack.c.l.b16 %v3938
    %v4074 = vunpack.c.l.b16 %v3939
    %v4075 = vunpack.c.l.b16 %v3940
    %v4076 = vunpack.c.l.b16 %v3941
    %v4077 = vunpack.c.l.b16 %v3942
    %v4078 = vunpack.c.l.b16 %v3943
    %v4079 = vunpack.c.l.b16 %v3944
    %v4080 = vunpack.c.l.b16 %v3945
    %v4081 = vunpack.c.l.b16 %v3946
    %v4082 = vunpack.c.l.b16 %v3947
    %v4083 = vunpack.c.l.b16 %v3948
    %v4084 = vunpack.c.l.b16 %v3949
    %v4085 = vunpack.c.l.b16 %v3950
    %v4086 = vunpack.c.l.b16 %v3951
    %v4087 = vunpack.c.l.b16 %v3952
    %v4088 = vunpack.c.l.b16 %v3953
    %v4089 = vunpack.c.l.b16 %v3954
    %v4090 = vunpack.c.l.b16 %v3955
    %v4091 = vunpack.c.l.b16 %v3956
    %v4092 = vunpack.c.l.b16 %v3957
    %v4093 = vunpack.c.l.b16 %v3958
    %v4094 = vunpack.c.l.b16 %v3959
    %v4095 = vunpack.c.l.b16 %v3960
    %v4096 = vunpack.c.l.b16 %v3961
    %v4097 = vunpack.c.l.b16 %v3962
    %v4098 = vunpack.c.l.b16 %v3963
    %v4099 = vunpack.c.l.b16 %v3964
    %v4100 = vunpack.c.l.b16 %v3965
    %v4101 = vunpack.c.l.b16 %v3966
    %v4102 = vunpack.c.l.b16 %v3967
    %v4103 = vpack.c.b16 %v4040, %v4039
    %v4104 = vpack.c.b16 %v4042, %v4041
    %v4105 = vpack.c.b16 %v4044, %v4043
    %v4106 = vpack.c.b16 %v4046, %v4045
    %v4107 = vpack.c.b16 %v4048, %v4047
    %v4108 = vpack.c.b16 %v4050, %v4049
    %v4109 = vpack.c.b16 %v4052, %v4051
    %v4110 = vpack.c.b16 %v4054, %v4053
    %v4111 = vpack.c.b16 %v4056, %v4055
    %v4112 = vpack.c.b16 %v4058, %v4057
    %v4113 = vpack.c.b16 %v4060, %v4059
    %v4114 = vpack.c.b16 %v4062, %v4061
    %v4115 = vpack.c.b16 %v4064, %v4063
    %v4116 = vpack.c.b16 %v4066, %v4065
    %v4117 = vpack.c.b16 %v4068, %v4067
    %v4118 = vpack.c.b16 %v4070, %v4069
    %v4119 = vpack.c.b16 %v4072, %v4071
    %v4120 = vpack.c.b16 %v4074, %v4073
    %v4121 = vpack.c.b16 %v4076, %v4075
    %v4122 = vpack.c.b16 %v4078, %v4077
    %v4123 = vpack.c.b16 %v4080, %v4079
    %v4124 = vpack.c.b16 %v4082, %v4081
    %v4125 = vpack.c.b16 %v4084, %v4083
    %v4126 = vpack.c.b16 %v4086, %v4085
    %v4127 = vpack.c.b16 %v4088, %v4087
    %v4128 = vpack.c.b16 %v4090, %v4089
    %v4129 = vpack.c.b16 %v4092, %v4091
    %v4130 = vpack.c.b16 %v4094, %v4093
    %v4131 = vpack.c.b16 %v4096, %v4095
    %v4132 = vpack.c.b16 %v4098, %v4097
    %v4133 = vpack.c.b16 %v4100, %v4099
    %v4134 = vpack.c.b16 %v4102, %v4101
    %4167 = vmatprep.subr.bf16.mxu0 0
    %4168 = vmatpush1.bf16.msra.mxu0 %v4103
    %4169 = vmatprep.subr.bf16.mxu0 0
    %4170 = vmatpush1.bf16.msra.mxu0 %v4104
    %4171 = vmatprep.subr.bf16.mxu0 0
    %4172 = vmatpush1.bf16.msra.mxu0 %v4105
    %4173 = vmatprep.subr.bf16.mxu0 0
    %4174 = vmatpush1.bf16.msra.mxu0 %v4106
    %4175 = vmatprep.subr.bf16.mxu0 0
    %4176 = vmatpush1.bf16.msra.mxu0 %v4107
    %4177 = vmatprep.subr.bf16.mxu0 0
    %4178 = vmatpush1.bf16.msra.mxu0 %v4108
    %4179 = vmatprep.subr.bf16.mxu0 0
    %4180 = vmatpush1.bf16.msra.mxu0 %v4109
    %4181 = vmatprep.subr.bf16.mxu0 0
    %4182 = vmatpush1.bf16.msra.mxu0 %v4110
    %4183 = vmatprep.subr.bf16.mxu0 0
    %4184 = vmatpush1.bf16.msra.mxu0 %v4111
    %4185 = vmatprep.subr.bf16.mxu0 0
    %4186 = vmatpush1.bf16.msra.mxu0 %v4112
    %4187 = vmatprep.subr.bf16.mxu0 0
    %4188 = vmatpush1.bf16.msra.mxu0 %v4113
    %4189 = vmatprep.subr.bf16.mxu0 0
    %4190 = vmatpush1.bf16.msra.mxu0 %v4114
    %4191 = vmatprep.subr.bf16.mxu0 0
    %4192 = vmatpush1.bf16.msra.mxu0 %v4115
    %4193 = vmatprep.subr.bf16.mxu0 0
    %4194 = vmatpush1.bf16.msra.mxu0 %v4116
    %4195 = vmatprep.subr.bf16.mxu0 0
    %4196 = vmatpush1.bf16.msra.mxu0 %v4117
    %4197 = vmatprep.subr.bf16.mxu0 0
    %4198 = vmatpush1.bf16.msra.mxu0 %v4118
    %4199 = vmatprep.mubr.bf16.mxu0 %v3901
    %4200 = vmatmul.mubr.bf16.gmra.mrb[0].mxu0 %v3900
    %v4201 = vpop.f32.mrb[0].mxu0
    %v4202 = vadd.f32 %v3973, %v4201
    %v4203 = vpop.f32.mrb[0].mxu0
    %v4204 = vpop.f32.mrb[0].mxu0
    %v4205 = vpop.f32.mrb[0].mxu0
    %4206 = vdwg.mxu0
    %4207 = vmatprep.subr.bf16.mxu0 0
    %4208 = vmatpush1.bf16.msra.mxu0 %v4119
    %4209 = vmatprep.subr.bf16.mxu0 0
    %4210 = vmatpush1.bf16.msra.mxu0 %v4120
    %4211 = vmatprep.subr.bf16.mxu0 0
    %4212 = vmatpush1.bf16.msra.mxu0 %v4121
    %4213 = vmatprep.subr.bf16.mxu0 0
    %4214 = vmatpush1.bf16.msra.mxu0 %v4122
    %4215 = vmatprep.subr.bf16.mxu0 0
    %4216 = vmatpush1.bf16.msra.mxu0 %v4123
    %4217 = vmatprep.subr.bf16.mxu0 0
    %4218 = vmatpush1.bf16.msra.mxu0 %v4124
    %4219 = vmatprep.subr.bf16.mxu0 0
    %4220 = vmatpush1.bf16.msra.mxu0 %v4125
    %4221 = vmatprep.subr.bf16.mxu0 0
    %4222 = vmatpush1.bf16.msra.mxu0 %v4126
    %4223 = vmatprep.subr.bf16.mxu0 0
    %4224 = vmatpush1.bf16.msra.mxu0 %v4127
    %4225 = vmatprep.subr.bf16.mxu0 0
    %4226 = vmatpush1.bf16.msra.mxu0 %v4128
    %4227 = vmatprep.subr.bf16.mxu0 0
    %4228 = vmatpush1.bf16.msra.mxu0 %v4129
    %4229 = vmatprep.subr.bf16.mxu0 0
    %4230 = vmatpush1.bf16.msra.mxu0 %v4130
    %4231 = vmatprep.subr.bf16.mxu0 0
    %4232 = vmatpush1.bf16.msra.mxu0 %v4131
    %4233 = vmatprep.subr.bf16.mxu0 0
    %4234 = vmatpush1.bf16.msra.mxu0 %v4132
    %4235 = vmatprep.subr.bf16.mxu0 0
    %4236 = vmatpush1.bf16.msra.mxu0 %v4133
    %4237 = vmatprep.subr.bf16.mxu0 0
    %4238 = vmatpush1.bf16.msra.mxu0 %v4134
    %4239 = vmatprep.mubr.bf16.mxu0 %v3903
    %4240 = vmatmul.mubr.bf16.gmra.mrb[0].mxu0 %v3902
    %v4241 = vpop.f32.mrb[0].mxu0
    %v4242 = vadd.f32 %v4202, %v4241
    %v4243 = vpop.f32.mrb[0].mxu0
    %v4244 = vpop.f32.mrb[0].mxu0
    %v4245 = vpop.f32.mrb[0].mxu0
    %4246 = vdwg.mxu0
    %v4247 = vmax.f32 %v4242, 0.0
    %v4248 = vpack.c.bf16 %v4247, %v4247
    %v4249 = vld [vmem:[%s5] sm:$0xf]
    %v4250 = vld [vmem:[%s5 + $0x4] sm:$0xf]
    %v4251 = vld [vmem:[%s5 + $0x8] sm:$0xf]
    %v4252 = vld [vmem:[%s5 + $0xc] sm:$0xf]
    %v4253 = vld [vmem:[%s5 + $0x10] sm:$0xf]
    %v4254 = vld [vmem:[%s5 + $0x14] sm:$0xf]
    %v4255 = vld [vmem:[%s5 + $0x18] sm:$0xf]
    %v4256 = vld [vmem:[%s5 + $0x1c] sm:$0xf]
    %v4257 = vld [vmem:[%s5 + $0x20] sm:$0xf]
    %v4258 = vld [vmem:[%s5 + $0x24] sm:$0xf]
    %v4259 = vld [vmem:[%s5 + $0x28] sm:$0xf]
    %v4260 = vld [vmem:[%s5 + $0x2c] sm:$0xf]
    %v4261 = vld [vmem:[%s5 + $0x30] sm:$0xf]
    %v4262 = vld [vmem:[%s5 + $0x34] sm:$0xf]
    %v4263 = vld [vmem:[%s5 + $0x38] sm:$0xf]
    %v4264 = vld [vmem:[%s5 + $0x3c] sm:$0xf]
    %v4265 = vld [vmem:[%s6] sm:$0x1]
    %v4267 = vlaneseq
    %v4268 = vshrl.u32 %v4267, 7
    %v4269 = vsub.s32 0, %v4268
    %v4270 = vrot.slane %v4265, %v4269
    %v4288 = vunpack.c.l.b16 %v4249
    %v4289 = vunpack.c.l.b16 %v4250
    %v4290 = vunpack.c.l.b16 %v4251
    %v4291 = vunpack.c.l.b16 %v4252
    %v4292 = vunpack.c.l.b16 %v4253
    %v4293 = vunpack.c.l.b16 %v4254
    %v4294 = vunpack.c.l.b16 %v4255
    %v4295 = vunpack.c.l.b16 %v4256
    %v4296 = vunpack.c.l.b16 %v4257
    %v4297 = vunpack.c.l.b16 %v4258
    %v4298 = vunpack.c.l.b16 %v4259
    %v4299 = vunpack.c.l.b16 %v4260
    %v4300 = vunpack.c.l.b16 %v4261
    %v4301 = vunpack.c.l.b16 %v4262
    %v4302 = vunpack.c.l.b16 %v4263
    %v4303 = vunpack.c.l.b16 %v4264
    %v4304 = vpack.c.b16 %v4289, %v4288
    %v4305 = vpack.c.b16 %v4291, %v4290
    %v4306 = vpack.c.b16 %v4293, %v4292
    %v4307 = vpack.c.b16 %v4295, %v4294
    %v4308 = vpack.c.b16 %v4297, %v4296
    %v4309 = vpack.c.b16 %v4299, %v4298
    %v4310 = vpack.c.b16 %v4301, %v4300
    %v4311 = vpack.c.b16 %v4303, %v4302
    %4320 = vmatprep.subr.bf16.mxu0 0
    %4321 = vmatpush1.bf16.msra.mxu0 %v4304
    %4322 = vmatprep.subr.bf16.mxu0 0
    %4323 = vmatpush1.bf16.msra.mxu0 %v4305
    %4324 = vmatprep.subr.bf16.mxu0 0
    %4325 = vmatpush1.bf16.msra.mxu0 %v4306
    %4326 = vmatprep.subr.bf16.mxu0 0
    %4327 = vmatpush1.bf16.msra.mxu0 %v4307
    %4328 = vmatprep.subr.bf16.mxu0 0
    %4329 = vmatpush1.bf16.msra.mxu0 %v4308
    %4330 = vmatprep.subr.bf16.mxu0 0
    %4331 = vmatpush1.bf16.msra.mxu0 %v4309
    %4332 = vmatprep.subr.bf16.mxu0 0
    %4333 = vmatpush1.bf16.msra.mxu0 %v4310
    %4334 = vmatprep.subr.bf16.mxu0 0
    %4335 = vmatpush1.bf16.msra.mxu0 %v4311
    %4336 = vmatprep.subr.bf16.mxu0 0
    %4337 = vmatpush1.bf16.msra.mxu0 0
    %4338 = vmatprep.subr.bf16.mxu0 0
    %4339 = vmatpush1.bf16.msra.mxu0 0
    %4340 = vmatprep.subr.bf16.mxu0 0
    %4341 = vmatpush1.bf16.msra.mxu0 0
    %4342 = vmatprep.subr.bf16.mxu0 0
    %4343 = vmatpush1.bf16.msra.mxu0 0
    %4344 = vmatprep.subr.bf16.mxu0 0
    %4345 = vmatpush1.bf16.msra.mxu0 0
    %4346 = vmatprep.subr.bf16.mxu0 0
    %4347 = vmatpush1.bf16.msra.mxu0 0
    %4348 = vmatprep.subr.bf16.mxu0 0
    %4349 = vmatpush1.bf16.msra.mxu0 0
    %4350 = vmatprep.subr.bf16.mxu0 0
    %4351 = vmatpush1.bf16.msra.mxu0 0
    %4352 = vmatprep.mubr.bf16.mxu0 0
    %4353 = vmatmul.mubr.bf16.gmra.mrb[0].mxu0 %v4248
    %v4354 = vpop.f32.mrb[0].mxu0
    %v4355 = vadd.f32 %v4270, %v4354
    %v4356 = vpop.f32.mrb[0].mxu0
    %v4357 = vpop.f32.mrb[0].mxu0
    %v4358 = vpop.f32.mrb[0].mxu0
    %4359 = vdwg.mxu0
    %4360 = vst [vmem:[#allocation2] sm:$0x3] %v4355
    // Predicated region
    $region30: #{mnistcnn_forward.9} parent=1 // pred_check
      _
    $region31: #{mnistcnn_forward.9} parent=1 // pred_check_branch
      %4362 = sbr.rel (0) target = $region33
    $region32: #{mnistcnn_forward.9} parent=1 // pred_region
      %s4364 = ssub.s32 32, 32
      %4365 = vsyncadd [#allocation3], %s4364
      %s4367 = sshll.u32 [#allocation2], 4
      %s4368 = int_to_ptr.vmem [resolvable:$true] %s4367
      %4370 = dma.vmem_to_hbm [thread:$0]  %s4368, 32, %s7, [#allocation3]
    $region33: #{mnistcnn_forward.9} parent=1 // pred_fallthru
      _
    // Predicated region
    $region34: #{mnistcnn_forward.9} parent=1 // pred_check
      _
    $region35: #{mnistcnn_forward.9} parent=1 // pred_check_branch
      %4372 = sbr.rel (0) target = $region37
    $region36: #{mnistcnn_forward.9} parent=1 // pred_region
      %4373 = dma.done [#allocation3], 32
    $region37: #{mnistcnn_forward.9} parent=1 // pred_fallthru
      _
    %4374 = vsyncpa [#allocation3], 1

</llo_original>
